<compile_context>
chip_gen: v7x
topology: tpu7x:2x2x1
jax: 0.10.0
libtpu: 0.0.40
codegen_flags: <defaults>
</compile_context>

<pallas_src>
import math
from functools import partial

import jax
import jax.numpy as jnp
from jax import lax
from jax.experimental import pallas as pl
from jax.experimental.pallas import tpu as pltpu


# ----------------------------- model config (small) -------------------------
D_MODEL = 128
N_HEAD = 4
D_HEAD = D_MODEL // N_HEAD
FFN_HIDDEN = 256
SEQ_LEN = 8
BATCH = 2
VOCAB = 128
N_LAYERS = 2
EPS = 1e-6

MISC_ROWS = 16  # 13 packed rows, padded to a multiple of 8 sublanes
MISC_W = max(3 * D_MODEL, 2 * D_MODEL, FFN_HIDDEN, D_MODEL)  # 384, lane aligned


# --------------------------- in-kernel helper math ---------------------------
def _layer_norm(x, gamma, beta, d):
    # Spec semantics: unbiased std (divide by d-1), normalize by (std + eps).
    mean = jnp.mean(x, axis=-1, keepdims=True)
    diff = x - mean
    var = jnp.sum(diff * diff, axis=-1, keepdims=True) * jnp.float32(1.0 / (d - 1))
    std = jnp.sqrt(var)
    return gamma * diff / (std + jnp.float32(EPS)) + beta


def _mha_folded(q, k, v, mask2d, n_head, d_head, batch, seq):
    """q,k,v: (B*S, D) f32; mask2d: (B*S, S).  Returns (B*S, D) f32."""
    inv_sqrt = jnp.float32(1.0 / math.sqrt(d_head))
    bf = jnp.bfloat16
    rows = []
    for b in range(batch):  # static unrolled (B=2)
        r0, r1 = b * seq, (b + 1) * seq
        qb = q[r0:r1].astype(bf)
        kb = k[r0:r1].astype(bf)
        vb = v[r0:r1].astype(bf)
        mb = mask2d[r0:r1, :]  # (S, S)
        heads = []
        for h in range(n_head):  # static unrolled (H=4)
            lo, hi = h * d_head, (h + 1) * d_head
            # contract on last dims -> no explicit transpose materialized
            s = lax.dot_general(
                qb[:, lo:hi], kb[:, lo:hi], (((1,), (1,)), ((), ())),
                preferred_element_type=jnp.float32,
            ) * inv_sqrt
            s = jnp.where(mb == 0, jnp.float32(-10000.0), s)
            s = s - jnp.max(s, axis=-1, keepdims=True)
            p = jnp.exp(s)
            p = p * pl.reciprocal(jnp.sum(p, axis=-1, keepdims=True), approx=True)
            heads.append(
                jnp.dot(p.astype(bf), vb[:, lo:hi],
                        preferred_element_type=jnp.float32)
            )
        rows.append(jnp.concatenate(heads, axis=-1))  # (S, D)
    return jnp.concatenate(rows, axis=0)  # (B*S, D)


# ------------------------- fused decoder-stack kernel ------------------------
def _decoder_stack_kernel(
    x0_ref, enc_ref, tmask_ref, smask_ref,
    wqkv_ref, wo1_ref, wq2_ref, wkv2_ref, wo2_ref, wf1_ref, wf2_ref, misc_ref,
    wout_ref, bout_ref,
    out_ref, x_scr,
    *, d_model, n_head, d_head, batch, seq,
):
    D = d_model
    F = wf1_ref.shape[-1]
    bf = jnp.bfloat16
    l = pl.program_id(0)

    @pl.when(l == 0)
    def _():
        x_scr[...] = x0_ref[...]

    x = x_scr[...]                          # (B*S, D) f32 — carried across layers
    enc_bf = enc_ref[...].astype(bf)        # (B*S, D)
    tmask = tmask_ref[...]                  # (B*S, S)
    smask = smask_ref[...]                  # (B*S, S)
    misc = misc_ref[...]                    # (16, MISC_W) f32 — packed biases/LN

    bqkv = misc[0:1, : 3 * D]
    bkv2 = misc[1:2, : 2 * D]
    bf1 = misc[2:3, :F]
    bo1 = misc[3:4, :D]
    bq2 = misc[4:5, :D]
    bo2 = misc[5:6, :D]
    bf2 = misc[6:7, :D]
    g1, be1 = misc[7:8, :D], misc[8:9, :D]
    g2, be2 = misc[9:10, :D], misc[10:11, :D]
    g3, be3 = misc[11:12, :D], misc[12:13, :D]

    # ---- self attention (fused QKV projection over all B*S rows) ----
    qkv = jnp.dot(x.astype(bf), wqkv_ref[...],
                  preferred_element_type=jnp.float32) + bqkv
    attn = _mha_folded(qkv[:, :D], qkv[:, D:2 * D], qkv[:, 2 * D:],
                       tmask, n_head, d_head, batch, seq)
    a = jnp.dot(attn.astype(bf), wo1_ref[...],
                preferred_element_type=jnp.float32) + bo1
    x = _layer_norm(a + x, g1, be1, D)      # dropout = identity (eval)

    # ---- encoder-decoder attention (fused KV projection from enc) ----
    q = jnp.dot(x.astype(bf), wq2_ref[...],
                preferred_element_type=jnp.float32) + bq2
    kv = jnp.dot(enc_bf, wkv2_ref[...],
                 preferred_element_type=jnp.float32) + bkv2
    attn = _mha_folded(q, kv[:, :D], kv[:, D:], smask, n_head, d_head, batch, seq)
    a = jnp.dot(attn.astype(bf), wo2_ref[...],
                preferred_element_type=jnp.float32) + bo2
    x = _layer_norm(a + x, g2, be2, D)

    # ---- position-wise FFN ----
    h = jnp.dot(x.astype(bf), wf1_ref[...],
                preferred_element_type=jnp.float32) + bf1
    h = jnp.maximum(h, 0.0)
    f = jnp.dot(h.astype(bf), wf2_ref[...],
                preferred_element_type=jnp.float32) + bf2
    x = _layer_norm(f + x, g3, be3, D)

    x_scr[...] = x

    # ---- final vocab projection, fused on the last layer step ----
    @pl.when(l == pl.num_programs(0) - 1)
    def _():
        out_ref[...] = (
            jnp.dot(x.astype(bf), wout_ref[...],
                    preferred_element_type=jnp.float32)
            + bout_ref[...]
        )


def decoder_stack(x0, enc, tmask2d, smask2d, p):
    """x0, enc: (B*S, D) f32; masks: (B*S, S); p: prepared/stacked params."""
    BS, D = x0.shape
    S = tmask2d.shape[1]
    B = BS // S
    L = p["wqkv"].shape[0]
    F = p["wf1"].shape[2]
    V = p["w_out"].shape[1]
    R, W = p["misc"].shape[1], p["misc"].shape[2]

    def const2(shape):  # grid-invariant 2-D block (fetched once)
        return pl.BlockSpec(shape, lambda l: (0, 0))

    def per_layer(d0, d1):  # layer-streamed weight slab, layer dim squeezed
        return pl.BlockSpec((None, d0, d1), lambda l: (l, 0, 0))

    kernel = partial(_decoder_stack_kernel, d_model=D, n_head=N_HEAD,
                     d_head=D_HEAD, batch=B, seq=S)

    return pl.pallas_call(
        kernel,
        out_shape=jax.ShapeDtypeStruct((BS, V), jnp.float32),
        grid=(L,),
        in_specs=[
            const2((BS, D)),            # x0 (embedded input)
            const2((BS, D)),            # enc
            const2((BS, S)),            # trg_mask (flattened)
            const2((BS, S)),            # src_mask (flattened)
            per_layer(D, 3 * D),        # wqkv
            per_layer(D, D),            # wo1
            per_layer(D, D),            # wq2
            per_layer(D, 2 * D),        # wkv2
            per_layer(D, D),            # wo2
            per_layer(D, F),            # wf1
            per_layer(F, D),            # wf2
            per_layer(R, W),            # packed biases / gamma / beta
            const2((D, V)),             # w_out
            const2((1, V)),             # b_out
        ],
        out_specs=const2((BS, V)),
        scratch_shapes=[pltpu.VMEM((BS, D), jnp.float32)],
        compiler_params=pltpu.CompilerParams(
            dimension_semantics=("arbitrary",)),
    )(
        x0, enc, tmask2d, smask2d,
        p["wqkv"], p["wo1"], p["wq2"], p["wkv2"], p["wo2"],
        p["wf1"], p["wf2"], p["misc"],
        p["w_out"], p["b_out"],
    )


# ------------------------------ model composition ----------------------------
def decoder_forward(trg_ids, enc_src, trg_mask, src_mask, params):
    B, S = trg_ids.shape
    D = params["tok_emb"].shape[1]
    # embedding + positional encoding (plain-JAX glue: gather + add)
    emb = jnp.take(params["tok_emb"], trg_ids, axis=0) + params["pe"][:S]
    x0 = emb.reshape(B * S, D)
    enc = enc_src.reshape(B * S, D)
    tmask2d = trg_mask.reshape(B * S, S)
    smask2d = src_mask.reshape(B * S, S)
    logits = decoder_stack(x0, enc, tmask2d, smask2d, params)  # (B*S, V)
    return logits.reshape(B, S, -1)


# ------------------------------- param init ----------------------------------
def positional_encoding(max_len, d_model):
    position = jnp.arange(max_len, dtype=jnp.float32)[:, None]
    div_term = jnp.exp(
        jnp.arange(0, d_model, 2, dtype=jnp.float32) * -(math.log(10000.0) / d_model)
    )
    pe = jnp.zeros((max_len, d_model), dtype=jnp.float32)
    pe = pe.at[:, 0::2].set(jnp.sin(position * div_term))
    pe = pe.at[:, 1::2].set(jnp.cos(position * div_term))
    return pe


def init_mha_params(key):
    ks = jax.random.split(key, 8)
    s = 0.02
    return {
        "wq": jax.random.normal(ks[0], (D_MODEL, D_MODEL), jnp.float32) * s,
        "bq": jax.random.normal(ks[1], (D_MODEL,), jnp.float32) * s,
        "wk": jax.random.normal(ks[2], (D_MODEL, D_MODEL), jnp.float32) * s,
        "bk": jax.random.normal(ks[3], (D_MODEL,), jnp.float32) * s,
        "wv": jax.random.normal(ks[4], (D_MODEL, D_MODEL), jnp.float32) * s,
        "bv": jax.random.normal(ks[5], (D_MODEL,), jnp.float32) * s,
        "wo": jax.random.normal(ks[6], (D_MODEL, D_MODEL), jnp.float32) * s,
        "bo": jax.random.normal(ks[7], (D_MODEL,), jnp.float32) * s,
    }


def init_layer_params(key):
    ks = jax.random.split(key, 6)
    s = 0.02
    return {
        "self_attn": init_mha_params(ks[0]),
        "cross_attn": init_mha_params(ks[1]),
        "g1": jnp.ones((D_MODEL,), jnp.float32),
        "be1": jnp.zeros((D_MODEL,), jnp.float32),
        "g2": jnp.ones((D_MODEL,), jnp.float32),
        "be2": jnp.zeros((D_MODEL,), jnp.float32),
        "g3": jnp.ones((D_MODEL,), jnp.float32),
        "be3": jnp.zeros((D_MODEL,), jnp.float32),
        "w_ff1": jax.random.normal(ks[2], (D_MODEL, FFN_HIDDEN), jnp.float32) * s,
        "b_ff1": jax.random.normal(ks[3], (FFN_HIDDEN,), jnp.float32) * s,
        "w_ff2": jax.random.normal(ks[4], (FFN_HIDDEN, D_MODEL), jnp.float32) * s,
        "b_ff2": jax.random.normal(ks[5], (D_MODEL,), jnp.float32) * s,
    }


def init_params(key):
    ks = jax.random.split(key, N_LAYERS + 3)
    return {
        "tok_emb": jax.random.normal(ks[0], (VOCAB, D_MODEL), jnp.float32) * 0.02,
        "pe": positional_encoding(SEQ_LEN, D_MODEL),
        "layers": [init_layer_params(ks[1 + i]) for i in range(N_LAYERS)],
        "w_out": jax.random.normal(ks[N_LAYERS + 1], (D_MODEL, VOCAB), jnp.float32)
        * 0.02,
        "b_out": jax.random.normal(ks[N_LAYERS + 2], (VOCAB,), jnp.float32) * 0.02,
    }


def prepare_params(raw):
    """Stack per-layer weights (leading L axis, bf16) and pack the small
    bias/gamma/beta vectors into one lane-aligned f32 slab per layer.
    Runs once, outside the jit-hot path."""
    D, F = D_MODEL, FFN_HIDDEN
    W = MISC_W

    def pad_row(v):
        return jnp.pad(v, (0, W - v.shape[0]))

    wqkv, wo1, wq2, wkv2, wo2, wf1, wf2, misc = ([] for _ in range(8))
    for lp in raw["layers"]:
        sa, ca = lp["self_attn"], lp["cross_attn"]
        wqkv.append(jnp.concatenate([sa["wq"], sa["wk"], sa["wv"]], axis=1))
        wo1.append(sa["wo"])
        wq2.append(ca["wq"])
        wkv2.append(jnp.concatenate([ca["wk"], ca["wv"]], axis=1))
        wo2.append(ca["wo"])
        wf1.append(lp["w_ff1"])
        wf2.append(lp["w_ff2"])
        rows = [
            jnp.concatenate([sa["bq"], sa["bk"], sa["bv"]]),   # 0: bqkv (3D)
            jnp.concatenate([ca["bk"], ca["bv"]]),             # 1: bkv2 (2D)
            lp["b_ff1"],                                       # 2: bf1  (F)
            sa["bo"],                                          # 3: bo1
            ca["bq"],                                          # 4: bq2
            ca["bo"],                                          # 5: bo2
            lp["b_ff2"],                                       # 6: bf2
            lp["g1"], lp["be1"],                               # 7,8
            lp["g2"], lp["be2"],                               # 9,10
            lp["g3"], lp["be3"],                               # 11,12
        ]
        m = jnp.stack([pad_row(r) for r in rows], axis=0)
        m = jnp.pad(m, ((0, MISC_ROWS - m.shape[0]), (0, 0)))
        misc.append(m)

    bf = jnp.bfloat16
    return {
        "tok_emb": raw["tok_emb"],
        "pe": raw["pe"],
        "wqkv": jnp.stack(wqkv).astype(bf),
        "wo1": jnp.stack(wo1).astype(bf),
        "wq2": jnp.stack(wq2).astype(bf),
        "wkv2": jnp.stack(wkv2).astype(bf),
        "wo2": jnp.stack(wo2).astype(bf),
        "wf1": jnp.stack(wf1).astype(bf),
        "wf2": jnp.stack(wf2).astype(bf),
        "misc": jnp.stack(misc),                       # f32
        "w_out": raw["w_out"].astype(bf),
        "b_out": raw["b_out"].reshape(1, VOCAB),       # f32
    }


# ----------------------------------- main ------------------------------------
if __name__ == "__main__":
    key = jax.random.PRNGKey(0)
    k_par, k_trg, k_enc = jax.random.split(key, 3)

    params = prepare_params(init_params(k_par))
    trg = jax.random.randint(k_trg, (BATCH, SEQ_LEN), 0, VOCAB, dtype=jnp.int32)
    enc_src = jax.random.normal(k_enc, (BATCH, SEQ_LEN, D_MODEL), jnp.float32)
    trg_mask = jnp.ones((BATCH, SEQ_LEN, SEQ_LEN), jnp.float32)
    src_mask = jnp.ones((BATCH, SEQ_LEN, SEQ_LEN), jnp.float32)

    fwd = jax.jit(decoder_forward)
    logits = fwd(trg, enc_src, trg_mask, src_mask, params)
    jax.block_until_ready(logits)

    assert logits.shape == (BATCH, SEQ_LEN, VOCAB)
    assert bool(jnp.all(jnp.isfinite(logits)))
    # TODO(synk): dropout layers are identity (inference semantics); no training path.
    print("KERNEL_OK")
</pallas_src>

<mosaic_0001>
module attributes {stable_mosaic.version = 11 : i64} {
  func.func @_decoder_stack_kernel(%arg0: i32, %arg1: memref<16x128xf32, #tpu.memory_space<vmem>>, %arg2: memref<16x128xf32, #tpu.memory_space<vmem>>, %arg3: memref<16x8xf32, #tpu.memory_space<vmem>>, %arg4: memref<16x8xf32, #tpu.memory_space<vmem>>, %arg5: memref<1x128x384xbf16, #tpu.memory_space<vmem>>, %arg6: memref<1x128x128xbf16, #tpu.memory_space<vmem>>, %arg7: memref<1x128x128xbf16, #tpu.memory_space<vmem>>, %arg8: memref<1x128x256xbf16, #tpu.memory_space<vmem>>, %arg9: memref<1x128x128xbf16, #tpu.memory_space<vmem>>, %arg10: memref<1x128x256xbf16, #tpu.memory_space<vmem>>, %arg11: memref<1x256x128xbf16, #tpu.memory_space<vmem>>, %arg12: memref<1x16x384xf32, #tpu.memory_space<vmem>>, %arg13: memref<128x128xbf16, #tpu.memory_space<vmem>>, %arg14: memref<1x128xf32, #tpu.memory_space<vmem>>, %arg15: memref<16x128xf32, #tpu.memory_space<vmem>>, %arg16: memref<16x128xf32, #tpu.memory_space<vmem>>) attributes {dimension_semantics = [#tpu.dimension_semantics<arbitrary>], iteration_bounds = array<i64: 2>, scalar_prefetch = 0 : i64, scratch_operands = 1 : i64, tpu.core_type = #tpu.core_type<tc>, window_params = [{pipeline_mode = #tpu.pipeline_mode<synchronous>, transform_indices = @transform_0, window_bounds = array<i64: 16, 128>}, {pipeline_mode = #tpu.pipeline_mode<synchronous>, transform_indices = @transform_1, window_bounds = array<i64: 16, 128>}, {pipeline_mode = #tpu.pipeline_mode<synchronous>, transform_indices = @transform_2, window_bounds = array<i64: 16, 8>}, {pipeline_mode = #tpu.pipeline_mode<synchronous>, transform_indices = @transform_3, window_bounds = array<i64: 16, 8>}, {transform_indices = @transform_4, window_bounds = array<i64: 1, 128, 384>}, {transform_indices = @transform_5, window_bounds = array<i64: 1, 128, 128>}, {transform_indices = @transform_6, window_bounds = array<i64: 1, 128, 128>}, {transform_indices = @transform_7, window_bounds = array<i64: 1, 128, 256>}, {transform_indices = @transform_8, window_bounds = array<i64: 1, 128, 128>}, {transform_indices = @transform_9, window_bounds = array<i64: 1, 128, 256>}, {transform_indices = @transform_10, window_bounds = array<i64: 1, 256, 128>}, {transform_indices = @transform_11, window_bounds = array<i64: 1, 16, 384>}, {pipeline_mode = #tpu.pipeline_mode<synchronous>, transform_indices = @transform_12, window_bounds = array<i64: 128, 128>}, {pipeline_mode = #tpu.pipeline_mode<synchronous>, transform_indices = @transform_13, window_bounds = array<i64: 1, 128>}, {pipeline_mode = #tpu.pipeline_mode<synchronous>, transform_indices = @transform_14, window_bounds = array<i64: 16, 128>}]} {
    %c0_i32 = arith.constant 0 : i32
    %0 = arith.cmpi eq, %arg0, %c0_i32 : i32
    %1 = arith.extui %0 : i1 to i32
    %c0_i32_0 = arith.constant 0 : i32
    %2 = arith.cmpi ne, %1, %c0_i32_0 : i32
    scf.if %2 {
      %c0_169 = arith.constant 0 : index
      %c0_170 = arith.constant 0 : index
      %524 = vector.load %arg1[%c0_169, %c0_170] : memref<16x128xf32, #tpu.memory_space<vmem>>, vector<16x128xf32>
      %c0_171 = arith.constant 0 : index
      %c0_172 = arith.constant 0 : index
      %525 = vector.load %arg16[%c0_171, %c0_172] : memref<16x128xf32, #tpu.memory_space<vmem>>, vector<16x128xf32>
      tpu.vector_store %arg16[%c0_171, %c0_172], %524 {strides = array<i32>} : memref<16x128xf32, #tpu.memory_space<vmem>>, vector<16x128xf32>,
    } else {
    }
    %c0 = arith.constant 0 : index
    %c0_1 = arith.constant 0 : index
    %3 = vector.load %arg16[%c0, %c0_1] : memref<16x128xf32, #tpu.memory_space<vmem>>, vector<16x128xf32>
    %c0_2 = arith.constant 0 : index
    %c0_3 = arith.constant 0 : index
    %4 = vector.load %arg2[%c0_2, %c0_3] : memref<16x128xf32, #tpu.memory_space<vmem>>, vector<16x128xf32>
    %5 = arith.truncf %4 : vector<16x128xf32> to vector<16x128xbf16>
    %c0_4 = arith.constant 0 : index
    %c0_5 = arith.constant 0 : index
    %6 = vector.load %arg3[%c0_4, %c0_5] : memref<16x8xf32, #tpu.memory_space<vmem>>, vector<16x8xf32>
    %c0_6 = arith.constant 0 : index
    %c0_7 = arith.constant 0 : index
    %7 = vector.load %arg4[%c0_6, %c0_7] : memref<16x8xf32, #tpu.memory_space<vmem>>, vector<16x8xf32>
    %c0_8 = arith.constant 0 : index
    %c0_9 = arith.constant 0 : index
    %c0_10 = arith.constant 0 : index
    %8 = vector.load %arg12[%c0_8, %c0_9, %c0_10] : memref<1x16x384xf32, #tpu.memory_space<vmem>>, vector<1x16x384xf32>
    %9 = vector.shape_cast %8 : vector<1x16x384xf32> to vector<16x384xf32>
    %10 = vector.extract_strided_slice %9 {offsets = [0, 0], sizes = [1, 384], strides = [1, 1]} : vector<16x384xf32> to vector<1x384xf32>
    %11 = vector.extract_strided_slice %9 {offsets = [1, 0], sizes = [1, 256], strides = [1, 1]} : vector<16x384xf32> to vector<1x256xf32>
    %12 = vector.extract_strided_slice %9 {offsets = [2, 0], sizes = [1, 256], strides = [1, 1]} : vector<16x384xf32> to vector<1x256xf32>
    %13 = vector.extract_strided_slice %9 {offsets = [3, 0], sizes = [1, 128], strides = [1, 1]} : vector<16x384xf32> to vector<1x128xf32>
    %14 = vector.extract_strided_slice %9 {offsets = [4, 0], sizes = [1, 128], strides = [1, 1]} : vector<16x384xf32> to vector<1x128xf32>
    %15 = vector.extract_strided_slice %9 {offsets = [5, 0], sizes = [1, 128], strides = [1, 1]} : vector<16x384xf32> to vector<1x128xf32>
    %16 = vector.extract_strided_slice %9 {offsets = [6, 0], sizes = [1, 128], strides = [1, 1]} : vector<16x384xf32> to vector<1x128xf32>
    %17 = vector.extract_strided_slice %9 {offsets = [7, 0], sizes = [1, 128], strides = [1, 1]} : vector<16x384xf32> to vector<1x128xf32>
    %18 = vector.extract_strided_slice %9 {offsets = [8, 0], sizes = [1, 128], strides = [1, 1]} : vector<16x384xf32> to vector<1x128xf32>
    %19 = vector.extract_strided_slice %9 {offsets = [9, 0], sizes = [1, 128], strides = [1, 1]} : vector<16x384xf32> to vector<1x128xf32>
    %20 = vector.extract_strided_slice %9 {offsets = [10, 0], sizes = [1, 128], strides = [1, 1]} : vector<16x384xf32> to vector<1x128xf32>
    %21 = vector.extract_strided_slice %9 {offsets = [11, 0], sizes = [1, 128], strides = [1, 1]} : vector<16x384xf32> to vector<1x128xf32>
    %22 = vector.extract_strided_slice %9 {offsets = [12, 0], sizes = [1, 128], strides = [1, 1]} : vector<16x384xf32> to vector<1x128xf32>
    %23 = arith.truncf %3 : vector<16x128xf32> to vector<16x128xbf16>
    %c0_11 = arith.constant 0 : index
    %c0_12 = arith.constant 0 : index
    %c0_13 = arith.constant 0 : index
    %24 = vector.load %arg5[%c0_11, %c0_12, %c0_13] : memref<1x128x384xbf16, #tpu.memory_space<vmem>>, vector<1x128x384xbf16>
    %25 = vector.shape_cast %24 : vector<1x128x384xbf16> to vector<128x384xbf16>
    %cst = arith.constant dense<0.000000e+00> : vector<16x384xf32>
    %26 = tpu.matmul %23, %25, %cst {dimension_numbers = #tpu.dot_dimension_numbers<[1], [0], [0], [1], [0, 0, 1, 1], [], []>} : vector<16x128xbf16>, vector<128x384xbf16>, vector<16x384xf32> -> vector<16x384xf32>
    %27 = vector.broadcast %10 : vector<1x384xf32> to vector<16x384xf32>
    %28 = arith.addf %26, %27 : vector<16x384xf32>
    %29 = vector.extract_strided_slice %28 {offsets = [0, 0], sizes = [16, 128], strides = [1, 1]} : vector<16x384xf32> to vector<16x128xf32>
    %30 = vector.extract_strided_slice %28 {offsets = [0, 128], sizes = [16, 128], strides = [1, 1]} : vector<16x384xf32> to vector<16x128xf32>
    %31 = vector.extract_strided_slice %28 {offsets = [0, 256], sizes = [16, 128], strides = [1, 1]} : vector<16x384xf32> to vector<16x128xf32>
    %32 = vector.extract_strided_slice %29 {offsets = [0, 0], sizes = [8, 128], strides = [1, 1]} : vector<16x128xf32> to vector<8x128xf32>
    %33 = arith.truncf %32 : vector<8x128xf32> to vector<8x128xbf16>
    %34 = vector.extract_strided_slice %30 {offsets = [0, 0], sizes = [8, 128], strides = [1, 1]} : vector<16x128xf32> to vector<8x128xf32>
    %35 = arith.truncf %34 : vector<8x128xf32> to vector<8x128xbf16>
    %36 = vector.extract_strided_slice %31 {offsets = [0, 0], sizes = [8, 128], strides = [1, 1]} : vector<16x128xf32> to vector<8x128xf32>
    %37 = arith.truncf %36 : vector<8x128xf32> to vector<8x128xbf16>
    %38 = vector.extract_strided_slice %6 {offsets = [0, 0], sizes = [8, 8], strides = [1, 1]} : vector<16x8xf32> to vector<8x8xf32>
    %39 = vector.extract_strided_slice %33 {offsets = [0, 0], sizes = [8, 32], strides = [1, 1]} : vector<8x128xbf16> to vector<8x32xbf16>
    %40 = vector.extract_strided_slice %35 {offsets = [0, 0], sizes = [8, 32], strides = [1, 1]} : vector<8x128xbf16> to vector<8x32xbf16>
    %cst_14 = arith.constant dense<0.000000e+00> : vector<8x8xf32>
    %41 = tpu.matmul %39, %40, %cst_14 {dimension_numbers = #tpu.dot_dimension_numbers<[1], [1], [0], [0], [0, 0, 1, 0], [], []>} : vector<8x32xbf16>, vector<8x32xbf16>, vector<8x8xf32> -> vector<8x8xf32>
    %cst_15 = arith.constant 0.176776692 : f32
    %42 = vector.broadcast %cst_15 : f32 to vector<8x8xf32>
    %43 = arith.mulf %41, %42 : vector<8x8xf32>
    %cst_16 = arith.constant 0.000000e+00 : f32
    %44 = vector.broadcast %cst_16 : f32 to vector<8x8xf32>
    %45 = arith.cmpf oeq, %38, %44 : vector<8x8xf32>
    %cst_17 = arith.constant -1.000000e+04 : f32
    %46 = vector.broadcast %cst_17 : f32 to vector<8x8xf32>
    %47 = arith.select %45, %46, %43 : vector<8x8xi1>, vector<8x8xf32>
    %cst_18 = arith.constant dense<0xFF800000> : vector<8xf32>
    %48 = vector.multi_reduction <maximumf>, %47, %cst_18 [1] : vector<8x8xf32> to vector<8xf32>
    %49 = vector.shape_cast %48 : vector<8xf32> to vector<8x1xf32>
    %50 = vector.broadcast %49 : vector<8x1xf32> to vector<8x8xf32>
    %51 = arith.subf %47, %50 : vector<8x8xf32>
    %52 = math.exp %51 : vector<8x8xf32>
    %cst_19 = arith.constant dense<0.000000e+00> : vector<8xf32>
    %53 = vector.multi_reduction <add>, %52, %cst_19 [1] : vector<8x8xf32> to vector<8xf32>
    %54 = vector.shape_cast %53 : vector<8xf32> to vector<8x1xf32>
    %55 = tpu.reciprocal %54 {approx = true} : vector<8x1xf32> -> vector<8x1xf32>
    %56 = vector.broadcast %55 : vector<8x1xf32> to vector<8x8xf32>
    %57 = arith.mulf %52, %56 : vector<8x8xf32>
    %58 = arith.truncf %57 : vector<8x8xf32> to vector<8x8xbf16>
    %59 = vector.extract_strided_slice %37 {offsets = [0, 0], sizes = [8, 32], strides = [1, 1]} : vector<8x128xbf16> to vector<8x32xbf16>
    %cst_20 = arith.constant dense<0.000000e+00> : vector<8x32xf32>
    %60 = tpu.matmul %58, %59, %cst_20 {dimension_numbers = #tpu.dot_dimension_numbers<[1], [0], [0], [1], [0, 0, 1, 1], [], []>} : vector<8x8xbf16>, vector<8x32xbf16>, vector<8x32xf32> -> vector<8x32xf32>
    %61 = vector.extract_strided_slice %33 {offsets = [0, 32], sizes = [8, 32], strides = [1, 1]} : vector<8x128xbf16> to vector<8x32xbf16>
    %62 = vector.extract_strided_slice %35 {offsets = [0, 32], sizes = [8, 32], strides = [1, 1]} : vector<8x128xbf16> to vector<8x32xbf16>
    %cst_21 = arith.constant dense<0.000000e+00> : vector<8x8xf32>
    %63 = tpu.matmul %61, %62, %cst_21 {dimension_numbers = #tpu.dot_dimension_numbers<[1], [1], [0], [0], [0, 0, 1, 0], [], []>} : vector<8x32xbf16>, vector<8x32xbf16>, vector<8x8xf32> -> vector<8x8xf32>
    %cst_22 = arith.constant 0.176776692 : f32
    %64 = vector.broadcast %cst_22 : f32 to vector<8x8xf32>
    %65 = arith.mulf %63, %64 : vector<8x8xf32>
    %cst_23 = arith.constant 0.000000e+00 : f32
    %66 = vector.broadcast %cst_23 : f32 to vector<8x8xf32>
    %67 = arith.cmpf oeq, %38, %66 : vector<8x8xf32>
    %cst_24 = arith.constant -1.000000e+04 : f32
    %68 = vector.broadcast %cst_24 : f32 to vector<8x8xf32>
    %69 = arith.select %67, %68, %65 : vector<8x8xi1>, vector<8x8xf32>
    %cst_25 = arith.constant dense<0xFF800000> : vector<8xf32>
    %70 = vector.multi_reduction <maximumf>, %69, %cst_25 [1] : vector<8x8xf32> to vector<8xf32>
    %71 = vector.shape_cast %70 : vector<8xf32> to vector<8x1xf32>
    %72 = vector.broadcast %71 : vector<8x1xf32> to vector<8x8xf32>
    %73 = arith.subf %69, %72 : vector<8x8xf32>
    %74 = math.exp %73 : vector<8x8xf32>
    %cst_26 = arith.constant dense<0.000000e+00> : vector<8xf32>
    %75 = vector.multi_reduction <add>, %74, %cst_26 [1] : vector<8x8xf32> to vector<8xf32>
    %76 = vector.shape_cast %75 : vector<8xf32> to vector<8x1xf32>
    %77 = tpu.reciprocal %76 {approx = true} : vector<8x1xf32> -> vector<8x1xf32>
    %78 = vector.broadcast %77 : vector<8x1xf32> to vector<8x8xf32>
    %79 = arith.mulf %74, %78 : vector<8x8xf32>
    %80 = arith.truncf %79 : vector<8x8xf32> to vector<8x8xbf16>
    %81 = vector.extract_strided_slice %37 {offsets = [0, 32], sizes = [8, 32], strides = [1, 1]} : vector<8x128xbf16> to vector<8x32xbf16>
    %cst_27 = arith.constant dense<0.000000e+00> : vector<8x32xf32>
    %82 = tpu.matmul %80, %81, %cst_27 {dimension_numbers = #tpu.dot_dimension_numbers<[1], [0], [0], [1], [0, 0, 1, 1], [], []>} : vector<8x8xbf16>, vector<8x32xbf16>, vector<8x32xf32> -> vector<8x32xf32>
    %83 = vector.extract_strided_slice %33 {offsets = [0, 64], sizes = [8, 32], strides = [1, 1]} : vector<8x128xbf16> to vector<8x32xbf16>
    %84 = vector.extract_strided_slice %35 {offsets = [0, 64], sizes = [8, 32], strides = [1, 1]} : vector<8x128xbf16> to vector<8x32xbf16>
    %cst_28 = arith.constant dense<0.000000e+00> : vector<8x8xf32>
    %85 = tpu.matmul %83, %84, %cst_28 {dimension_numbers = #tpu.dot_dimension_numbers<[1], [1], [0], [0], [0, 0, 1, 0], [], []>} : vector<8x32xbf16>, vector<8x32xbf16>, vector<8x8xf32> -> vector<8x8xf32>
    %cst_29 = arith.constant 0.176776692 : f32
    %86 = vector.broadcast %cst_29 : f32 to vector<8x8xf32>
    %87 = arith.mulf %85, %86 : vector<8x8xf32>
    %cst_30 = arith.constant 0.000000e+00 : f32
    %88 = vector.broadcast %cst_30 : f32 to vector<8x8xf32>
    %89 = arith.cmpf oeq, %38, %88 : vector<8x8xf32>
    %cst_31 = arith.constant -1.000000e+04 : f32
    %90 = vector.broadcast %cst_31 : f32 to vector<8x8xf32>
    %91 = arith.select %89, %90, %87 : vector<8x8xi1>, vector<8x8xf32>
    %cst_32 = arith.constant dense<0xFF800000> : vector<8xf32>
    %92 = vector.multi_reduction <maximumf>, %91, %cst_32 [1] : vector<8x8xf32> to vector<8xf32>
    %93 = vector.shape_cast %92 : vector<8xf32> to vector<8x1xf32>
    %94 = vector.broadcast %93 : vector<8x1xf32> to vector<8x8xf32>
    %95 = arith.subf %91, %94 : vector<8x8xf32>
    %96 = math.exp %95 : vector<8x8xf32>
    %cst_33 = arith.constant dense<0.000000e+00> : vector<8xf32>
    %97 = vector.multi_reduction <add>, %96, %cst_33 [1] : vector<8x8xf32> to vector<8xf32>
    %98 = vector.shape_cast %97 : vector<8xf32> to vector<8x1xf32>
    %99 = tpu.reciprocal %98 {approx = true} : vector<8x1xf32> -> vector<8x1xf32>
    %100 = vector.broadcast %99 : vector<8x1xf32> to vector<8x8xf32>
    %101 = arith.mulf %96, %100 : vector<8x8xf32>
    %102 = arith.truncf %101 : vector<8x8xf32> to vector<8x8xbf16>
    %103 = vector.extract_strided_slice %37 {offsets = [0, 64], sizes = [8, 32], strides = [1, 1]} : vector<8x128xbf16> to vector<8x32xbf16>
    %cst_34 = arith.constant dense<0.000000e+00> : vector<8x32xf32>
    %104 = tpu.matmul %102, %103, %cst_34 {dimension_numbers = #tpu.dot_dimension_numbers<[1], [0], [0], [1], [0, 0, 1, 1], [], []>} : vector<8x8xbf16>, vector<8x32xbf16>, vector<8x32xf32> -> vector<8x32xf32>
    %105 = vector.extract_strided_slice %33 {offsets = [0, 96], sizes = [8, 32], strides = [1, 1]} : vector<8x128xbf16> to vector<8x32xbf16>
    %106 = vector.extract_strided_slice %35 {offsets = [0, 96], sizes = [8, 32], strides = [1, 1]} : vector<8x128xbf16> to vector<8x32xbf16>
    %cst_35 = arith.constant dense<0.000000e+00> : vector<8x8xf32>
    %107 = tpu.matmul %105, %106, %cst_35 {dimension_numbers = #tpu.dot_dimension_numbers<[1], [1], [0], [0], [0, 0, 1, 0], [], []>} : vector<8x32xbf16>, vector<8x32xbf16>, vector<8x8xf32> -> vector<8x8xf32>
    %cst_36 = arith.constant 0.176776692 : f32
    %108 = vector.broadcast %cst_36 : f32 to vector<8x8xf32>
    %109 = arith.mulf %107, %108 : vector<8x8xf32>
    %cst_37 = arith.constant 0.000000e+00 : f32
    %110 = vector.broadcast %cst_37 : f32 to vector<8x8xf32>
    %111 = arith.cmpf oeq, %38, %110 : vector<8x8xf32>
    %cst_38 = arith.constant -1.000000e+04 : f32
    %112 = vector.broadcast %cst_38 : f32 to vector<8x8xf32>
    %113 = arith.select %111, %112, %109 : vector<8x8xi1>, vector<8x8xf32>
    %cst_39 = arith.constant dense<0xFF800000> : vector<8xf32>
    %114 = vector.multi_reduction <maximumf>, %113, %cst_39 [1] : vector<8x8xf32> to vector<8xf32>
    %115 = vector.shape_cast %114 : vector<8xf32> to vector<8x1xf32>
    %116 = vector.broadcast %115 : vector<8x1xf32> to vector<8x8xf32>
    %117 = arith.subf %113, %116 : vector<8x8xf32>
    %118 = math.exp %117 : vector<8x8xf32>
    %cst_40 = arith.constant dense<0.000000e+00> : vector<8xf32>
    %119 = vector.multi_reduction <add>, %118, %cst_40 [1] : vector<8x8xf32> to vector<8xf32>
    %120 = vector.shape_cast %119 : vector<8xf32> to vector<8x1xf32>
    %121 = tpu.reciprocal %120 {approx = true} : vector<8x1xf32> -> vector<8x1xf32>
    %122 = vector.broadcast %121 : vector<8x1xf32> to vector<8x8xf32>
    %123 = arith.mulf %118, %122 : vector<8x8xf32>
    %124 = arith.truncf %123 : vector<8x8xf32> to vector<8x8xbf16>
    %125 = vector.extract_strided_slice %37 {offsets = [0, 96], sizes = [8, 32], strides = [1, 1]} : vector<8x128xbf16> to vector<8x32xbf16>
    %cst_41 = arith.constant dense<0.000000e+00> : vector<8x32xf32>
    %126 = tpu.matmul %124, %125, %cst_41 {dimension_numbers = #tpu.dot_dimension_numbers<[1], [0], [0], [1], [0, 0, 1, 1], [], []>} : vector<8x8xbf16>, vector<8x32xbf16>, vector<8x32xf32> -> vector<8x32xf32>
    %127 = tpu.concatenate %60, %82, %104, %126 in 1 : vector<8x32xf32>, vector<8x32xf32>, vector<8x32xf32>, vector<8x32xf32> -> vector<8x128xf32>
    %128 = vector.extract_strided_slice %29 {offsets = [8, 0], sizes = [8, 128], strides = [1, 1]} : vector<16x128xf32> to vector<8x128xf32>
    %129 = arith.truncf %128 : vector<8x128xf32> to vector<8x128xbf16>
    %130 = vector.extract_strided_slice %30 {offsets = [8, 0], sizes = [8, 128], strides = [1, 1]} : vector<16x128xf32> to vector<8x128xf32>
    %131 = arith.truncf %130 : vector<8x128xf32> to vector<8x128xbf16>
    %132 = vector.extract_strided_slice %31 {offsets = [8, 0], sizes = [8, 128], strides = [1, 1]} : vector<16x128xf32> to vector<8x128xf32>
    %133 = arith.truncf %132 : vector<8x128xf32> to vector<8x128xbf16>
    %134 = vector.extract_strided_slice %6 {offsets = [8, 0], sizes = [8, 8], strides = [1, 1]} : vector<16x8xf32> to vector<8x8xf32>
    %135 = vector.extract_strided_slice %129 {offsets = [0, 0], sizes = [8, 32], strides = [1, 1]} : vector<8x128xbf16> to vector<8x32xbf16>
    %136 = vector.extract_strided_slice %131 {offsets = [0, 0], sizes = [8, 32], strides = [1, 1]} : vector<8x128xbf16> to vector<8x32xbf16>
    %cst_42 = arith.constant dense<0.000000e+00> : vector<8x8xf32>
    %137 = tpu.matmul %135, %136, %cst_42 {dimension_numbers = #tpu.dot_dimension_numbers<[1], [1], [0], [0], [0, 0, 1, 0], [], []>} : vector<8x32xbf16>, vector<8x32xbf16>, vector<8x8xf32> -> vector<8x8xf32>
    %cst_43 = arith.constant 0.176776692 : f32
    %138 = vector.broadcast %cst_43 : f32 to vector<8x8xf32>
    %139 = arith.mulf %137, %138 : vector<8x8xf32>
    %cst_44 = arith.constant 0.000000e+00 : f32
    %140 = vector.broadcast %cst_44 : f32 to vector<8x8xf32>
    %141 = arith.cmpf oeq, %134, %140 : vector<8x8xf32>
    %cst_45 = arith.constant -1.000000e+04 : f32
    %142 = vector.broadcast %cst_45 : f32 to vector<8x8xf32>
    %143 = arith.select %141, %142, %139 : vector<8x8xi1>, vector<8x8xf32>
    %cst_46 = arith.constant dense<0xFF800000> : vector<8xf32>
    %144 = vector.multi_reduction <maximumf>, %143, %cst_46 [1] : vector<8x8xf32> to vector<8xf32>
    %145 = vector.shape_cast %144 : vector<8xf32> to vector<8x1xf32>
    %146 = vector.broadcast %145 : vector<8x1xf32> to vector<8x8xf32>
    %147 = arith.subf %143, %146 : vector<8x8xf32>
    %148 = math.exp %147 : vector<8x8xf32>
    %cst_47 = arith.constant dense<0.000000e+00> : vector<8xf32>
    %149 = vector.multi_reduction <add>, %148, %cst_47 [1] : vector<8x8xf32> to vector<8xf32>
    %150 = vector.shape_cast %149 : vector<8xf32> to vector<8x1xf32>
    %151 = tpu.reciprocal %150 {approx = true} : vector<8x1xf32> -> vector<8x1xf32>
    %152 = vector.broadcast %151 : vector<8x1xf32> to vector<8x8xf32>
    %153 = arith.mulf %148, %152 : vector<8x8xf32>
    %154 = arith.truncf %153 : vector<8x8xf32> to vector<8x8xbf16>
    %155 = vector.extract_strided_slice %133 {offsets = [0, 0], sizes = [8, 32], strides = [1, 1]} : vector<8x128xbf16> to vector<8x32xbf16>
    %cst_48 = arith.constant dense<0.000000e+00> : vector<8x32xf32>
    %156 = tpu.matmul %154, %155, %cst_48 {dimension_numbers = #tpu.dot_dimension_numbers<[1], [0], [0], [1], [0, 0, 1, 1], [], []>} : vector<8x8xbf16>, vector<8x32xbf16>, vector<8x32xf32> -> vector<8x32xf32>
    %157 = vector.extract_strided_slice %129 {offsets = [0, 32], sizes = [8, 32], strides = [1, 1]} : vector<8x128xbf16> to vector<8x32xbf16>
    %158 = vector.extract_strided_slice %131 {offsets = [0, 32], sizes = [8, 32], strides = [1, 1]} : vector<8x128xbf16> to vector<8x32xbf16>
    %cst_49 = arith.constant dense<0.000000e+00> : vector<8x8xf32>
    %159 = tpu.matmul %157, %158, %cst_49 {dimension_numbers = #tpu.dot_dimension_numbers<[1], [1], [0], [0], [0, 0, 1, 0], [], []>} : vector<8x32xbf16>, vector<8x32xbf16>, vector<8x8xf32> -> vector<8x8xf32>
    %cst_50 = arith.constant 0.176776692 : f32
    %160 = vector.broadcast %cst_50 : f32 to vector<8x8xf32>
    %161 = arith.mulf %159, %160 : vector<8x8xf32>
    %cst_51 = arith.constant 0.000000e+00 : f32
    %162 = vector.broadcast %cst_51 : f32 to vector<8x8xf32>
    %163 = arith.cmpf oeq, %134, %162 : vector<8x8xf32>
    %cst_52 = arith.constant -1.000000e+04 : f32
    %164 = vector.broadcast %cst_52 : f32 to vector<8x8xf32>
    %165 = arith.select %163, %164, %161 : vector<8x8xi1>, vector<8x8xf32>
    %cst_53 = arith.constant dense<0xFF800000> : vector<8xf32>
    %166 = vector.multi_reduction <maximumf>, %165, %cst_53 [1] : vector<8x8xf32> to vector<8xf32>
    %167 = vector.shape_cast %166 : vector<8xf32> to vector<8x1xf32>
    %168 = vector.broadcast %167 : vector<8x1xf32> to vector<8x8xf32>
    %169 = arith.subf %165, %168 : vector<8x8xf32>
    %170 = math.exp %169 : vector<8x8xf32>
    %cst_54 = arith.constant dense<0.000000e+00> : vector<8xf32>
    %171 = vector.multi_reduction <add>, %170, %cst_54 [1] : vector<8x8xf32> to vector<8xf32>
    %172 = vector.shape_cast %171 : vector<8xf32> to vector<8x1xf32>
    %173 = tpu.reciprocal %172 {approx = true} : vector<8x1xf32> -> vector<8x1xf32>
    %174 = vector.broadcast %173 : vector<8x1xf32> to vector<8x8xf32>
    %175 = arith.mulf %170, %174 : vector<8x8xf32>
    %176 = arith.truncf %175 : vector<8x8xf32> to vector<8x8xbf16>
    %177 = vector.extract_strided_slice %133 {offsets = [0, 32], sizes = [8, 32], strides = [1, 1]} : vector<8x128xbf16> to vector<8x32xbf16>
    %cst_55 = arith.constant dense<0.000000e+00> : vector<8x32xf32>
    %178 = tpu.matmul %176, %177, %cst_55 {dimension_numbers = #tpu.dot_dimension_numbers<[1], [0], [0], [1], [0, 0, 1, 1], [], []>} : vector<8x8xbf16>, vector<8x32xbf16>, vector<8x32xf32> -> vector<8x32xf32>
    %179 = vector.extract_strided_slice %129 {offsets = [0, 64], sizes = [8, 32], strides = [1, 1]} : vector<8x128xbf16> to vector<8x32xbf16>
    %180 = vector.extract_strided_slice %131 {offsets = [0, 64], sizes = [8, 32], strides = [1, 1]} : vector<8x128xbf16> to vector<8x32xbf16>
    %cst_56 = arith.constant dense<0.000000e+00> : vector<8x8xf32>
    %181 = tpu.matmul %179, %180, %cst_56 {dimension_numbers = #tpu.dot_dimension_numbers<[1], [1], [0], [0], [0, 0, 1, 0], [], []>} : vector<8x32xbf16>, vector<8x32xbf16>, vector<8x8xf32> -> vector<8x8xf32>
    %cst_57 = arith.constant 0.176776692 : f32
    %182 = vector.broadcast %cst_57 : f32 to vector<8x8xf32>
    %183 = arith.mulf %181, %182 : vector<8x8xf32>
    %cst_58 = arith.constant 0.000000e+00 : f32
    %184 = vector.broadcast %cst_58 : f32 to vector<8x8xf32>
    %185 = arith.cmpf oeq, %134, %184 : vector<8x8xf32>
    %cst_59 = arith.constant -1.000000e+04 : f32
    %186 = vector.broadcast %cst_59 : f32 to vector<8x8xf32>
    %187 = arith.select %185, %186, %183 : vector<8x8xi1>, vector<8x8xf32>
    %cst_60 = arith.constant dense<0xFF800000> : vector<8xf32>
    %188 = vector.multi_reduction <maximumf>, %187, %cst_60 [1] : vector<8x8xf32> to vector<8xf32>
    %189 = vector.shape_cast %188 : vector<8xf32> to vector<8x1xf32>
    %190 = vector.broadcast %189 : vector<8x1xf32> to vector<8x8xf32>
    %191 = arith.subf %187, %190 : vector<8x8xf32>
    %192 = math.exp %191 : vector<8x8xf32>
    %cst_61 = arith.constant dense<0.000000e+00> : vector<8xf32>
    %193 = vector.multi_reduction <add>, %192, %cst_61 [1] : vector<8x8xf32> to vector<8xf32>
    %194 = vector.shape_cast %193 : vector<8xf32> to vector<8x1xf32>
    %195 = tpu.reciprocal %194 {approx = true} : vector<8x1xf32> -> vector<8x1xf32>
    %196 = vector.broadcast %195 : vector<8x1xf32> to vector<8x8xf32>
    %197 = arith.mulf %192, %196 : vector<8x8xf32>
    %198 = arith.truncf %197 : vector<8x8xf32> to vector<8x8xbf16>
    %199 = vector.extract_strided_slice %133 {offsets = [0, 64], sizes = [8, 32], strides = [1, 1]} : vector<8x128xbf16> to vector<8x32xbf16>
    %cst_62 = arith.constant dense<0.000000e+00> : vector<8x32xf32>
    %200 = tpu.matmul %198, %199, %cst_62 {dimension_numbers = #tpu.dot_dimension_numbers<[1], [0], [0], [1], [0, 0, 1, 1], [], []>} : vector<8x8xbf16>, vector<8x32xbf16>, vector<8x32xf32> -> vector<8x32xf32>
    %201 = vector.extract_strided_slice %129 {offsets = [0, 96], sizes = [8, 32], strides = [1, 1]} : vector<8x128xbf16> to vector<8x32xbf16>
    %202 = vector.extract_strided_slice %131 {offsets = [0, 96], sizes = [8, 32], strides = [1, 1]} : vector<8x128xbf16> to vector<8x32xbf16>
    %cst_63 = arith.constant dense<0.000000e+00> : vector<8x8xf32>
    %203 = tpu.matmul %201, %202, %cst_63 {dimension_numbers = #tpu.dot_dimension_numbers<[1], [1], [0], [0], [0, 0, 1, 0], [], []>} : vector<8x32xbf16>, vector<8x32xbf16>, vector<8x8xf32> -> vector<8x8xf32>
    %cst_64 = arith.constant 0.176776692 : f32
    %204 = vector.broadcast %cst_64 : f32 to vector<8x8xf32>
    %205 = arith.mulf %203, %204 : vector<8x8xf32>
    %cst_65 = arith.constant 0.000000e+00 : f32
    %206 = vector.broadcast %cst_65 : f32 to vector<8x8xf32>
    %207 = arith.cmpf oeq, %134, %206 : vector<8x8xf32>
    %cst_66 = arith.constant -1.000000e+04 : f32
    %208 = vector.broadcast %cst_66 : f32 to vector<8x8xf32>
    %209 = arith.select %207, %208, %205 : vector<8x8xi1>, vector<8x8xf32>
    %cst_67 = arith.constant dense<0xFF800000> : vector<8xf32>
    %210 = vector.multi_reduction <maximumf>, %209, %cst_67 [1] : vector<8x8xf32> to vector<8xf32>
    %211 = vector.shape_cast %210 : vector<8xf32> to vector<8x1xf32>
    %212 = vector.broadcast %211 : vector<8x1xf32> to vector<8x8xf32>
    %213 = arith.subf %209, %212 : vector<8x8xf32>
    %214 = math.exp %213 : vector<8x8xf32>
    %cst_68 = arith.constant dense<0.000000e+00> : vector<8xf32>
    %215 = vector.multi_reduction <add>, %214, %cst_68 [1] : vector<8x8xf32> to vector<8xf32>
    %216 = vector.shape_cast %215 : vector<8xf32> to vector<8x1xf32>
    %217 = tpu.reciprocal %216 {approx = true} : vector<8x1xf32> -> vector<8x1xf32>
    %218 = vector.broadcast %217 : vector<8x1xf32> to vector<8x8xf32>
    %219 = arith.mulf %214, %218 : vector<8x8xf32>
    %220 = arith.truncf %219 : vector<8x8xf32> to vector<8x8xbf16>
    %221 = vector.extract_strided_slice %133 {offsets = [0, 96], sizes = [8, 32], strides = [1, 1]} : vector<8x128xbf16> to vector<8x32xbf16>
    %cst_69 = arith.constant dense<0.000000e+00> : vector<8x32xf32>
    %222 = tpu.matmul %220, %221, %cst_69 {dimension_numbers = #tpu.dot_dimension_numbers<[1], [0], [0], [1], [0, 0, 1, 1], [], []>} : vector<8x8xbf16>, vector<8x32xbf16>, vector<8x32xf32> -> vector<8x32xf32>
    %223 = tpu.concatenate %156, %178, %200, %222 in 1 : vector<8x32xf32>, vector<8x32xf32>, vector<8x32xf32>, vector<8x32xf32> -> vector<8x128xf32>
    %224 = tpu.concatenate %127, %223 in 0 : vector<8x128xf32>, vector<8x128xf32> -> vector<16x128xf32>
    %225 = arith.truncf %224 : vector<16x128xf32> to vector<16x128xbf16>
    %c0_70 = arith.constant 0 : index
    %c0_71 = arith.constant 0 : index
    %c0_72 = arith.constant 0 : index
    %226 = vector.load %arg6[%c0_70, %c0_71, %c0_72] : memref<1x128x128xbf16, #tpu.memory_space<vmem>>, vector<1x128x128xbf16>
    %227 = vector.shape_cast %226 : vector<1x128x128xbf16> to vector<128x128xbf16>
    %cst_73 = arith.constant dense<0.000000e+00> : vector<16x128xf32>
    %228 = tpu.matmul %225, %227, %cst_73 {dimension_numbers = #tpu.dot_dimension_numbers<[1], [0], [0], [1], [0, 0, 1, 1], [], []>} : vector<16x128xbf16>, vector<128x128xbf16>, vector<16x128xf32> -> vector<16x128xf32>
    %229 = vector.broadcast %13 : vector<1x128xf32> to vector<16x128xf32>
    %230 = arith.addf %228, %229 : vector<16x128xf32>
    %231 = arith.addf %230, %3 : vector<16x128xf32>
    %cst_74 = arith.constant dense<0.000000e+00> : vector<16xf32>
    %232 = vector.multi_reduction <add>, %231, %cst_74 [1] : vector<16x128xf32> to vector<16xf32>
    %233 = vector.shape_cast %232 : vector<16xf32> to vector<16x1xf32>
    %cst_75 = arith.constant 1.280000e+02 : f32
    %234 = vector.broadcast %cst_75 : f32 to vector<16x1xf32>
    %235 = arith.divf %233, %234 : vector<16x1xf32>
    %236 = vector.broadcast %235 : vector<16x1xf32> to vector<16x128xf32>
    %237 = arith.subf %231, %236 : vector<16x128xf32>
    %238 = arith.mulf %237, %237 : vector<16x128xf32>
    %cst_76 = arith.constant dense<0.000000e+00> : vector<16xf32>
    %239 = vector.multi_reduction <add>, %238, %cst_76 [1] : vector<16x128xf32> to vector<16xf32>
    %240 = vector.shape_cast %239 : vector<16xf32> to vector<16x1xf32>
    %cst_77 = arith.constant 0.00787401571 : f32
    %241 = vector.broadcast %cst_77 : f32 to vector<16x1xf32>
    %242 = arith.mulf %240, %241 : vector<16x1xf32>
    %243 = math.sqrt %242 : vector<16x1xf32>
    %244 = vector.broadcast %17 : vector<1x128xf32> to vector<16x128xf32>
    %245 = arith.mulf %244, %237 : vector<16x128xf32>
    %cst_78 = arith.constant 9.99999997E-7 : f32
    %246 = vector.broadcast %cst_78 : f32 to vector<16x1xf32>
    %247 = arith.addf %243, %246 : vector<16x1xf32>
    %248 = vector.broadcast %247 : vector<16x1xf32> to vector<16x128xf32>
    %249 = arith.divf %245, %248 : vector<16x128xf32>
    %250 = vector.broadcast %18 : vector<1x128xf32> to vector<16x128xf32>
    %251 = arith.addf %249, %250 : vector<16x128xf32>
    %252 = arith.truncf %251 : vector<16x128xf32> to vector<16x128xbf16>
    %c0_79 = arith.constant 0 : index
    %c0_80 = arith.constant 0 : index
    %c0_81 = arith.constant 0 : index
    %253 = vector.load %arg7[%c0_79, %c0_80, %c0_81] : memref<1x128x128xbf16, #tpu.memory_space<vmem>>, vector<1x128x128xbf16>
    %254 = vector.shape_cast %253 : vector<1x128x128xbf16> to vector<128x128xbf16>
    %cst_82 = arith.constant dense<0.000000e+00> : vector<16x128xf32>
    %255 = tpu.matmul %252, %254, %cst_82 {dimension_numbers = #tpu.dot_dimension_numbers<[1], [0], [0], [1], [0, 0, 1, 1], [], []>} : vector<16x128xbf16>, vector<128x128xbf16>, vector<16x128xf32> -> vector<16x128xf32>
    %256 = vector.broadcast %14 : vector<1x128xf32> to vector<16x128xf32>
    %257 = arith.addf %255, %256 : vector<16x128xf32>
    %c0_83 = arith.constant 0 : index
    %c0_84 = arith.constant 0 : index
    %c0_85 = arith.constant 0 : index
    %258 = vector.load %arg8[%c0_83, %c0_84, %c0_85] : memref<1x128x256xbf16, #tpu.memory_space<vmem>>, vector<1x128x256xbf16>
    %259 = vector.shape_cast %258 : vector<1x128x256xbf16> to vector<128x256xbf16>
    %cst_86 = arith.constant dense<0.000000e+00> : vector<16x256xf32>
    %260 = tpu.matmul %5, %259, %cst_86 {dimension_numbers = #tpu.dot_dimension_numbers<[1], [0], [0], [1], [0, 0, 1, 1], [], []>} : vector<16x128xbf16>, vector<128x256xbf16>, vector<16x256xf32> -> vector<16x256xf32>
    %261 = vector.broadcast %11 : vector<1x256xf32> to vector<16x256xf32>
    %262 = arith.addf %260, %261 : vector<16x256xf32>
    %263 = vector.extract_strided_slice %262 {offsets = [0, 0], sizes = [16, 128], strides = [1, 1]} : vector<16x256xf32> to vector<16x128xf32>
    %264 = vector.extract_strided_slice %262 {offsets = [0, 128], sizes = [16, 128], strides = [1, 1]} : vector<16x256xf32> to vector<16x128xf32>
    %265 = vector.extract_strided_slice %257 {offsets = [0, 0], sizes = [8, 128], strides = [1, 1]} : vector<16x128xf32> to vector<8x128xf32>
    %266 = arith.truncf %265 : vector<8x128xf32> to vector<8x128xbf16>
    %267 = vector.extract_strided_slice %263 {offsets = [0, 0], sizes = [8, 128], strides = [1, 1]} : vector<16x128xf32> to vector<8x128xf32>
    %268 = arith.truncf %267 : vector<8x128xf32> to vector<8x128xbf16>
    %269 = vector.extract_strided_slice %264 {offsets = [0, 0], sizes = [8, 128], strides = [1, 1]} : vector<16x128xf32> to vector<8x128xf32>
    %270 = arith.truncf %269 : vector<8x128xf32> to vector<8x128xbf16>
    %271 = vector.extract_strided_slice %7 {offsets = [0, 0], sizes = [8, 8], strides = [1, 1]} : vector<16x8xf32> to vector<8x8xf32>
    %272 = vector.extract_strided_slice %266 {offsets = [0, 0], sizes = [8, 32], strides = [1, 1]} : vector<8x128xbf16> to vector<8x32xbf16>
    %273 = vector.extract_strided_slice %268 {offsets = [0, 0], sizes = [8, 32], strides = [1, 1]} : vector<8x128xbf16> to vector<8x32xbf16>
    %cst_87 = arith.constant dense<0.000000e+00> : vector<8x8xf32>
    %274 = tpu.matmul %272, %273, %cst_87 {dimension_numbers = #tpu.dot_dimension_numbers<[1], [1], [0], [0], [0, 0, 1, 0], [], []>} : vector<8x32xbf16>, vector<8x32xbf16>, vector<8x8xf32> -> vector<8x8xf32>
    %cst_88 = arith.constant 0.176776692 : f32
    %275 = vector.broadcast %cst_88 : f32 to vector<8x8xf32>
    %276 = arith.mulf %274, %275 : vector<8x8xf32>
    %cst_89 = arith.constant 0.000000e+00 : f32
    %277 = vector.broadcast %cst_89 : f32 to vector<8x8xf32>
    %278 = arith.cmpf oeq, %271, %277 : vector<8x8xf32>
    %cst_90 = arith.constant -1.000000e+04 : f32
    %279 = vector.broadcast %cst_90 : f32 to vector<8x8xf32>
    %280 = arith.select %278, %279, %276 : vector<8x8xi1>, vector<8x8xf32>
    %cst_91 = arith.constant dense<0xFF800000> : vector<8xf32>
    %281 = vector.multi_reduction <maximumf>, %280, %cst_91 [1] : vector<8x8xf32> to vector<8xf32>
    %282 = vector.shape_cast %281 : vector<8xf32> to vector<8x1xf32>
    %283 = vector.broadcast %282 : vector<8x1xf32> to vector<8x8xf32>
    %284 = arith.subf %280, %283 : vector<8x8xf32>
    %285 = math.exp %284 : vector<8x8xf32>
    %cst_92 = arith.constant dense<0.000000e+00> : vector<8xf32>
    %286 = vector.multi_reduction <add>, %285, %cst_92 [1] : vector<8x8xf32> to vector<8xf32>
    %287 = vector.shape_cast %286 : vector<8xf32> to vector<8x1xf32>
    %288 = tpu.reciprocal %287 {approx = true} : vector<8x1xf32> -> vector<8x1xf32>
    %289 = vector.broadcast %288 : vector<8x1xf32> to vector<8x8xf32>
    %290 = arith.mulf %285, %289 : vector<8x8xf32>
    %291 = arith.truncf %290 : vector<8x8xf32> to vector<8x8xbf16>
    %292 = vector.extract_strided_slice %270 {offsets = [0, 0], sizes = [8, 32], strides = [1, 1]} : vector<8x128xbf16> to vector<8x32xbf16>
    %cst_93 = arith.constant dense<0.000000e+00> : vector<8x32xf32>
    %293 = tpu.matmul %291, %292, %cst_93 {dimension_numbers = #tpu.dot_dimension_numbers<[1], [0], [0], [1], [0, 0, 1, 1], [], []>} : vector<8x8xbf16>, vector<8x32xbf16>, vector<8x32xf32> -> vector<8x32xf32>
    %294 = vector.extract_strided_slice %266 {offsets = [0, 32], sizes = [8, 32], strides = [1, 1]} : vector<8x128xbf16> to vector<8x32xbf16>
    %295 = vector.extract_strided_slice %268 {offsets = [0, 32], sizes = [8, 32], strides = [1, 1]} : vector<8x128xbf16> to vector<8x32xbf16>
    %cst_94 = arith.constant dense<0.000000e+00> : vector<8x8xf32>
    %296 = tpu.matmul %294, %295, %cst_94 {dimension_numbers = #tpu.dot_dimension_numbers<[1], [1], [0], [0], [0, 0, 1, 0], [], []>} : vector<8x32xbf16>, vector<8x32xbf16>, vector<8x8xf32> -> vector<8x8xf32>
    %cst_95 = arith.constant 0.176776692 : f32
    %297 = vector.broadcast %cst_95 : f32 to vector<8x8xf32>
    %298 = arith.mulf %296, %297 : vector<8x8xf32>
    %cst_96 = arith.constant 0.000000e+00 : f32
    %299 = vector.broadcast %cst_96 : f32 to vector<8x8xf32>
    %300 = arith.cmpf oeq, %271, %299 : vector<8x8xf32>
    %cst_97 = arith.constant -1.000000e+04 : f32
    %301 = vector.broadcast %cst_97 : f32 to vector<8x8xf32>
    %302 = arith.select %300, %301, %298 : vector<8x8xi1>, vector<8x8xf32>
    %cst_98 = arith.constant dense<0xFF800000> : vector<8xf32>
    %303 = vector.multi_reduction <maximumf>, %302, %cst_98 [1] : vector<8x8xf32> to vector<8xf32>
    %304 = vector.shape_cast %303 : vector<8xf32> to vector<8x1xf32>
    %305 = vector.broadcast %304 : vector<8x1xf32> to vector<8x8xf32>
    %306 = arith.subf %302, %305 : vector<8x8xf32>
    %307 = math.exp %306 : vector<8x8xf32>
    %cst_99 = arith.constant dense<0.000000e+00> : vector<8xf32>
    %308 = vector.multi_reduction <add>, %307, %cst_99 [1] : vector<8x8xf32> to vector<8xf32>
    %309 = vector.shape_cast %308 : vector<8xf32> to vector<8x1xf32>
    %310 = tpu.reciprocal %309 {approx = true} : vector<8x1xf32> -> vector<8x1xf32>
    %311 = vector.broadcast %310 : vector<8x1xf32> to vector<8x8xf32>
    %312 = arith.mulf %307, %311 : vector<8x8xf32>
    %313 = arith.truncf %312 : vector<8x8xf32> to vector<8x8xbf16>
    %314 = vector.extract_strided_slice %270 {offsets = [0, 32], sizes = [8, 32], strides = [1, 1]} : vector<8x128xbf16> to vector<8x32xbf16>
    %cst_100 = arith.constant dense<0.000000e+00> : vector<8x32xf32>
    %315 = tpu.matmul %313, %314, %cst_100 {dimension_numbers = #tpu.dot_dimension_numbers<[1], [0], [0], [1], [0, 0, 1, 1], [], []>} : vector<8x8xbf16>, vector<8x32xbf16>, vector<8x32xf32> -> vector<8x32xf32>
    %316 = vector.extract_strided_slice %266 {offsets = [0, 64], sizes = [8, 32], strides = [1, 1]} : vector<8x128xbf16> to vector<8x32xbf16>
    %317 = vector.extract_strided_slice %268 {offsets = [0, 64], sizes = [8, 32], strides = [1, 1]} : vector<8x128xbf16> to vector<8x32xbf16>
    %cst_101 = arith.constant dense<0.000000e+00> : vector<8x8xf32>
    %318 = tpu.matmul %316, %317, %cst_101 {dimension_numbers = #tpu.dot_dimension_numbers<[1], [1], [0], [0], [0, 0, 1, 0], [], []>} : vector<8x32xbf16>, vector<8x32xbf16>, vector<8x8xf32> -> vector<8x8xf32>
    %cst_102 = arith.constant 0.176776692 : f32
    %319 = vector.broadcast %cst_102 : f32 to vector<8x8xf32>
    %320 = arith.mulf %318, %319 : vector<8x8xf32>
    %cst_103 = arith.constant 0.000000e+00 : f32
    %321 = vector.broadcast %cst_103 : f32 to vector<8x8xf32>
    %322 = arith.cmpf oeq, %271, %321 : vector<8x8xf32>
    %cst_104 = arith.constant -1.000000e+04 : f32
    %323 = vector.broadcast %cst_104 : f32 to vector<8x8xf32>
    %324 = arith.select %322, %323, %320 : vector<8x8xi1>, vector<8x8xf32>
    %cst_105 = arith.constant dense<0xFF800000> : vector<8xf32>
    %325 = vector.multi_reduction <maximumf>, %324, %cst_105 [1] : vector<8x8xf32> to vector<8xf32>
    %326 = vector.shape_cast %325 : vector<8xf32> to vector<8x1xf32>
    %327 = vector.broadcast %326 : vector<8x1xf32> to vector<8x8xf32>
    %328 = arith.subf %324, %327 : vector<8x8xf32>
    %329 = math.exp %328 : vector<8x8xf32>
    %cst_106 = arith.constant dense<0.000000e+00> : vector<8xf32>
    %330 = vector.multi_reduction <add>, %329, %cst_106 [1] : vector<8x8xf32> to vector<8xf32>
    %331 = vector.shape_cast %330 : vector<8xf32> to vector<8x1xf32>
    %332 = tpu.reciprocal %331 {approx = true} : vector<8x1xf32> -> vector<8x1xf32>
    %333 = vector.broadcast %332 : vector<8x1xf32> to vector<8x8xf32>
    %334 = arith.mulf %329, %333 : vector<8x8xf32>
    %335 = arith.truncf %334 : vector<8x8xf32> to vector<8x8xbf16>
    %336 = vector.extract_strided_slice %270 {offsets = [0, 64], sizes = [8, 32], strides = [1, 1]} : vector<8x128xbf16> to vector<8x32xbf16>
    %cst_107 = arith.constant dense<0.000000e+00> : vector<8x32xf32>
    %337 = tpu.matmul %335, %336, %cst_107 {dimension_numbers = #tpu.dot_dimension_numbers<[1], [0], [0], [1], [0, 0, 1, 1], [], []>} : vector<8x8xbf16>, vector<8x32xbf16>, vector<8x32xf32> -> vector<8x32xf32>
    %338 = vector.extract_strided_slice %266 {offsets = [0, 96], sizes = [8, 32], strides = [1, 1]} : vector<8x128xbf16> to vector<8x32xbf16>
    %339 = vector.extract_strided_slice %268 {offsets = [0, 96], sizes = [8, 32], strides = [1, 1]} : vector<8x128xbf16> to vector<8x32xbf16>
    %cst_108 = arith.constant dense<0.000000e+00> : vector<8x8xf32>
    %340 = tpu.matmul %338, %339, %cst_108 {dimension_numbers = #tpu.dot_dimension_numbers<[1], [1], [0], [0], [0, 0, 1, 0], [], []>} : vector<8x32xbf16>, vector<8x32xbf16>, vector<8x8xf32> -> vector<8x8xf32>
    %cst_109 = arith.constant 0.176776692 : f32
    %341 = vector.broadcast %cst_109 : f32 to vector<8x8xf32>
    %342 = arith.mulf %340, %341 : vector<8x8xf32>
    %cst_110 = arith.constant 0.000000e+00 : f32
    %343 = vector.broadcast %cst_110 : f32 to vector<8x8xf32>
    %344 = arith.cmpf oeq, %271, %343 : vector<8x8xf32>
    %cst_111 = arith.constant -1.000000e+04 : f32
    %345 = vector.broadcast %cst_111 : f32 to vector<8x8xf32>
    %346 = arith.select %344, %345, %342 : vector<8x8xi1>, vector<8x8xf32>
    %cst_112 = arith.constant dense<0xFF800000> : vector<8xf32>
    %347 = vector.multi_reduction <maximumf>, %346, %cst_112 [1] : vector<8x8xf32> to vector<8xf32>
    %348 = vector.shape_cast %347 : vector<8xf32> to vector<8x1xf32>
    %349 = vector.broadcast %348 : vector<8x1xf32> to vector<8x8xf32>
    %350 = arith.subf %346, %349 : vector<8x8xf32>
    %351 = math.exp %350 : vector<8x8xf32>
    %cst_113 = arith.constant dense<0.000000e+00> : vector<8xf32>
    %352 = vector.multi_reduction <add>, %351, %cst_113 [1] : vector<8x8xf32> to vector<8xf32>
    %353 = vector.shape_cast %352 : vector<8xf32> to vector<8x1xf32>
    %354 = tpu.reciprocal %353 {approx = true} : vector<8x1xf32> -> vector<8x1xf32>
    %355 = vector.broadcast %354 : vector<8x1xf32> to vector<8x8xf32>
    %356 = arith.mulf %351, %355 : vector<8x8xf32>
    %357 = arith.truncf %356 : vector<8x8xf32> to vector<8x8xbf16>
    %358 = vector.extract_strided_slice %270 {offsets = [0, 96], sizes = [8, 32], strides = [1, 1]} : vector<8x128xbf16> to vector<8x32xbf16>
    %cst_114 = arith.constant dense<0.000000e+00> : vector<8x32xf32>
    %359 = tpu.matmul %357, %358, %cst_114 {dimension_numbers = #tpu.dot_dimension_numbers<[1], [0], [0], [1], [0, 0, 1, 1], [], []>} : vector<8x8xbf16>, vector<8x32xbf16>, vector<8x32xf32> -> vector<8x32xf32>
    %360 = tpu.concatenate %293, %315, %337, %359 in 1 : vector<8x32xf32>, vector<8x32xf32>, vector<8x32xf32>, vector<8x32xf32> -> vector<8x128xf32>
    %361 = vector.extract_strided_slice %257 {offsets = [8, 0], sizes = [8, 128], strides = [1, 1]} : vector<16x128xf32> to vector<8x128xf32>
    %362 = arith.truncf %361 : vector<8x128xf32> to vector<8x128xbf16>
    %363 = vector.extract_strided_slice %263 {offsets = [8, 0], sizes = [8, 128], strides = [1, 1]} : vector<16x128xf32> to vector<8x128xf32>
    %364 = arith.truncf %363 : vector<8x128xf32> to vector<8x128xbf16>
    %365 = vector.extract_strided_slice %264 {offsets = [8, 0], sizes = [8, 128], strides = [1, 1]} : vector<16x128xf32> to vector<8x128xf32>
    %366 = arith.truncf %365 : vector<8x128xf32> to vector<8x128xbf16>
    %367 = vector.extract_strided_slice %7 {offsets = [8, 0], sizes = [8, 8], strides = [1, 1]} : vector<16x8xf32> to vector<8x8xf32>
    %368 = vector.extract_strided_slice %362 {offsets = [0, 0], sizes = [8, 32], strides = [1, 1]} : vector<8x128xbf16> to vector<8x32xbf16>
    %369 = vector.extract_strided_slice %364 {offsets = [0, 0], sizes = [8, 32], strides = [1, 1]} : vector<8x128xbf16> to vector<8x32xbf16>
    %cst_115 = arith.constant dense<0.000000e+00> : vector<8x8xf32>
    %370 = tpu.matmul %368, %369, %cst_115 {dimension_numbers = #tpu.dot_dimension_numbers<[1], [1], [0], [0], [0, 0, 1, 0], [], []>} : vector<8x32xbf16>, vector<8x32xbf16>, vector<8x8xf32> -> vector<8x8xf32>
    %cst_116 = arith.constant 0.176776692 : f32
    %371 = vector.broadcast %cst_116 : f32 to vector<8x8xf32>
    %372 = arith.mulf %370, %371 : vector<8x8xf32>
    %cst_117 = arith.constant 0.000000e+00 : f32
    %373 = vector.broadcast %cst_117 : f32 to vector<8x8xf32>
    %374 = arith.cmpf oeq, %367, %373 : vector<8x8xf32>
    %cst_118 = arith.constant -1.000000e+04 : f32
    %375 = vector.broadcast %cst_118 : f32 to vector<8x8xf32>
    %376 = arith.select %374, %375, %372 : vector<8x8xi1>, vector<8x8xf32>
    %cst_119 = arith.constant dense<0xFF800000> : vector<8xf32>
    %377 = vector.multi_reduction <maximumf>, %376, %cst_119 [1] : vector<8x8xf32> to vector<8xf32>
    %378 = vector.shape_cast %377 : vector<8xf32> to vector<8x1xf32>
    %379 = vector.broadcast %378 : vector<8x1xf32> to vector<8x8xf32>
    %380 = arith.subf %376, %379 : vector<8x8xf32>
    %381 = math.exp %380 : vector<8x8xf32>
    %cst_120 = arith.constant dense<0.000000e+00> : vector<8xf32>
    %382 = vector.multi_reduction <add>, %381, %cst_120 [1] : vector<8x8xf32> to vector<8xf32>
    %383 = vector.shape_cast %382 : vector<8xf32> to vector<8x1xf32>
    %384 = tpu.reciprocal %383 {approx = true} : vector<8x1xf32> -> vector<8x1xf32>
    %385 = vector.broadcast %384 : vector<8x1xf32> to vector<8x8xf32>
    %386 = arith.mulf %381, %385 : vector<8x8xf32>
    %387 = arith.truncf %386 : vector<8x8xf32> to vector<8x8xbf16>
    %388 = vector.extract_strided_slice %366 {offsets = [0, 0], sizes = [8, 32], strides = [1, 1]} : vector<8x128xbf16> to vector<8x32xbf16>
    %cst_121 = arith.constant dense<0.000000e+00> : vector<8x32xf32>
    %389 = tpu.matmul %387, %388, %cst_121 {dimension_numbers = #tpu.dot_dimension_numbers<[1], [0], [0], [1], [0, 0, 1, 1], [], []>} : vector<8x8xbf16>, vector<8x32xbf16>, vector<8x32xf32> -> vector<8x32xf32>
    %390 = vector.extract_strided_slice %362 {offsets = [0, 32], sizes = [8, 32], strides = [1, 1]} : vector<8x128xbf16> to vector<8x32xbf16>
    %391 = vector.extract_strided_slice %364 {offsets = [0, 32], sizes = [8, 32], strides = [1, 1]} : vector<8x128xbf16> to vector<8x32xbf16>
    %cst_122 = arith.constant dense<0.000000e+00> : vector<8x8xf32>
    %392 = tpu.matmul %390, %391, %cst_122 {dimension_numbers = #tpu.dot_dimension_numbers<[1], [1], [0], [0], [0, 0, 1, 0], [], []>} : vector<8x32xbf16>, vector<8x32xbf16>, vector<8x8xf32> -> vector<8x8xf32>
    %cst_123 = arith.constant 0.176776692 : f32
    %393 = vector.broadcast %cst_123 : f32 to vector<8x8xf32>
    %394 = arith.mulf %392, %393 : vector<8x8xf32>
    %cst_124 = arith.constant 0.000000e+00 : f32
    %395 = vector.broadcast %cst_124 : f32 to vector<8x8xf32>
    %396 = arith.cmpf oeq, %367, %395 : vector<8x8xf32>
    %cst_125 = arith.constant -1.000000e+04 : f32
    %397 = vector.broadcast %cst_125 : f32 to vector<8x8xf32>
    %398 = arith.select %396, %397, %394 : vector<8x8xi1>, vector<8x8xf32>
    %cst_126 = arith.constant dense<0xFF800000> : vector<8xf32>
    %399 = vector.multi_reduction <maximumf>, %398, %cst_126 [1] : vector<8x8xf32> to vector<8xf32>
    %400 = vector.shape_cast %399 : vector<8xf32> to vector<8x1xf32>
    %401 = vector.broadcast %400 : vector<8x1xf32> to vector<8x8xf32>
    %402 = arith.subf %398, %401 : vector<8x8xf32>
    %403 = math.exp %402 : vector<8x8xf32>
    %cst_127 = arith.constant dense<0.000000e+00> : vector<8xf32>
    %404 = vector.multi_reduction <add>, %403, %cst_127 [1] : vector<8x8xf32> to vector<8xf32>
    %405 = vector.shape_cast %404 : vector<8xf32> to vector<8x1xf32>
    %406 = tpu.reciprocal %405 {approx = true} : vector<8x1xf32> -> vector<8x1xf32>
    %407 = vector.broadcast %406 : vector<8x1xf32> to vector<8x8xf32>
    %408 = arith.mulf %403, %407 : vector<8x8xf32>
    %409 = arith.truncf %408 : vector<8x8xf32> to vector<8x8xbf16>
    %410 = vector.extract_strided_slice %366 {offsets = [0, 32], sizes = [8, 32], strides = [1, 1]} : vector<8x128xbf16> to vector<8x32xbf16>
    %cst_128 = arith.constant dense<0.000000e+00> : vector<8x32xf32>
    %411 = tpu.matmul %409, %410, %cst_128 {dimension_numbers = #tpu.dot_dimension_numbers<[1], [0], [0], [1], [0, 0, 1, 1], [], []>} : vector<8x8xbf16>, vector<8x32xbf16>, vector<8x32xf32> -> vector<8x32xf32>
    %412 = vector.extract_strided_slice %362 {offsets = [0, 64], sizes = [8, 32], strides = [1, 1]} : vector<8x128xbf16> to vector<8x32xbf16>
    %413 = vector.extract_strided_slice %364 {offsets = [0, 64], sizes = [8, 32], strides = [1, 1]} : vector<8x128xbf16> to vector<8x32xbf16>
    %cst_129 = arith.constant dense<0.000000e+00> : vector<8x8xf32>
    %414 = tpu.matmul %412, %413, %cst_129 {dimension_numbers = #tpu.dot_dimension_numbers<[1], [1], [0], [0], [0, 0, 1, 0], [], []>} : vector<8x32xbf16>, vector<8x32xbf16>, vector<8x8xf32> -> vector<8x8xf32>
    %cst_130 = arith.constant 0.176776692 : f32
    %415 = vector.broadcast %cst_130 : f32 to vector<8x8xf32>
    %416 = arith.mulf %414, %415 : vector<8x8xf32>
    %cst_131 = arith.constant 0.000000e+00 : f32
    %417 = vector.broadcast %cst_131 : f32 to vector<8x8xf32>
    %418 = arith.cmpf oeq, %367, %417 : vector<8x8xf32>
    %cst_132 = arith.constant -1.000000e+04 : f32
    %419 = vector.broadcast %cst_132 : f32 to vector<8x8xf32>
    %420 = arith.select %418, %419, %416 : vector<8x8xi1>, vector<8x8xf32>
    %cst_133 = arith.constant dense<0xFF800000> : vector<8xf32>
    %421 = vector.multi_reduction <maximumf>, %420, %cst_133 [1] : vector<8x8xf32> to vector<8xf32>
    %422 = vector.shape_cast %421 : vector<8xf32> to vector<8x1xf32>
    %423 = vector.broadcast %422 : vector<8x1xf32> to vector<8x8xf32>
    %424 = arith.subf %420, %423 : vector<8x8xf32>
    %425 = math.exp %424 : vector<8x8xf32>
    %cst_134 = arith.constant dense<0.000000e+00> : vector<8xf32>
    %426 = vector.multi_reduction <add>, %425, %cst_134 [1] : vector<8x8xf32> to vector<8xf32>
    %427 = vector.shape_cast %426 : vector<8xf32> to vector<8x1xf32>
    %428 = tpu.reciprocal %427 {approx = true} : vector<8x1xf32> -> vector<8x1xf32>
    %429 = vector.broadcast %428 : vector<8x1xf32> to vector<8x8xf32>
    %430 = arith.mulf %425, %429 : vector<8x8xf32>
    %431 = arith.truncf %430 : vector<8x8xf32> to vector<8x8xbf16>
    %432 = vector.extract_strided_slice %366 {offsets = [0, 64], sizes = [8, 32], strides = [1, 1]} : vector<8x128xbf16> to vector<8x32xbf16>
    %cst_135 = arith.constant dense<0.000000e+00> : vector<8x32xf32>
    %433 = tpu.matmul %431, %432, %cst_135 {dimension_numbers = #tpu.dot_dimension_numbers<[1], [0], [0], [1], [0, 0, 1, 1], [], []>} : vector<8x8xbf16>, vector<8x32xbf16>, vector<8x32xf32> -> vector<8x32xf32>
    %434 = vector.extract_strided_slice %362 {offsets = [0, 96], sizes = [8, 32], strides = [1, 1]} : vector<8x128xbf16> to vector<8x32xbf16>
    %435 = vector.extract_strided_slice %364 {offsets = [0, 96], sizes = [8, 32], strides = [1, 1]} : vector<8x128xbf16> to vector<8x32xbf16>
    %cst_136 = arith.constant dense<0.000000e+00> : vector<8x8xf32>
    %436 = tpu.matmul %434, %435, %cst_136 {dimension_numbers = #tpu.dot_dimension_numbers<[1], [1], [0], [0], [0, 0, 1, 0], [], []>} : vector<8x32xbf16>, vector<8x32xbf16>, vector<8x8xf32> -> vector<8x8xf32>
    %cst_137 = arith.constant 0.176776692 : f32
    %437 = vector.broadcast %cst_137 : f32 to vector<8x8xf32>
    %438 = arith.mulf %436, %437 : vector<8x8xf32>
    %cst_138 = arith.constant 0.000000e+00 : f32
    %439 = vector.broadcast %cst_138 : f32 to vector<8x8xf32>
    %440 = arith.cmpf oeq, %367, %439 : vector<8x8xf32>
    %cst_139 = arith.constant -1.000000e+04 : f32
    %441 = vector.broadcast %cst_139 : f32 to vector<8x8xf32>
    %442 = arith.select %440, %441, %438 : vector<8x8xi1>, vector<8x8xf32>
    %cst_140 = arith.constant dense<0xFF800000> : vector<8xf32>
    %443 = vector.multi_reduction <maximumf>, %442, %cst_140 [1] : vector<8x8xf32> to vector<8xf32>
    %444 = vector.shape_cast %443 : vector<8xf32> to vector<8x1xf32>
    %445 = vector.broadcast %444 : vector<8x1xf32> to vector<8x8xf32>
    %446 = arith.subf %442, %445 : vector<8x8xf32>
    %447 = math.exp %446 : vector<8x8xf32>
    %cst_141 = arith.constant dense<0.000000e+00> : vector<8xf32>
    %448 = vector.multi_reduction <add>, %447, %cst_141 [1] : vector<8x8xf32> to vector<8xf32>
    %449 = vector.shape_cast %448 : vector<8xf32> to vector<8x1xf32>
    %450 = tpu.reciprocal %449 {approx = true} : vector<8x1xf32> -> vector<8x1xf32>
    %451 = vector.broadcast %450 : vector<8x1xf32> to vector<8x8xf32>
    %452 = arith.mulf %447, %451 : vector<8x8xf32>
    %453 = arith.truncf %452 : vector<8x8xf32> to vector<8x8xbf16>
    %454 = vector.extract_strided_slice %366 {offsets = [0, 96], sizes = [8, 32], strides = [1, 1]} : vector<8x128xbf16> to vector<8x32xbf16>
    %cst_142 = arith.constant dense<0.000000e+00> : vector<8x32xf32>
    %455 = tpu.matmul %453, %454, %cst_142 {dimension_numbers = #tpu.dot_dimension_numbers<[1], [0], [0], [1], [0, 0, 1, 1], [], []>} : vector<8x8xbf16>, vector<8x32xbf16>, vector<8x32xf32> -> vector<8x32xf32>
    %456 = tpu.concatenate %389, %411, %433, %455 in 1 : vector<8x32xf32>, vector<8x32xf32>, vector<8x32xf32>, vector<8x32xf32> -> vector<8x128xf32>
    %457 = tpu.concatenate %360, %456 in 0 : vector<8x128xf32>, vector<8x128xf32> -> vector<16x128xf32>
    %458 = arith.truncf %457 : vector<16x128xf32> to vector<16x128xbf16>
    %c0_143 = arith.constant 0 : index
    %c0_144 = arith.constant 0 : index
    %c0_145 = arith.constant 0 : index
    %459 = vector.load %arg9[%c0_143, %c0_144, %c0_145] : memref<1x128x128xbf16, #tpu.memory_space<vmem>>, vector<1x128x128xbf16>
    %460 = vector.shape_cast %459 : vector<1x128x128xbf16> to vector<128x128xbf16>
    %cst_146 = arith.constant dense<0.000000e+00> : vector<16x128xf32>
    %461 = tpu.matmul %458, %460, %cst_146 {dimension_numbers = #tpu.dot_dimension_numbers<[1], [0], [0], [1], [0, 0, 1, 1], [], []>} : vector<16x128xbf16>, vector<128x128xbf16>, vector<16x128xf32> -> vector<16x128xf32>
    %462 = vector.broadcast %15 : vector<1x128xf32> to vector<16x128xf32>
    %463 = arith.addf %461, %462 : vector<16x128xf32>
    %464 = arith.addf %463, %251 : vector<16x128xf32>
    %cst_147 = arith.constant dense<0.000000e+00> : vector<16xf32>
    %465 = vector.multi_reduction <add>, %464, %cst_147 [1] : vector<16x128xf32> to vector<16xf32>
    %466 = vector.shape_cast %465 : vector<16xf32> to vector<16x1xf32>
    %cst_148 = arith.constant 1.280000e+02 : f32
    %467 = vector.broadcast %cst_148 : f32 to vector<16x1xf32>
    %468 = arith.divf %466, %467 : vector<16x1xf32>
    %469 = vector.broadcast %468 : vector<16x1xf32> to vector<16x128xf32>
    %470 = arith.subf %464, %469 : vector<16x128xf32>
    %471 = arith.mulf %470, %470 : vector<16x128xf32>
    %cst_149 = arith.constant dense<0.000000e+00> : vector<16xf32>
    %472 = vector.multi_reduction <add>, %471, %cst_149 [1] : vector<16x128xf32> to vector<16xf32>
    %473 = vector.shape_cast %472 : vector<16xf32> to vector<16x1xf32>
    %cst_150 = arith.constant 0.00787401571 : f32
    %474 = vector.broadcast %cst_150 : f32 to vector<16x1xf32>
    %475 = arith.mulf %473, %474 : vector<16x1xf32>
    %476 = math.sqrt %475 : vector<16x1xf32>
    %477 = vector.broadcast %19 : vector<1x128xf32> to vector<16x128xf32>
    %478 = arith.mulf %477, %470 : vector<16x128xf32>
    %cst_151 = arith.constant 9.99999997E-7 : f32
    %479 = vector.broadcast %cst_151 : f32 to vector<16x1xf32>
    %480 = arith.addf %476, %479 : vector<16x1xf32>
    %481 = vector.broadcast %480 : vector<16x1xf32> to vector<16x128xf32>
    %482 = arith.divf %478, %481 : vector<16x128xf32>
    %483 = vector.broadcast %20 : vector<1x128xf32> to vector<16x128xf32>
    %484 = arith.addf %482, %483 : vector<16x128xf32>
    %485 = arith.truncf %484 : vector<16x128xf32> to vector<16x128xbf16>
    %c0_152 = arith.constant 0 : index
    %c0_153 = arith.constant 0 : index
    %c0_154 = arith.constant 0 : index
    %486 = vector.load %arg10[%c0_152, %c0_153, %c0_154] : memref<1x128x256xbf16, #tpu.memory_space<vmem>>, vector<1x128x256xbf16>
    %487 = vector.shape_cast %486 : vector<1x128x256xbf16> to vector<128x256xbf16>
    %cst_155 = arith.constant dense<0.000000e+00> : vector<16x256xf32>
    %488 = tpu.matmul %485, %487, %cst_155 {dimension_numbers = #tpu.dot_dimension_numbers<[1], [0], [0], [1], [0, 0, 1, 1], [], []>} : vector<16x128xbf16>, vector<128x256xbf16>, vector<16x256xf32> -> vector<16x256xf32>
    %489 = vector.broadcast %12 : vector<1x256xf32> to vector<16x256xf32>
    %490 = arith.addf %488, %489 : vector<16x256xf32>
    %cst_156 = arith.constant 0.000000e+00 : f32
    %491 = vector.broadcast %cst_156 : f32 to vector<16x256xf32>
    %492 = arith.maximumf %490, %491 : vector<16x256xf32>
    %493 = arith.truncf %492 : vector<16x256xf32> to vector<16x256xbf16>
    %c0_157 = arith.constant 0 : index
    %c0_158 = arith.constant 0 : index
    %c0_159 = arith.constant 0 : index
    %494 = vector.load %arg11[%c0_157, %c0_158, %c0_159] : memref<1x256x128xbf16, #tpu.memory_space<vmem>>, vector<1x256x128xbf16>
    %495 = vector.shape_cast %494 : vector<1x256x128xbf16> to vector<256x128xbf16>
    %cst_160 = arith.constant dense<0.000000e+00> : vector<16x128xf32>
    %496 = tpu.matmul %493, %495, %cst_160 {dimension_numbers = #tpu.dot_dimension_numbers<[1], [0], [0], [1], [0, 0, 1, 1], [], []>} : vector<16x256xbf16>, vector<256x128xbf16>, vector<16x128xf32> -> vector<16x128xf32>
    %497 = vector.broadcast %16 : vector<1x128xf32> to vector<16x128xf32>
    %498 = arith.addf %496, %497 : vector<16x128xf32>
    %499 = arith.addf %498, %484 : vector<16x128xf32>
    %cst_161 = arith.constant dense<0.000000e+00> : vector<16xf32>
    %500 = vector.multi_reduction <add>, %499, %cst_161 [1] : vector<16x128xf32> to vector<16xf32>
    %501 = vector.shape_cast %500 : vector<16xf32> to vector<16x1xf32>
    %cst_162 = arith.constant 1.280000e+02 : f32
    %502 = vector.broadcast %cst_162 : f32 to vector<16x1xf32>
    %503 = arith.divf %501, %502 : vector<16x1xf32>
    %504 = vector.broadcast %503 : vector<16x1xf32> to vector<16x128xf32>
    %505 = arith.subf %499, %504 : vector<16x128xf32>
    %506 = arith.mulf %505, %505 : vector<16x128xf32>
    %cst_163 = arith.constant dense<0.000000e+00> : vector<16xf32>
    %507 = vector.multi_reduction <add>, %506, %cst_163 [1] : vector<16x128xf32> to vector<16xf32>
    %508 = vector.shape_cast %507 : vector<16xf32> to vector<16x1xf32>
    %cst_164 = arith.constant 0.00787401571 : f32
    %509 = vector.broadcast %cst_164 : f32 to vector<16x1xf32>
    %510 = arith.mulf %508, %509 : vector<16x1xf32>
    %511 = math.sqrt %510 : vector<16x1xf32>
    %512 = vector.broadcast %21 : vector<1x128xf32> to vector<16x128xf32>
    %513 = arith.mulf %512, %505 : vector<16x128xf32>
    %cst_165 = arith.constant 9.99999997E-7 : f32
    %514 = vector.broadcast %cst_165 : f32 to vector<16x1xf32>
    %515 = arith.addf %511, %514 : vector<16x1xf32>
    %516 = vector.broadcast %515 : vector<16x1xf32> to vector<16x128xf32>
    %517 = arith.divf %513, %516 : vector<16x128xf32>
    %518 = vector.broadcast %22 : vector<1x128xf32> to vector<16x128xf32>
    %519 = arith.addf %517, %518 : vector<16x128xf32>
    %c0_166 = arith.constant 0 : index
    %c0_167 = arith.constant 0 : index
    %520 = vector.load %arg16[%c0_166, %c0_167] : memref<16x128xf32, #tpu.memory_space<vmem>>, vector<16x128xf32>
    tpu.vector_store %arg16[%c0_166, %c0_167], %519 {strides = array<i32>} : memref<16x128xf32, #tpu.memory_space<vmem>>, vector<16x128xf32>,
    %c1_i32 = arith.constant 1 : i32
    %521 = arith.cmpi eq, %arg0, %c1_i32 : i32
    %522 = arith.extui %521 : i1 to i32
    %c0_i32_168 = arith.constant 0 : i32
    %523 = arith.cmpi ne, %522, %c0_i32_168 : i32
    scf.if %523 {
      %524 = arith.truncf %519 : vector<16x128xf32> to vector<16x128xbf16>
      %c0_169 = arith.constant 0 : index
      %c0_170 = arith.constant 0 : index
      %525 = vector.load %arg13[%c0_169, %c0_170] : memref<128x128xbf16, #tpu.memory_space<vmem>>, vector<128x128xbf16>
      %cst_171 = arith.constant dense<0.000000e+00> : vector<16x128xf32>
      %526 = tpu.matmul %524, %525, %cst_171 {dimension_numbers = #tpu.dot_dimension_numbers<[1], [0], [0], [1], [0, 0, 1, 1], [], []>} : vector<16x128xbf16>, vector<128x128xbf16>, vector<16x128xf32> -> vector<16x128xf32>
      %c0_172 = arith.constant 0 : index
      %c0_173 = arith.constant 0 : index
      %527 = vector.load %arg14[%c0_172, %c0_173] : memref<1x128xf32, #tpu.memory_space<vmem>>, vector<1x128xf32>
      %528 = vector.broadcast %527 : vector<1x128xf32> to vector<16x128xf32>
      %529 = arith.addf %526, %528 : vector<16x128xf32>
      %c0_174 = arith.constant 0 : index
      %c0_175 = arith.constant 0 : index
      %530 = vector.load %arg15[%c0_174, %c0_175] : memref<16x128xf32, #tpu.memory_space<vmem>>, vector<16x128xf32>
      tpu.vector_store %arg15[%c0_174, %c0_175], %529 {strides = array<i32>} : memref<16x128xf32, #tpu.memory_space<vmem>>, vector<16x128xf32>,
    } else {
    }
    return
  }
  func.func @transform_0(%arg0: i32) -> (i32, i32) {
    %c0_i32 = arith.constant 0 : i32
    %c0_i32_0 = arith.constant 0 : i32
    %c0_i32_1 = arith.constant 0 : i32
    return %c0_i32, %c0_i32_0 : i32, i32
  }
  func.func @transform_1(%arg0: i32) -> (i32, i32) {
    %c0_i32 = arith.constant 0 : i32
    %c0_i32_0 = arith.constant 0 : i32
    %c0_i32_1 = arith.constant 0 : i32
    return %c0_i32, %c0_i32_0 : i32, i32
  }
  func.func @transform_2(%arg0: i32) -> (i32, i32) {
    %c0_i32 = arith.constant 0 : i32
    %c0_i32_0 = arith.constant 0 : i32
    %c0_i32_1 = arith.constant 0 : i32
    return %c0_i32, %c0_i32_0 : i32, i32
  }
  func.func @transform_3(%arg0: i32) -> (i32, i32) {
    %c0_i32 = arith.constant 0 : i32
    %c0_i32_0 = arith.constant 0 : i32
    %c0_i32_1 = arith.constant 0 : i32
    return %c0_i32, %c0_i32_0 : i32, i32
  }
  func.func @transform_4(%arg0: i32) -> (i32, i32, i32) {
    %c0_i32 = arith.constant 0 : i32
    %c0_i32_0 = arith.constant 0 : i32
    %c0_i32_1 = arith.constant 0 : i32
    return %arg0, %c0_i32, %c0_i32_0 : i32, i32, i32
  }
  func.func @transform_5(%arg0: i32) -> (i32, i32, i32) {
    %c0_i32 = arith.constant 0 : i32
    %c0_i32_0 = arith.constant 0 : i32
    %c0_i32_1 = arith.constant 0 : i32
    return %arg0, %c0_i32, %c0_i32_0 : i32, i32, i32
  }
  func.func @transform_6(%arg0: i32) -> (i32, i32, i32) {
    %c0_i32 = arith.constant 0 : i32
    %c0_i32_0 = arith.constant 0 : i32
    %c0_i32_1 = arith.constant 0 : i32
    return %arg0, %c0_i32, %c0_i32_0 : i32, i32, i32
  }
  func.func @transform_7(%arg0: i32) -> (i32, i32, i32) {
    %c0_i32 = arith.constant 0 : i32
    %c0_i32_0 = arith.constant 0 : i32
    %c0_i32_1 = arith.constant 0 : i32
    return %arg0, %c0_i32, %c0_i32_0 : i32, i32, i32
  }
  func.func @transform_8(%arg0: i32) -> (i32, i32, i32) {
    %c0_i32 = arith.constant 0 : i32
    %c0_i32_0 = arith.constant 0 : i32
    %c0_i32_1 = arith.constant 0 : i32
    return %arg0, %c0_i32, %c0_i32_0 : i32, i32, i32
  }
  func.func @transform_9(%arg0: i32) -> (i32, i32, i32) {
    %c0_i32 = arith.constant 0 : i32
    %c0_i32_0 = arith.constant 0 : i32
    %c0_i32_1 = arith.constant 0 : i32
    return %arg0, %c0_i32, %c0_i32_0 : i32, i32, i32
  }
  func.func @transform_10(%arg0: i32) -> (i32, i32, i32) {
    %c0_i32 = arith.constant 0 : i32
    %c0_i32_0 = arith.constant 0 : i32
    %c0_i32_1 = arith.constant 0 : i32
    return %arg0, %c0_i32, %c0_i32_0 : i32, i32, i32
  }
  func.func @transform_11(%arg0: i32) -> (i32, i32, i32) {
    %c0_i32 = arith.constant 0 : i32
    %c0_i32_0 = arith.constant 0 : i32
    %c0_i32_1 = arith.constant 0 : i32
    return %arg0, %c0_i32, %c0_i32_0 : i32, i32, i32
  }
  func.func @transform_12(%arg0: i32) -> (i32, i32) {
    %c0_i32 = arith.constant 0 : i32
    %c0_i32_0 = arith.constant 0 : i32
    %c0_i32_1 = arith.constant 0 : i32
    return %c0_i32, %c0_i32_0 : i32, i32
  }
  func.func @transform_13(%arg0: i32) -> (i32, i32) {
    %c0_i32 = arith.constant 0 : i32
    %c0_i32_0 = arith.constant 0 : i32
    %c0_i32_1 = arith.constant 0 : i32
    return %c0_i32, %c0_i32_0 : i32, i32
  }
  func.func @transform_14(%arg0: i32) -> (i32, i32) {
    %c0_i32 = arith.constant 0 : i32
    %c0_i32_0 = arith.constant 0 : i32
    %c0_i32_1 = arith.constant 0 : i32
    return %c0_i32, %c0_i32_0 : i32, i32
  }
}

</mosaic_0001>

<llo_original>
// kernel: decoder_forward.1
$region0: #{decoder_forward.1}
  #allocation0 [shape = 'u32[]', space=smem, size = 0x4, offset = 0x4, fixed_abs, tag = 'smem constant byte address 0x4 - core index']
  #allocation1 [shape = 'u32[144,128]{1,0:T(1,128)}', space=vmem, size = 0x12000, scoped, tag = 'internal scratch']
  #allocation2 [shape = 'f32[16,128]{1,0:T(8,128)}', space=vmem, size = 0x2000, scoped, tag = 'scratch operand']
  %s0 = inlined_call_operand.vmem [shape: f32[16,128], index: 0, kind: input, shape index: {}]
  %s1 = inlined_call_operand.hbm [shape: f32[16,128], index: 1, kind: input, shape index: {}]
  %s2 = inlined_call_operand.hbm [shape: f32[16,8], index: 2, kind: input, shape index: {}]
  %s3 = inlined_call_operand.hbm [shape: f32[16,8], index: 3, kind: input, shape index: {}]
  %s4 = inlined_call_operand.hbm [shape: bf16[2,128,384], index: 4, kind: input, shape index: {}]
  %s5 = inlined_call_operand.hbm [shape: bf16[2,128,128], index: 5, kind: input, shape index: {}]
  %s6 = inlined_call_operand.hbm [shape: bf16[2,128,128], index: 6, kind: input, shape index: {}]
  %s7 = inlined_call_operand.vmem [shape: bf16[2,128,256], index: 7, kind: input, shape index: {}]
  %s8 = inlined_call_operand.hbm [shape: bf16[2,128,128], index: 8, kind: input, shape index: {}]
  %s9 = inlined_call_operand.hbm [shape: bf16[2,128,256], index: 9, kind: input, shape index: {}]
  %s10 = inlined_call_operand.hbm [shape: bf16[2,256,128], index: 10, kind: input, shape index: {}]
  %s11 = inlined_call_operand.hbm [shape: f32[2,16,384], index: 11, kind: input, shape index: {}]
  %s12 = inlined_call_operand.hbm [shape: bf16[128,128], index: 12, kind: input, shape index: {}]
  %s13 = inlined_call_operand.vmem [shape: f32[1,128], index: 13, kind: input, shape index: {}]
  %s14 = inlined_call_operand.hbm [shape: f32[16,128], index: 14, kind: output, shape index: {}]
  %s15 = sld [smem:[#allocation0]]
  $region141: #{decoder_forward.1} parent=0
    _
  %s17 = ssub.s32 1, %s15
  %s18 = scalar_select 0, %s17, %s15
  $region1: #{decoder_forward.1} parent=0
    #allocation3 [shape = 'u8[8192]{0}', space=vmem, size = 0x2000, scoped, tag = 'input window, operand 1, single buffered']
    #allocation4 [shape = 's32[2]{0}', space=sflag, size = 0x8, scoped, tag = 'scoped memory for decoder_forward.1']
    #allocation5 [shape = 's32[2]{0}', space=sflag, size = 0x8, scoped, tag = 'scoped memory for decoder_forward.1']
    #allocation6 [shape = 'u8[8192]{0}', space=vmem, size = 0x2000, scoped, tag = 'input window, operand 2, single buffered']
    #allocation7 [shape = 's32[1]{0}', space=sflag, size = 0x4, scoped, tag = 'scoped memory for decoder_forward.1']
    #allocation8 [shape = 'u8[8192]{0}', space=vmem, size = 0x2000, scoped, tag = 'input window, operand 3, single buffered']
    #allocation9 [shape = 'u8[196608]{0}', space=vmem, size = 0x30000, scoped, tag = 'input window, operand 4']
    #allocation10 [shape = 's32[2]{0}', space=sflag, size = 0x8, scoped, tag = 'scoped memory for decoder_forward.1']
    #allocation11 [shape = 'u8[65536]{0}', space=vmem, size = 0x10000, scoped, tag = 'input window, operand 5']
    #allocation12 [shape = 'u8[65536]{0}', space=vmem, size = 0x10000, scoped, tag = 'input window, operand 6']
    #allocation13 [shape = 's32[2]{0}', space=sflag, size = 0x8, scoped, tag = 'scoped memory for decoder_forward.1']
    #allocation14 [shape = 'u8[65536]{0}', space=vmem, size = 0x10000, scoped, tag = 'input window, operand 8']
    #allocation15 [shape = 'u8[131072]{0}', space=vmem, size = 0x20000, scoped, tag = 'input window, operand 9']
    #allocation16 [shape = 's32[2]{0}', space=sflag, size = 0x8, scoped, tag = 'scoped memory for decoder_forward.1']
    #allocation17 [shape = 'u8[131072]{0}', space=vmem, size = 0x20000, scoped, tag = 'input window, operand 10']
    #allocation18 [shape = 'u8[49152]{0}', space=vmem, size = 0xc000, scoped, tag = 'input window, operand 11']
    #allocation19 [shape = 's32[2]{0}', space=sflag, size = 0x8, scoped, tag = 'scoped memory for decoder_forward.1']
    #allocation20 [shape = 'u8[32768]{0}', space=vmem, size = 0x8000, scoped, tag = 'input window, operand 12, single buffered']
    #allocation21 [shape = 'u8[8192]{0}', space=vmem, size = 0x2000, scoped, tag = 'output window, operand 0, single buffered']
    %19 = vsyncpa [#allocation4], 0
    %20 = vsyncpa [#allocation7], 0
    %21 = vsyncpa [#allocation10], 0
    %s22 = scalar_lea.sflag [#allocation10], 1
    %23 = vsyncpa %s22, 0
    %24 = vsyncpa [#allocation13], 0
    %s25 = scalar_lea.sflag [#allocation13], 1
    %26 = vsyncpa %s25, 0
    %27 = vsyncpa [#allocation16], 0
    %s28 = scalar_lea.sflag [#allocation16], 1
    %29 = vsyncpa %s28, 0
    %30 = vsyncpa [#allocation19], 0
    %s31 = scalar_lea.sflag [#allocation19], 1
    %32 = vsyncpa %s31, 0
    %33 = vsyncpa [#allocation5], 0
    loop: start=0, step=1, limit=4
    $region2: #{decoder_forward.1} parent=1 // loop_pre_header
      _
    $region3: #{decoder_forward.1} parent=1 // loop_header
      %s35 = sphi 0, %s39
      %p36 = scmp.ge.s32.totalorder %s35, 4
      %s43 = sphi 0, %s43
      %s45 = sphi 0, %s43
      %s46 = sphi 0, %s45
      %s60 = sphi 0, %s46
      %s64 = sphi 0, %s64
      %s66 = sphi 0, %s64
      %s67 = sphi 0, %s66
      %s81 = sphi 0, %s67
      %s85 = sphi 0, %s85
      %s87 = sphi 0, %s85
      %s88 = sphi 0, %s87
      %s102 = sphi 0, %s88
      %s106 = sphi 0, %s106
      %s108 = sphi 0, %s106
      %s109 = sphi 0, %s108
      %s123 = sphi 0, %s109
      %s129 = sphi 0, %s131
      %s132 = sphi 0, %s129
      %s133 = sphi 0, %s132
      %s149 = sphi 0, %s133
      %s155 = sphi 0, %s157
      %s158 = sphi 0, %s155
      %s159 = sphi 0, %s158
      %s175 = sphi 0, %s159
      %s181 = sphi 0, %s183
      %s184 = sphi 0, %s181
      %s185 = sphi 0, %s184
      %s201 = sphi 0, %s185
      %s207 = sphi 0, %s209
      %s210 = sphi 0, %s207
      %s211 = sphi 0, %s210
      %s227 = sphi 0, %s211
      %s233 = sphi 0, %s235
      %s236 = sphi 0, %s233
      %s237 = sphi 0, %s236
      %s253 = sphi 0, %s237
      %s259 = sphi 0, %s261
      %s262 = sphi 0, %s259
      %s263 = sphi 0, %s262
      %s279 = sphi 0, %s263
      %s285 = sphi 0, %s287
      %s288 = sphi 0, %s285
      %s289 = sphi 0, %s288
      %s305 = sphi 0, %s289
      %s311 = sphi 0, %s313
      %s314 = sphi 0, %s311
      %s315 = sphi 0, %s314
      %s331 = sphi 0, %s315
      %s335 = sphi 0, %s335
      %s337 = sphi 0, %s335
      %s338 = sphi 0, %s337
      %s352 = sphi 0, %s338
      %s356 = sphi 0, %s356
      %s358 = sphi 0, %s356
      %s359 = sphi 0, %s358
      %s373 = sphi 0, %s359
      %s377 = sphi 0, %s377
      %s379 = sphi 0, %s377
      %s380 = sphi 0, %s379
      %s394 = sphi 0, %s380
    $region4: #{decoder_forward.1} parent=1 // loop_header_branch
      %38 = sbr.rel (%p36) target = $region8
    $region5: #{decoder_forward.1} parent=1 // loop_body
      %s40 = ssub.s32 %s35, 1
      %s41 = ssub.s32 %s35, 2
      %s42 = sadd.s32 %s35, 1
      %s44 = sadd.s32 %s43, 1
      %p47 = scmp.eq.s32.totalorder %s35, 1
      %p48 = scmp.ne.s32.totalorder %s43, %s45
      %p49 = scmp.eq.s32.totalorder %s35, 0
      %p50 = por %p48, %p49
      %p51 = scmp.ne.s32.totalorder %s43, %s45
      %p52 = scmp.eq.s32.totalorder %s40, 1
      %p53 = por %p51, %p52
      %p54 = scmp.ne.s32.totalorder %s45, %s46
      %p55 = scmp.eq.s32.totalorder %s40, 0
      %p56 = por %p54, %p55
      %p57 = scmp.ne.s32.totalorder %s45, %s46
      %p58 = scmp.eq.s32.totalorder %s41, 1
      %p59 = por %p57, %p58
      %p61 = scmp.ne.s32.totalorder %s46, %s60
      %p62 = scmp.eq.s32.totalorder %s41, 0
      %p63 = por %p61, %p62
      %s65 = sadd.s32 %s64, 1
      %p68 = scmp.eq.s32.totalorder %s35, 1
      %p69 = scmp.ne.s32.totalorder %s64, %s66
      %p70 = scmp.eq.s32.totalorder %s35, 0
      %p71 = por %p69, %p70
      %p72 = scmp.ne.s32.totalorder %s64, %s66
      %p73 = scmp.eq.s32.totalorder %s40, 1
      %p74 = por %p72, %p73
      %p75 = scmp.ne.s32.totalorder %s66, %s67
      %p76 = scmp.eq.s32.totalorder %s40, 0
      %p77 = por %p75, %p76
      %p78 = scmp.ne.s32.totalorder %s66, %s67
      %p79 = scmp.eq.s32.totalorder %s41, 1
      %p80 = por %p78, %p79
      %p82 = scmp.ne.s32.totalorder %s67, %s81
      %p83 = scmp.eq.s32.totalorder %s41, 0
      %p84 = por %p82, %p83
      %s86 = sadd.s32 %s85, 1
      %p89 = scmp.eq.s32.totalorder %s35, 1
      %p90 = scmp.ne.s32.totalorder %s85, %s87
      %p91 = scmp.eq.s32.totalorder %s35, 0
      %p92 = por %p90, %p91
      %p93 = scmp.ne.s32.totalorder %s85, %s87
      %p94 = scmp.eq.s32.totalorder %s40, 1
      %p95 = por %p93, %p94
      %p96 = scmp.ne.s32.totalorder %s87, %s88
      %p97 = scmp.eq.s32.totalorder %s40, 0
      %p98 = por %p96, %p97
      %p99 = scmp.ne.s32.totalorder %s87, %s88
      %p100 = scmp.eq.s32.totalorder %s41, 1
      %p101 = por %p99, %p100
      %p103 = scmp.ne.s32.totalorder %s88, %s102
      %p104 = scmp.eq.s32.totalorder %s41, 0
      %p105 = por %p103, %p104
      %s107 = sadd.s32 %s106, 1
      %p110 = scmp.eq.s32.totalorder %s35, 1
      %p111 = scmp.ne.s32.totalorder %s106, %s108
      %p112 = scmp.eq.s32.totalorder %s35, 0
      %p113 = por %p111, %p112
      %p114 = scmp.ne.s32.totalorder %s106, %s108
      %p115 = scmp.eq.s32.totalorder %s40, 1
      %p116 = por %p114, %p115
      %p117 = scmp.ne.s32.totalorder %s108, %s109
      %p118 = scmp.eq.s32.totalorder %s40, 0
      %p119 = por %p117, %p118
      %p120 = scmp.ne.s32.totalorder %s108, %s109
      %p121 = scmp.eq.s32.totalorder %s41, 1
      %p122 = por %p120, %p121
      %p124 = scmp.ne.s32.totalorder %s109, %s123
      %p125 = scmp.eq.s32.totalorder %s41, 0
      %p126 = por %p124, %p125
      %s127 = ssub.s32 %s35, %s42
      %p128 = scmp.eq.s32.totalorder %s127, 0
      %s130 = sadd.s32 %s129, 1
      %s131 = scalar_select %p128, %s129, %s130
      %p134 = pneg %p128
      %p135 = scmp.eq.s32.totalorder %s35, 1
      %p136 = por %p134, %p135
      %p137 = scmp.ne.s32.totalorder %s129, %s132
      %p138 = scmp.eq.s32.totalorder %s35, 0
      %p139 = por %p137, %p138
      %p140 = scmp.ne.s32.totalorder %s129, %s132
      %p141 = scmp.eq.s32.totalorder %s40, 1
      %p142 = por %p140, %p141
      %p143 = scmp.ne.s32.totalorder %s132, %s133
      %p144 = scmp.eq.s32.totalorder %s40, 0
      %p145 = por %p143, %p144
      %p146 = scmp.ne.s32.totalorder %s132, %s133
      %p147 = scmp.eq.s32.totalorder %s41, 1
      %p148 = por %p146, %p147
      %p150 = scmp.ne.s32.totalorder %s133, %s149
      %p151 = scmp.eq.s32.totalorder %s41, 0
      %p152 = por %p150, %p151
      %s153 = ssub.s32 %s35, %s42
      %p154 = scmp.eq.s32.totalorder %s153, 0
      %s156 = sadd.s32 %s155, 1
      %s157 = scalar_select %p154, %s155, %s156
      %p160 = pneg %p154
      %p161 = scmp.eq.s32.totalorder %s35, 1
      %p162 = por %p160, %p161
      %p163 = scmp.ne.s32.totalorder %s155, %s158
      %p164 = scmp.eq.s32.totalorder %s35, 0
      %p165 = por %p163, %p164
      %p166 = scmp.ne.s32.totalorder %s155, %s158
      %p167 = scmp.eq.s32.totalorder %s40, 1
      %p168 = por %p166, %p167
      %p169 = scmp.ne.s32.totalorder %s158, %s159
      %p170 = scmp.eq.s32.totalorder %s40, 0
      %p171 = por %p169, %p170
      %p172 = scmp.ne.s32.totalorder %s158, %s159
      %p173 = scmp.eq.s32.totalorder %s41, 1
      %p174 = por %p172, %p173
      %p176 = scmp.ne.s32.totalorder %s159, %s175
      %p177 = scmp.eq.s32.totalorder %s41, 0
      %p178 = por %p176, %p177
      %s179 = ssub.s32 %s35, %s42
      %p180 = scmp.eq.s32.totalorder %s179, 0
      %s182 = sadd.s32 %s181, 1
      %s183 = scalar_select %p180, %s181, %s182
      %p186 = pneg %p180
      %p187 = scmp.eq.s32.totalorder %s35, 1
      %p188 = por %p186, %p187
      %p189 = scmp.ne.s32.totalorder %s181, %s184
      %p190 = scmp.eq.s32.totalorder %s35, 0
      %p191 = por %p189, %p190
      %p192 = scmp.ne.s32.totalorder %s181, %s184
      %p193 = scmp.eq.s32.totalorder %s40, 1
      %p194 = por %p192, %p193
      %p195 = scmp.ne.s32.totalorder %s184, %s185
      %p196 = scmp.eq.s32.totalorder %s40, 0
      %p197 = por %p195, %p196
      %p198 = scmp.ne.s32.totalorder %s184, %s185
      %p199 = scmp.eq.s32.totalorder %s41, 1
      %p200 = por %p198, %p199
      %p202 = scmp.ne.s32.totalorder %s185, %s201
      %p203 = scmp.eq.s32.totalorder %s41, 0
      %p204 = por %p202, %p203
      %s205 = ssub.s32 %s35, %s42
      %p206 = scmp.eq.s32.totalorder %s205, 0
      %s208 = sadd.s32 %s207, 1
      %s209 = scalar_select %p206, %s207, %s208
      %p212 = pneg %p206
      %p213 = scmp.eq.s32.totalorder %s35, 1
      %p214 = por %p212, %p213
      %p215 = scmp.ne.s32.totalorder %s207, %s210
      %p216 = scmp.eq.s32.totalorder %s35, 0
      %p217 = por %p215, %p216
      %p218 = scmp.ne.s32.totalorder %s207, %s210
      %p219 = scmp.eq.s32.totalorder %s40, 1
      %p220 = por %p218, %p219
      %p221 = scmp.ne.s32.totalorder %s210, %s211
      %p222 = scmp.eq.s32.totalorder %s40, 0
      %p223 = por %p221, %p222
      %p224 = scmp.ne.s32.totalorder %s210, %s211
      %p225 = scmp.eq.s32.totalorder %s41, 1
      %p226 = por %p224, %p225
      %p228 = scmp.ne.s32.totalorder %s211, %s227
      %p229 = scmp.eq.s32.totalorder %s41, 0
      %p230 = por %p228, %p229
      %s231 = ssub.s32 %s35, %s42
      %p232 = scmp.eq.s32.totalorder %s231, 0
      %s234 = sadd.s32 %s233, 1
      %s235 = scalar_select %p232, %s233, %s234
      %p238 = pneg %p232
      %p239 = scmp.eq.s32.totalorder %s35, 1
      %p240 = por %p238, %p239
      %p241 = scmp.ne.s32.totalorder %s233, %s236
      %p242 = scmp.eq.s32.totalorder %s35, 0
      %p243 = por %p241, %p242
      %p244 = scmp.ne.s32.totalorder %s233, %s236
      %p245 = scmp.eq.s32.totalorder %s40, 1
      %p246 = por %p244, %p245
      %p247 = scmp.ne.s32.totalorder %s236, %s237
      %p248 = scmp.eq.s32.totalorder %s40, 0
      %p249 = por %p247, %p248
      %p250 = scmp.ne.s32.totalorder %s236, %s237
      %p251 = scmp.eq.s32.totalorder %s41, 1
      %p252 = por %p250, %p251
      %p254 = scmp.ne.s32.totalorder %s237, %s253
      %p255 = scmp.eq.s32.totalorder %s41, 0
      %p256 = por %p254, %p255
      %s257 = ssub.s32 %s35, %s42
      %p258 = scmp.eq.s32.totalorder %s257, 0
      %s260 = sadd.s32 %s259, 1
      %s261 = scalar_select %p258, %s259, %s260
      %p264 = pneg %p258
      %p265 = scmp.eq.s32.totalorder %s35, 1
      %p266 = por %p264, %p265
      %p267 = scmp.ne.s32.totalorder %s259, %s262
      %p268 = scmp.eq.s32.totalorder %s35, 0
      %p269 = por %p267, %p268
      %p270 = scmp.ne.s32.totalorder %s259, %s262
      %p271 = scmp.eq.s32.totalorder %s40, 1
      %p272 = por %p270, %p271
      %p273 = scmp.ne.s32.totalorder %s262, %s263
      %p274 = scmp.eq.s32.totalorder %s40, 0
      %p275 = por %p273, %p274
      %p276 = scmp.ne.s32.totalorder %s262, %s263
      %p277 = scmp.eq.s32.totalorder %s41, 1
      %p278 = por %p276, %p277
      %p280 = scmp.ne.s32.totalorder %s263, %s279
      %p281 = scmp.eq.s32.totalorder %s41, 0
      %p282 = por %p280, %p281
      %s283 = ssub.s32 %s35, %s42
      %p284 = scmp.eq.s32.totalorder %s283, 0
      %s286 = sadd.s32 %s285, 1
      %s287 = scalar_select %p284, %s285, %s286
      %p290 = pneg %p284
      %p291 = scmp.eq.s32.totalorder %s35, 1
      %p292 = por %p290, %p291
      %p293 = scmp.ne.s32.totalorder %s285, %s288
      %p294 = scmp.eq.s32.totalorder %s35, 0
      %p295 = por %p293, %p294
      %p296 = scmp.ne.s32.totalorder %s285, %s288
      %p297 = scmp.eq.s32.totalorder %s40, 1
      %p298 = por %p296, %p297
      %p299 = scmp.ne.s32.totalorder %s288, %s289
      %p300 = scmp.eq.s32.totalorder %s40, 0
      %p301 = por %p299, %p300
      %p302 = scmp.ne.s32.totalorder %s288, %s289
      %p303 = scmp.eq.s32.totalorder %s41, 1
      %p304 = por %p302, %p303
      %p306 = scmp.ne.s32.totalorder %s289, %s305
      %p307 = scmp.eq.s32.totalorder %s41, 0
      %p308 = por %p306, %p307
      %s309 = ssub.s32 %s35, %s42
      %p310 = scmp.eq.s32.totalorder %s309, 0
      %s312 = sadd.s32 %s311, 1
      %s313 = scalar_select %p310, %s311, %s312
      %p316 = pneg %p310
      %p317 = scmp.eq.s32.totalorder %s35, 1
      %p318 = por %p316, %p317
      %p319 = scmp.ne.s32.totalorder %s311, %s314
      %p320 = scmp.eq.s32.totalorder %s35, 0
      %p321 = por %p319, %p320
      %p322 = scmp.ne.s32.totalorder %s311, %s314
      %p323 = scmp.eq.s32.totalorder %s40, 1
      %p324 = por %p322, %p323
      %p325 = scmp.ne.s32.totalorder %s314, %s315
      %p326 = scmp.eq.s32.totalorder %s40, 0
      %p327 = por %p325, %p326
      %p328 = scmp.ne.s32.totalorder %s314, %s315
      %p329 = scmp.eq.s32.totalorder %s41, 1
      %p330 = por %p328, %p329
      %p332 = scmp.ne.s32.totalorder %s315, %s331
      %p333 = scmp.eq.s32.totalorder %s41, 0
      %p334 = por %p332, %p333
      %s336 = sadd.s32 %s335, 1
      %p339 = scmp.eq.s32.totalorder %s35, 1
      %p340 = scmp.ne.s32.totalorder %s335, %s337
      %p341 = scmp.eq.s32.totalorder %s35, 0
      %p342 = por %p340, %p341
      %p343 = scmp.ne.s32.totalorder %s335, %s337
      %p344 = scmp.eq.s32.totalorder %s40, 1
      %p345 = por %p343, %p344
      %p346 = scmp.ne.s32.totalorder %s337, %s338
      %p347 = scmp.eq.s32.totalorder %s40, 0
      %p348 = por %p346, %p347
      %p349 = scmp.ne.s32.totalorder %s337, %s338
      %p350 = scmp.eq.s32.totalorder %s41, 1
      %p351 = por %p349, %p350
      %p353 = scmp.ne.s32.totalorder %s338, %s352
      %p354 = scmp.eq.s32.totalorder %s41, 0
      %p355 = por %p353, %p354
      %s357 = sadd.s32 %s356, 1
      %p360 = scmp.eq.s32.totalorder %s35, 1
      %p361 = scmp.ne.s32.totalorder %s356, %s358
      %p362 = scmp.eq.s32.totalorder %s35, 0
      %p363 = por %p361, %p362
      %p364 = scmp.ne.s32.totalorder %s356, %s358
      %p365 = scmp.eq.s32.totalorder %s40, 1
      %p366 = por %p364, %p365
      %p367 = scmp.ne.s32.totalorder %s358, %s359
      %p368 = scmp.eq.s32.totalorder %s40, 0
      %p369 = por %p367, %p368
      %p370 = scmp.ne.s32.totalorder %s358, %s359
      %p371 = scmp.eq.s32.totalorder %s41, 1
      %p372 = por %p370, %p371
      %p374 = scmp.ne.s32.totalorder %s359, %s373
      %p375 = scmp.eq.s32.totalorder %s41, 0
      %p376 = por %p374, %p375
      %s378 = sadd.s32 %s377, 1
      %p381 = scmp.eq.s32.totalorder %s35, 1
      %p382 = scmp.ne.s32.totalorder %s377, %s379
      %p383 = scmp.eq.s32.totalorder %s35, 0
      %p384 = por %p382, %p383
      %p385 = scmp.ne.s32.totalorder %s377, %s379
      %p386 = scmp.eq.s32.totalorder %s40, 1
      %p387 = por %p385, %p386
      %p388 = scmp.ne.s32.totalorder %s379, %s380
      %p389 = scmp.eq.s32.totalorder %s40, 0
      %p390 = por %p388, %p389
      %p391 = scmp.ne.s32.totalorder %s379, %s380
      %p392 = scmp.eq.s32.totalorder %s41, 1
      %p393 = por %p391, %p392
      %p395 = scmp.ne.s32.totalorder %s380, %s394
      %p396 = scmp.eq.s32.totalorder %s41, 0
      %p397 = por %p395, %p396
      %p398 = scmp.le.s32.totalorder 1, %s35
      %p399 = scmp.lt.s32.totalorder %s35, 3
      %p400 = pnand %p398, %p399
      %p401 = pneg %p400
      // Predicated region
      $region9: #{decoder_forward.1} parent=5 // pred_check
        _
      $region10: #{decoder_forward.1} parent=5 // pred_check_branch
        %403 = sbr.rel (%p400) target = $region12
      $region11: #{decoder_forward.1} parent=5 // pred_region
        %s404 = ssub.s32 %s35, 1
        // Predicated region
        $region13: #{decoder_forward.1} parent=11 // pred_check
          %p405 = pneg %p56
        $region14: #{decoder_forward.1} parent=11 // pred_check_branch
          %407 = sbr.rel (%p405) target = $region16
        $region15: #{decoder_forward.1} parent=11 // pred_region
          _
        $region16: #{decoder_forward.1} parent=11 // pred_fallthru
          _
        // Predicated region
        $region17: #{decoder_forward.1} parent=11 // pred_check
          %p408 = pneg %p77
        $region18: #{decoder_forward.1} parent=11 // pred_check_branch
          %410 = sbr.rel (%p408) target = $region20
        $region19: #{decoder_forward.1} parent=11 // pred_region
          %s412 = ssub.s32 256, 256
          %413 = vsyncadd [#allocation4], %s412
          %s414 = sshll.u32 [#allocation3], 4
          %s415 = int_to_ptr.vmem [resolvable:$true] %s414
          %420 = dma.hbm_to_vmem [thread:$0]  %s1, 256, %s415, [#allocation4], 128, 128, 8
        $region20: #{decoder_forward.1} parent=11 // pred_fallthru
          _
        // Predicated region
        $region21: #{decoder_forward.1} parent=11 // pred_check
          %p421 = pneg %p98
        $region22: #{decoder_forward.1} parent=11 // pred_check_branch
          %423 = sbr.rel (%p421) target = $region24
        $region23: #{decoder_forward.1} parent=11 // pred_region
          %s425 = ssub.s32 256, 256
          %426 = vsyncadd [#allocation7], %s425
          %s427 = sshll.u32 [#allocation6], 4
          %s428 = int_to_ptr.vmem [resolvable:$true] %s427
          %433 = dma.hbm_to_vmem [thread:$0]  %s2, 256, %s428, [#allocation7], 128, 128, 8
        $region24: #{decoder_forward.1} parent=11 // pred_fallthru
          _
        // Predicated region
        $region25: #{decoder_forward.1} parent=11 // pred_check
          %p434 = pneg %p119
        $region26: #{decoder_forward.1} parent=11 // pred_check_branch
          %436 = sbr.rel (%p434) target = $region28
        $region27: #{decoder_forward.1} parent=11 // pred_region
          %s438 = ssub.s32 256, 256
          %439 = vsyncadd [#allocation7], %s438
          %s440 = sshll.u32 [#allocation8], 4
          %s441 = int_to_ptr.vmem [resolvable:$true] %s440
          %446 = dma.hbm_to_vmem [thread:$0]  %s3, 256, %s441, [#allocation7], 128, 128, 8
        $region28: #{decoder_forward.1} parent=11 // pred_fallthru
          _
        // Predicated region
        $region29: #{decoder_forward.1} parent=11 // pred_check
          %p447 = pneg %p348
        $region30: #{decoder_forward.1} parent=11 // pred_check_branch
          %449 = sbr.rel (%p447) target = $region32
        $region31: #{decoder_forward.1} parent=11 // pred_region
          %s451 = ssub.s32 1024, 1024
          %452 = vsyncadd [#allocation19], %s451
          %s453 = sshll.u32 [#allocation20], 4
          %s454 = int_to_ptr.vmem [resolvable:$true] %s453
          %459 = dma.hbm_to_vmem [thread:$0]  %s12, 1024, %s454, [#allocation19], 64, 64, 4
        $region32: #{decoder_forward.1} parent=11 // pred_fallthru
          _
        // Predicated region
        $region33: #{decoder_forward.1} parent=11 // pred_check
          %p460 = pneg %p369
        $region34: #{decoder_forward.1} parent=11 // pred_check_branch
          %462 = sbr.rel (%p460) target = $region36
        $region35: #{decoder_forward.1} parent=11 // pred_region
          _
        $region36: #{decoder_forward.1} parent=11 // pred_fallthru
          _
      $region12: #{decoder_forward.1} parent=5 // pred_fallthru
        _
      %p463 = scmp.lt.s32.totalorder %s35, 2
      // Predicated region
      $region37: #{decoder_forward.1} parent=5 // pred_check
        %p464 = pneg %p463
      $region38: #{decoder_forward.1} parent=5 // pred_check_branch
        %466 = sbr.rel (%p464) target = $region40
      $region39: #{decoder_forward.1} parent=5 // pred_region
        // Predicated region
        $region41: #{decoder_forward.1} parent=39 // pred_check
          %p467 = pneg %p139
        $region42: #{decoder_forward.1} parent=39 // pred_check_branch
          %469 = sbr.rel (%p467) target = $region44
        $region43: #{decoder_forward.1} parent=39 // pred_region
          %s470 = sand.u32 %s35, 1
          %s471 = scalar_lea.sflag [#allocation10], %s470
          %s472 = sand.u32 %s129, 1
          %s473 = smul.addr %s472, 192
          %s474 = scalar_lea.vmem [#allocation9], %s473
          %s476 = ssub.s32 3072, 3072
          %477 = vsyncadd %s471, %s476
          %s478 = smul.addr %s35, 48
          %s479 = smul.addr %s478, 64
          %s480 = scalar_lea.hbm %s4, %s479
          %s481 = sshll.u32 %s474, 4
          %s482 = int_to_ptr.vmem [resolvable:$true] %s481
          %487 = dma.hbm_to_vmem [thread:$0]  %s480, 3072, %s482, %s471, 192, 192, 12
        $region44: #{decoder_forward.1} parent=39 // pred_fallthru
          _
        // Predicated region
        $region45: #{decoder_forward.1} parent=39 // pred_check
          %p488 = pneg %p165
        $region46: #{decoder_forward.1} parent=39 // pred_check_branch
          %490 = sbr.rel (%p488) target = $region48
        $region47: #{decoder_forward.1} parent=39 // pred_region
          %s491 = sand.u32 %s35, 1
          %s492 = scalar_lea.sflag [#allocation10], %s491
          %s493 = sand.u32 %s155, 1
          %s494 = smul.addr %s493, 64
          %s495 = scalar_lea.vmem [#allocation11], %s494
          %s497 = ssub.s32 1024, 1024
          %498 = vsyncadd %s492, %s497
          %s499 = smul.addr %s35, 16
          %s500 = smul.addr %s499, 64
          %s501 = scalar_lea.hbm %s5, %s500
          %s502 = sshll.u32 %s495, 4
          %s503 = int_to_ptr.vmem [resolvable:$true] %s502
          %508 = dma.hbm_to_vmem [thread:$0]  %s501, 1024, %s503, %s492, 64, 64, 4
        $region48: #{decoder_forward.1} parent=39 // pred_fallthru
          _
        // Predicated region
        $region49: #{decoder_forward.1} parent=39 // pred_check
          %p509 = pneg %p191
        $region50: #{decoder_forward.1} parent=39 // pred_check_branch
          %511 = sbr.rel (%p509) target = $region52
        $region51: #{decoder_forward.1} parent=39 // pred_region
          %s512 = sand.u32 %s35, 1
          %s513 = scalar_lea.sflag [#allocation13], %s512
          %s514 = sand.u32 %s181, 1
          %s515 = smul.addr %s514, 64
          %s516 = scalar_lea.vmem [#allocation12], %s515
          %s518 = ssub.s32 1024, 1024
          %519 = vsyncadd %s513, %s518
          %s520 = smul.addr %s35, 16
          %s521 = smul.addr %s520, 64
          %s522 = scalar_lea.hbm %s6, %s521
          %s523 = sshll.u32 %s516, 4
          %s524 = int_to_ptr.vmem [resolvable:$true] %s523
          %529 = dma.hbm_to_vmem [thread:$0]  %s522, 1024, %s524, %s513, 64, 64, 4
        $region52: #{decoder_forward.1} parent=39 // pred_fallthru
          _
        // Predicated region
        $region53: #{decoder_forward.1} parent=39 // pred_check
          %p530 = pneg %p217
        $region54: #{decoder_forward.1} parent=39 // pred_check_branch
          %532 = sbr.rel (%p530) target = $region56
        $region55: #{decoder_forward.1} parent=39 // pred_region
          %p533 = scmp.lt.s32.totalorder %s35, 1
          %s534 = scalar_select %p533, %s35, 1
          %s535 = smul.addr %s534, 32
          %s536 = smul.addr %s535, 4
          %s537 = scalar_lea.vmem %s7, %s536
        $region56: #{decoder_forward.1} parent=39 // pred_fallthru
          _
        // Predicated region
        $region57: #{decoder_forward.1} parent=39 // pred_check
          %p538 = pneg %p243
        $region58: #{decoder_forward.1} parent=39 // pred_check_branch
          %540 = sbr.rel (%p538) target = $region60
        $region59: #{decoder_forward.1} parent=39 // pred_region
          %s541 = sand.u32 %s35, 1
          %s542 = scalar_lea.sflag [#allocation13], %s541
          %s543 = sand.u32 %s233, 1
          %s544 = smul.addr %s543, 64
          %s545 = scalar_lea.vmem [#allocation14], %s544
          %s547 = ssub.s32 1024, 1024
          %548 = vsyncadd %s542, %s547
          %s549 = smul.addr %s35, 16
          %s550 = smul.addr %s549, 64
          %s551 = scalar_lea.hbm %s8, %s550
          %s552 = sshll.u32 %s545, 4
          %s553 = int_to_ptr.vmem [resolvable:$true] %s552
          %558 = dma.hbm_to_vmem [thread:$0]  %s551, 1024, %s553, %s542, 64, 64, 4
        $region60: #{decoder_forward.1} parent=39 // pred_fallthru
          _
        // Predicated region
        $region61: #{decoder_forward.1} parent=39 // pred_check
          %p559 = pneg %p269
        $region62: #{decoder_forward.1} parent=39 // pred_check_branch
          %561 = sbr.rel (%p559) target = $region64
        $region63: #{decoder_forward.1} parent=39 // pred_region
          %s562 = sand.u32 %s35, 1
          %s563 = scalar_lea.sflag [#allocation16], %s562
          %s564 = sand.u32 %s259, 1
          %s565 = smul.addr %s564, 128
          %s566 = scalar_lea.vmem [#allocation15], %s565
          %s568 = ssub.s32 2048, 2048
          %569 = vsyncadd %s563, %s568
          %s570 = smul.addr %s35, 32
          %s571 = smul.addr %s570, 64
          %s572 = scalar_lea.hbm %s9, %s571
          %s573 = sshll.u32 %s566, 4
          %s574 = int_to_ptr.vmem [resolvable:$true] %s573
          %579 = dma.hbm_to_vmem [thread:$0]  %s572, 2048, %s574, %s563, 128, 128, 8
        $region64: #{decoder_forward.1} parent=39 // pred_fallthru
          _
        // Predicated region
        $region65: #{decoder_forward.1} parent=39 // pred_check
          %p580 = pneg %p295
        $region66: #{decoder_forward.1} parent=39 // pred_check_branch
          %582 = sbr.rel (%p580) target = $region68
        $region67: #{decoder_forward.1} parent=39 // pred_region
          %s583 = sand.u32 %s35, 1
          %s584 = scalar_lea.sflag [#allocation16], %s583
          %s585 = sand.u32 %s285, 1
          %s586 = smul.addr %s585, 128
          %s587 = scalar_lea.vmem [#allocation17], %s586
          %s589 = ssub.s32 2048, 2048
          %590 = vsyncadd %s584, %s589
          %s591 = smul.addr %s35, 32
          %s592 = smul.addr %s591, 64
          %s593 = scalar_lea.hbm %s10, %s592
          %s594 = sshll.u32 %s587, 4
          %s595 = int_to_ptr.vmem [resolvable:$true] %s594
          %600 = dma.hbm_to_vmem [thread:$0]  %s593, 2048, %s595, %s584, 64, 64, 4
        $region68: #{decoder_forward.1} parent=39 // pred_fallthru
          _
        // Predicated region
        $region69: #{decoder_forward.1} parent=39 // pred_check
          %p601 = pneg %p321
        $region70: #{decoder_forward.1} parent=39 // pred_check_branch
          %603 = sbr.rel (%p601) target = $region72
        $region71: #{decoder_forward.1} parent=39 // pred_region
          %s604 = sand.u32 %s35, 1
          %s605 = scalar_lea.sflag [#allocation19], %s604
          %s606 = sand.u32 %s311, 1
          %s607 = smul.addr %s606, 48
          %s608 = scalar_lea.vmem [#allocation18], %s607
          %s610 = ssub.s32 768, 768
          %611 = vsyncadd %s605, %s610
          %s612 = smul.addr %s35, 6
          %s613 = smul.addr %s612, 128
          %s614 = scalar_lea.hbm %s11, %s613
          %s615 = sshll.u32 %s608, 4
          %s616 = int_to_ptr.vmem [resolvable:$true] %s615
          %621 = dma.hbm_to_vmem [thread:$0]  %s614, 768, %s616, %s605, 384, 384, 24
        $region72: #{decoder_forward.1} parent=39 // pred_fallthru
          _
      $region40: #{decoder_forward.1} parent=5 // pred_fallthru
        _
      %p622 = scmp.le.s32.totalorder 1, %s35
      %p623 = scmp.lt.s32.totalorder %s35, 3
      %p624 = pnand %p622, %p623
      %p625 = pneg %p624
      // Predicated region
      $region73: #{decoder_forward.1} parent=5 // pred_check
        _
      $region74: #{decoder_forward.1} parent=5 // pred_check_branch
        %627 = sbr.rel (%p624) target = $region76
      $region75: #{decoder_forward.1} parent=5 // pred_region
        %s628 = ssub.s32 %s35, 1
        // Predicated region
        $region77: #{decoder_forward.1} parent=75 // pred_check
          %p629 = pneg %p77
        $region78: #{decoder_forward.1} parent=75 // pred_check_branch
          %631 = sbr.rel (%p629) target = $region80
        $region79: #{decoder_forward.1} parent=75 // pred_region
          %632 = dma.done [#allocation4], 256
        $region80: #{decoder_forward.1} parent=75 // pred_fallthru
          _
        // Predicated region
        $region81: #{decoder_forward.1} parent=75 // pred_check
          %p633 = pneg %p98
        $region82: #{decoder_forward.1} parent=75 // pred_check_branch
          %635 = sbr.rel (%p633) target = $region84
        $region83: #{decoder_forward.1} parent=75 // pred_region
          %636 = dma.done [#allocation7], 256
        $region84: #{decoder_forward.1} parent=75 // pred_fallthru
          _
        // Predicated region
        $region85: #{decoder_forward.1} parent=75 // pred_check
          %p637 = pneg %p119
        $region86: #{decoder_forward.1} parent=75 // pred_check_branch
          %639 = sbr.rel (%p637) target = $region88
        $region87: #{decoder_forward.1} parent=75 // pred_region
          %640 = dma.done [#allocation7], 256
        $region88: #{decoder_forward.1} parent=75 // pred_fallthru
          _
        %s641 = sand.u32 %s40, 1
        %s642 = scalar_lea.sflag [#allocation10], %s641
        %s643 = sand.u32 %s132, 1
        %s644 = smul.addr %s643, 192
        %s645 = scalar_lea.vmem [#allocation9], %s644
        // Predicated region
        $region89: #{decoder_forward.1} parent=75 // pred_check
          %p646 = pneg %p145
        $region90: #{decoder_forward.1} parent=75 // pred_check_branch
          %648 = sbr.rel (%p646) target = $region92
        $region91: #{decoder_forward.1} parent=75 // pred_region
          %649 = dma.done %s642, 3072
        $region92: #{decoder_forward.1} parent=75 // pred_fallthru
          _
        %s650 = sand.u32 %s40, 1
        %s651 = scalar_lea.sflag [#allocation10], %s650
        %s652 = sand.u32 %s158, 1
        %s653 = smul.addr %s652, 64
        %s654 = scalar_lea.vmem [#allocation11], %s653
        // Predicated region
        $region93: #{decoder_forward.1} parent=75 // pred_check
          %p655 = pneg %p171
        $region94: #{decoder_forward.1} parent=75 // pred_check_branch
          %657 = sbr.rel (%p655) target = $region96
        $region95: #{decoder_forward.1} parent=75 // pred_region
          %658 = dma.done %s651, 1024
        $region96: #{decoder_forward.1} parent=75 // pred_fallthru
          _
        %s659 = sand.u32 %s40, 1
        %s660 = scalar_lea.sflag [#allocation13], %s659
        %s661 = sand.u32 %s184, 1
        %s662 = smul.addr %s661, 64
        %s663 = scalar_lea.vmem [#allocation12], %s662
        // Predicated region
        $region97: #{decoder_forward.1} parent=75 // pred_check
          %p664 = pneg %p197
        $region98: #{decoder_forward.1} parent=75 // pred_check_branch
          %666 = sbr.rel (%p664) target = $region100
        $region99: #{decoder_forward.1} parent=75 // pred_region
          %667 = dma.done %s660, 1024
        $region100: #{decoder_forward.1} parent=75 // pred_fallthru
          _
        %s668 = sand.u32 %s40, 1
        %s669 = scalar_lea.sflag [#allocation13], %s668
        %s670 = sand.u32 %s236, 1
        %s671 = smul.addr %s670, 64
        %s672 = scalar_lea.vmem [#allocation14], %s671
        // Predicated region
        $region101: #{decoder_forward.1} parent=75 // pred_check
          %p673 = pneg %p249
        $region102: #{decoder_forward.1} parent=75 // pred_check_branch
          %675 = sbr.rel (%p673) target = $region104
        $region103: #{decoder_forward.1} parent=75 // pred_region
          %676 = dma.done %s669, 1024
        $region104: #{decoder_forward.1} parent=75 // pred_fallthru
          _
        %s677 = sand.u32 %s40, 1
        %s678 = scalar_lea.sflag [#allocation16], %s677
        %s679 = sand.u32 %s262, 1
        %s680 = smul.addr %s679, 128
        %s681 = scalar_lea.vmem [#allocation15], %s680
        // Predicated region
        $region105: #{decoder_forward.1} parent=75 // pred_check
          %p682 = pneg %p275
        $region106: #{decoder_forward.1} parent=75 // pred_check_branch
          %684 = sbr.rel (%p682) target = $region108
        $region107: #{decoder_forward.1} parent=75 // pred_region
          %685 = dma.done %s678, 2048
        $region108: #{decoder_forward.1} parent=75 // pred_fallthru
          _
        %s686 = sand.u32 %s40, 1
        %s687 = scalar_lea.sflag [#allocation16], %s686
        %s688 = sand.u32 %s288, 1
        %s689 = smul.addr %s688, 128
        %s690 = scalar_lea.vmem [#allocation17], %s689
        // Predicated region
        $region109: #{decoder_forward.1} parent=75 // pred_check
          %p691 = pneg %p301
        $region110: #{decoder_forward.1} parent=75 // pred_check_branch
          %693 = sbr.rel (%p691) target = $region112
        $region111: #{decoder_forward.1} parent=75 // pred_region
          %694 = dma.done %s687, 2048
        $region112: #{decoder_forward.1} parent=75 // pred_fallthru
          _
        %s695 = sand.u32 %s40, 1
        %s696 = scalar_lea.sflag [#allocation19], %s695
        %s697 = sand.u32 %s314, 1
        %s698 = smul.addr %s697, 48
        %s699 = scalar_lea.vmem [#allocation18], %s698
        // Predicated region
        $region113: #{decoder_forward.1} parent=75 // pred_check
          %p700 = pneg %p327
        $region114: #{decoder_forward.1} parent=75 // pred_check_branch
          %702 = sbr.rel (%p700) target = $region116
        $region115: #{decoder_forward.1} parent=75 // pred_region
          %703 = dma.done %s696, 768
        $region116: #{decoder_forward.1} parent=75 // pred_fallthru
          _
        // Predicated region
        $region117: #{decoder_forward.1} parent=75 // pred_check
          %p704 = pneg %p348
        $region118: #{decoder_forward.1} parent=75 // pred_check_branch
          %706 = sbr.rel (%p704) target = $region120
        $region119: #{decoder_forward.1} parent=75 // pred_region
          %707 = dma.done [#allocation19], 1024
        $region120: #{decoder_forward.1} parent=75 // pred_fallthru
          _
        %p708 = pneg %p56
        %p709 = pneg %p53
        %p710 = pneg %p77
        %p711 = pneg %p74
        %p712 = pneg %p98
        %p713 = pneg %p95
        %p714 = pneg %p119
        %p715 = pneg %p116
        %s716 = sand.u32 %s40, 1
        %s717 = scalar_lea.sflag [#allocation10], %s716
        %s718 = sand.u32 %s132, 1
        %s719 = smul.addr %s718, 192
        %s720 = scalar_lea.vmem [#allocation9], %s719
        %p721 = pneg %p145
        %p722 = pneg %p142
        %s723 = sand.u32 %s40, 1
        %s724 = scalar_lea.sflag [#allocation10], %s723
        %s725 = sand.u32 %s158, 1
        %s726 = smul.addr %s725, 64
        %s727 = scalar_lea.vmem [#allocation11], %s726
        %p728 = pneg %p171
        %p729 = pneg %p168
        %s730 = sand.u32 %s40, 1
        %s731 = scalar_lea.sflag [#allocation13], %s730
        %s732 = sand.u32 %s184, 1
        %s733 = smul.addr %s732, 64
        %s734 = scalar_lea.vmem [#allocation12], %s733
        %p735 = pneg %p197
        %p736 = pneg %p194
        %p737 = scmp.lt.s32.totalorder %s40, 1
        %s738 = scalar_select %p737, %s40, 1
        %s739 = smul.addr %s738, 32
        %s740 = smul.addr %s739, 4
        %s741 = scalar_lea.vmem %s7, %s740
        %p742 = pneg %p223
        %p743 = pneg %p220
        %s744 = sand.u32 %s40, 1
        %s745 = scalar_lea.sflag [#allocation13], %s744
        %s746 = sand.u32 %s236, 1
        %s747 = smul.addr %s746, 64
        %s748 = scalar_lea.vmem [#allocation14], %s747
        %p749 = pneg %p249
        %p750 = pneg %p246
        %s751 = sand.u32 %s40, 1
        %s752 = scalar_lea.sflag [#allocation16], %s751
        %s753 = sand.u32 %s262, 1
        %s754 = smul.addr %s753, 128
        %s755 = scalar_lea.vmem [#allocation15], %s754
        %p756 = pneg %p275
        %p757 = pneg %p272
        %s758 = sand.u32 %s40, 1
        %s759 = scalar_lea.sflag [#allocation16], %s758
        %s760 = sand.u32 %s288, 1
        %s761 = smul.addr %s760, 128
        %s762 = scalar_lea.vmem [#allocation17], %s761
        %p763 = pneg %p301
        %p764 = pneg %p298
        %s765 = sand.u32 %s40, 1
        %s766 = scalar_lea.sflag [#allocation19], %s765
        %s767 = sand.u32 %s314, 1
        %s768 = smul.addr %s767, 48
        %s769 = scalar_lea.vmem [#allocation18], %s768
        %p770 = pneg %p327
        %p771 = pneg %p324
        %p772 = pneg %p348
        %p773 = pneg %p345
        %p774 = pneg %p369
        %p775 = pneg %p366
        %p776 = pneg %p390
        %p777 = pneg %p387
        %p778 = scmp.lt.s32.totalorder %s40, 1
        %s779 = scalar_select %p778, %s40, 1
        %s780 = smul.addr %s779, 32
        %s781 = smul.addr %s780, 4
        %s782 = scalar_lea.vmem %s7, %s781
        %p784 = scmp.eq.s32.totalorder %s40, 0
        // Predicated region
        $region121: #{decoder_forward.1} parent=75 // pred_check
          %p785 = pneg %p784
        $region122: #{decoder_forward.1} parent=75 // pred_check_branch
          %787 = sbr.rel (%p785) target = $region124
        $region123: #{decoder_forward.1} parent=75 // pred_region
          %v788 = vld [vmem:[%s0] sm:$0xff]
          %v789 = vld [vmem:[%s0 + $0x8] sm:$0xff]
          %790 = vst [vmem:[#allocation2] sm:$0xff] %v788
          %791 = vst [vmem:[#allocation2 + $0x8] sm:$0xff] %v789
        $region124: #{decoder_forward.1} parent=75 // pred_fallthru
          _
        %v792 = vld [vmem:[#allocation2] sm:$0xff]
        %v793 = vld [vmem:[#allocation2 + $0x8] sm:$0xff]
        %v794 = vld [vmem:[#allocation3] sm:$0xff]
        %v795 = vld [vmem:[#allocation3 + $0x8] sm:$0xff]
        %v796 = vpack.c.bf16 %v795, %v794
        %v797 = vld [vmem:[#allocation6] sm:$0xff]
        %v798 = vld [vmem:[#allocation6 + $0x8] sm:$0xff]
        %v799 = vld [vmem:[#allocation8] sm:$0xff]
        %v800 = vld [vmem:[#allocation8 + $0x8] sm:$0xff]
        %v801 = vld [vmem:[%s699] sm:$0xff]
        %v802 = vld [vmem:[%s699 + $0x8] sm:$0xff]
        %v803 = vld [vmem:[%s699 + $0x10] sm:$0xff]
        %v804 = vld [vmem:[%s699 + $0x18] sm:$0xff]
        %v805 = vpack.c.bf16 %v793, %v792
        %v806 = vld [vmem:[%s645] sm:$0xff]
        %v807 = vld [vmem:[%s645 + $0x8] sm:$0xf]
        %v808 = vld [vmem:[%s645 + $0xc] sm:$0xff]
        %v809 = vld [vmem:[%s645 + $0x14] sm:$0xf]
        %v810 = vld [vmem:[%s645 + $0x18] sm:$0xff]
        %v811 = vld [vmem:[%s645 + $0x20] sm:$0xf]
        %v812 = vld [vmem:[%s645 + $0x24] sm:$0xff]
        %v813 = vld [vmem:[%s645 + $0x2c] sm:$0xf]
        %v814 = vld [vmem:[%s645 + $0x30] sm:$0xff]
        %v815 = vld [vmem:[%s645 + $0x38] sm:$0xf]
        %v816 = vld [vmem:[%s645 + $0x3c] sm:$0xff]
        %v817 = vld [vmem:[%s645 + $0x44] sm:$0xf]
        %v818 = vld [vmem:[%s645 + $0x48] sm:$0xff]
        %v819 = vld [vmem:[%s645 + $0x50] sm:$0xf]
        %v820 = vld [vmem:[%s645 + $0x54] sm:$0xff]
        %v821 = vld [vmem:[%s645 + $0x5c] sm:$0xf]
        %v822 = vld [vmem:[%s645 + $0x60] sm:$0xff]
        %v823 = vld [vmem:[%s645 + $0x68] sm:$0xf]
        %v824 = vld [vmem:[%s645 + $0x6c] sm:$0xff]
        %v825 = vld [vmem:[%s645 + $0x74] sm:$0xf]
        %v826 = vld [vmem:[%s645 + $0x78] sm:$0xff]
        %v827 = vld [vmem:[%s645 + $0x80] sm:$0xf]
        %v828 = vld [vmem:[%s645 + $0x84] sm:$0xff]
        %v829 = vld [vmem:[%s645 + $0x8c] sm:$0xf]
        %v830 = vld [vmem:[%s645 + $0x90] sm:$0xff]
        %v831 = vld [vmem:[%s645 + $0x98] sm:$0xf]
        %v832 = vld [vmem:[%s645 + $0x9c] sm:$0xff]
        %v833 = vld [vmem:[%s645 + $0xa4] sm:$0xf]
        %v834 = vld [vmem:[%s645 + $0xa8] sm:$0xff]
        %v835 = vld [vmem:[%s645 + $0xb0] sm:$0xf]
        %v836 = vld [vmem:[%s645 + $0xb4] sm:$0xff]
        %v837 = vld [vmem:[%s645 + $0xbc] sm:$0xf]
        %v838 = vlaneseq
        %v839 = vshrl.u32 %v838, 7
        %v840 = vsub.s32 0, %v839
        %v841 = vrot.slane %v801, %v840
        %v842 = vlaneseq
        %v843 = vshrl.u32 %v842, 7
        %v844 = vsub.s32 0, %v843
        %v845 = vrot.slane %v802, %v844
        %v846 = vlaneseq
        %v847 = vshrl.u32 %v846, 7
        %v848 = vsub.s32 0, %v847
        %v849 = vrot.slane %v803, %v848
        %v882 = vunpack.c.l.b16 %v806
        %v883 = vunpack.c.h.b16 %v806
        %v884 = vunpack.c.l.b16 %v807
        %v885 = vunpack.c.l.b16 %v808
        %v886 = vunpack.c.h.b16 %v808
        %v887 = vunpack.c.l.b16 %v809
        %v888 = vunpack.c.l.b16 %v810
        %v889 = vunpack.c.h.b16 %v810
        %v890 = vunpack.c.l.b16 %v811
        %v891 = vunpack.c.l.b16 %v812
        %v892 = vunpack.c.h.b16 %v812
        %v893 = vunpack.c.l.b16 %v813
        %v894 = vunpack.c.l.b16 %v814
        %v895 = vunpack.c.h.b16 %v814
        %v896 = vunpack.c.l.b16 %v815
        %v897 = vunpack.c.l.b16 %v816
        %v898 = vunpack.c.h.b16 %v816
        %v899 = vunpack.c.l.b16 %v817
        %v900 = vunpack.c.l.b16 %v818
        %v901 = vunpack.c.h.b16 %v818
        %v902 = vunpack.c.l.b16 %v819
        %v903 = vunpack.c.l.b16 %v820
        %v904 = vunpack.c.h.b16 %v820
        %v905 = vunpack.c.l.b16 %v821
        %v906 = vunpack.c.l.b16 %v822
        %v907 = vunpack.c.h.b16 %v822
        %v908 = vunpack.c.l.b16 %v823
        %v909 = vunpack.c.l.b16 %v824
        %v910 = vunpack.c.h.b16 %v824
        %v911 = vunpack.c.l.b16 %v825
        %v912 = vunpack.c.l.b16 %v826
        %v913 = vunpack.c.h.b16 %v826
        %v914 = vunpack.c.l.b16 %v827
        %v915 = vunpack.c.l.b16 %v828
        %v916 = vunpack.c.h.b16 %v828
        %v917 = vunpack.c.l.b16 %v829
        %v918 = vunpack.c.l.b16 %v830
        %v919 = vunpack.c.h.b16 %v830
        %v920 = vunpack.c.l.b16 %v831
        %v921 = vunpack.c.l.b16 %v832
        %v922 = vunpack.c.h.b16 %v832
        %v923 = vunpack.c.l.b16 %v833
        %v924 = vunpack.c.l.b16 %v834
        %v925 = vunpack.c.h.b16 %v834
        %v926 = vunpack.c.l.b16 %v835
        %v927 = vunpack.c.l.b16 %v836
        %v928 = vunpack.c.h.b16 %v836
        %v929 = vunpack.c.l.b16 %v837
        %v930 = vpack.c.b16 %v885, %v882
        %v931 = vpack.c.b16 %v886, %v883
        %v932 = vpack.c.b16 %v887, %v884
        %v933 = vpack.c.b16 %v891, %v888
        %v934 = vpack.c.b16 %v892, %v889
        %v935 = vpack.c.b16 %v893, %v890
        %v936 = vpack.c.b16 %v897, %v894
        %v937 = vpack.c.b16 %v898, %v895
        %v938 = vpack.c.b16 %v899, %v896
        %v939 = vpack.c.b16 %v903, %v900
        %v940 = vpack.c.b16 %v904, %v901
        %v941 = vpack.c.b16 %v905, %v902
        %v942 = vpack.c.b16 %v909, %v906
        %v943 = vpack.c.b16 %v910, %v907
        %v944 = vpack.c.b16 %v911, %v908
        %v945 = vpack.c.b16 %v915, %v912
        %v946 = vpack.c.b16 %v916, %v913
        %v947 = vpack.c.b16 %v917, %v914
        %v948 = vpack.c.b16 %v921, %v918
        %v949 = vpack.c.b16 %v922, %v919
        %v950 = vpack.c.b16 %v923, %v920
        %v951 = vpack.c.b16 %v927, %v924
        %v952 = vpack.c.b16 %v928, %v925
        %v953 = vpack.c.b16 %v929, %v926
        %978 = vmatprep.subr.bf16.mxu0 %v931
        %979 = vmatpush1.bf16.msra.mxu0 %v930
        %980 = vmatprep.subr.bf16.mxu0 %v934
        %981 = vmatpush1.bf16.msra.mxu0 %v933
        %982 = vmatprep.subr.bf16.mxu0 %v937
        %983 = vmatpush1.bf16.msra.mxu0 %v936
        %984 = vmatprep.subr.bf16.mxu0 %v940
        %985 = vmatpush1.bf16.msra.mxu0 %v939
        %986 = vmatprep.subr.bf16.mxu0 %v943
        %987 = vmatpush1.bf16.msra.mxu0 %v942
        %988 = vmatprep.subr.bf16.mxu0 %v946
        %989 = vmatpush1.bf16.msra.mxu0 %v945
        %990 = vmatprep.subr.bf16.mxu0 %v949
        %991 = vmatpush1.bf16.msra.mxu0 %v948
        %992 = vmatprep.subr.bf16.mxu0 %v952
        %993 = vmatpush1.bf16.msra.mxu0 %v951
        %994 = vmatprep.subr.bf16.mxu0 0
        %995 = vmatpush1.bf16.msra.mxu0 0
        %996 = vmatprep.subr.bf16.mxu0 0
        %997 = vmatpush1.bf16.msra.mxu0 0
        %998 = vmatprep.subr.bf16.mxu0 0
        %999 = vmatpush1.bf16.msra.mxu0 0
        %1000 = vmatprep.subr.bf16.mxu0 0
        %1001 = vmatpush1.bf16.msra.mxu0 0
        %1002 = vmatprep.subr.bf16.mxu0 0
        %1003 = vmatpush1.bf16.msra.mxu0 0
        %1004 = vmatprep.subr.bf16.mxu0 0
        %1005 = vmatpush1.bf16.msra.mxu0 0
        %1006 = vmatprep.subr.bf16.mxu0 0
        %1007 = vmatpush1.bf16.msra.mxu0 0
        %1008 = vmatprep.subr.bf16.mxu0 0
        %1009 = vmatpush1.bf16.msra.mxu0 0
        %1010 = vmatprep.mubr.bf16.mxu0 0
        %1011 = vmatmul.mubr.bf16.gmra.mrb[0].mxu0 %v805
        %v1012 = vpop.f32.mrb[0].mxu0
        %v1013 = vadd.f32 %v841, %v1012
        %v1014 = vpop.f32.mrb[0].mxu0
        %v1015 = vadd.f32 %v845, %v1014
        %v1016 = vpop.f32.mrb[0].mxu0
        %v1017 = vadd.f32 %v841, %v1016
        %v1018 = vpop.f32.mrb[0].mxu0
        %v1019 = vadd.f32 %v845, %v1018
        %1020 = vdwg.mxu0
        %1021 = vmatprep.subr.bf16.mxu0 0
        %1022 = vmatpush1.bf16.msra.mxu0 %v932
        %1023 = vmatprep.subr.bf16.mxu0 0
        %1024 = vmatpush1.bf16.msra.mxu0 %v935
        %1025 = vmatprep.subr.bf16.mxu0 0
        %1026 = vmatpush1.bf16.msra.mxu0 %v938
        %1027 = vmatprep.subr.bf16.mxu0 0
        %1028 = vmatpush1.bf16.msra.mxu0 %v941
        %1029 = vmatprep.subr.bf16.mxu0 0
        %1030 = vmatpush1.bf16.msra.mxu0 %v944
        %1031 = vmatprep.subr.bf16.mxu0 0
        %1032 = vmatpush1.bf16.msra.mxu0 %v947
        %1033 = vmatprep.subr.bf16.mxu0 0
        %1034 = vmatpush1.bf16.msra.mxu0 %v950
        %1035 = vmatprep.subr.bf16.mxu0 0
        %1036 = vmatpush1.bf16.msra.mxu0 %v953
        %1037 = vmatprep.subr.bf16.mxu0 0
        %1038 = vmatpush1.bf16.msra.mxu0 0
        %1039 = vmatprep.subr.bf16.mxu0 0
        %1040 = vmatpush1.bf16.msra.mxu0 0
        %1041 = vmatprep.subr.bf16.mxu0 0
        %1042 = vmatpush1.bf16.msra.mxu0 0
        %1043 = vmatprep.subr.bf16.mxu0 0
        %1044 = vmatpush1.bf16.msra.mxu0 0
        %1045 = vmatprep.subr.bf16.mxu0 0
        %1046 = vmatpush1.bf16.msra.mxu0 0
        %1047 = vmatprep.subr.bf16.mxu0 0
        %1048 = vmatpush1.bf16.msra.mxu0 0
        %1049 = vmatprep.subr.bf16.mxu0 0
        %1050 = vmatpush1.bf16.msra.mxu0 0
        %1051 = vmatprep.subr.bf16.mxu0 0
        %1052 = vmatpush1.bf16.msra.mxu0 0
        %1053 = vmatprep.mubr.bf16.mxu0 0
        %1054 = vmatmul.mubr.bf16.gmra.mrb[0].mxu0 %v805
        %v1055 = vpop.f32.mrb[0].mxu0
        %v1056 = vadd.f32 %v849, %v1055
        %v1057 = vpop.f32.mrb[0].mxu0
        %v1058 = vpop.f32.mrb[0].mxu0
        %v1059 = vadd.f32 %v849, %v1058
        %v1060 = vpop.f32.mrb[0].mxu0
        %1061 = vdwg.mxu0
        %v1062 = vpack.c.bf16 %v1013, %v1013
        %v1063 = vpack.c.bf16 %v1015, %v1015
        %v1064 = vpack.c.bf16 %v1056, %v1056
        %vm1065 = vcmask 261120
        %v1067 = vsel %vm1065, %v1062, 0
        %v1070 = vsel %vm1065, %v1063, 0
        %1072 = vmatprep.subr.bf16.mxu0 0
        %1073 = vmatpush1.bf16.xpose.msra.mxu0 %v1070
        %1074 = vmatprep.subr.bf16.mxu0 0
        %1075 = vmatpush1.bf16.xpose.msra.mxu0 0
        %1076 = vmatprep.subr.bf16.mxu0 0
        %1077 = vmatpush1.bf16.xpose.msra.mxu0 0
        %1078 = vmatprep.subr.bf16.mxu0 0
        %1079 = vmatpush1.bf16.xpose.msra.mxu0 0
        %1080 = vmatprep.subr.bf16.mxu0 0
        %1081 = vmatpush1.bf16.xpose.msra.mxu0 0
        %1082 = vmatprep.subr.bf16.mxu0 0
        %1083 = vmatpush1.bf16.xpose.msra.mxu0 0
        %1084 = vmatprep.subr.bf16.mxu0 0
        %1085 = vmatpush1.bf16.xpose.msra.mxu0 0
        %1086 = vmatprep.subr.bf16.mxu0 0
        %1087 = vmatpush1.bf16.xpose.msra.mxu0 0
        %1088 = vmatprep.subr.bf16.mxu0 0
        %1089 = vmatpush1.bf16.xpose.msra.mxu0 0
        %1090 = vmatprep.subr.bf16.mxu0 0
        %1091 = vmatpush1.bf16.xpose.msra.mxu0 0
        %1092 = vmatprep.subr.bf16.mxu0 0
        %1093 = vmatpush1.bf16.xpose.msra.mxu0 0
        %1094 = vmatprep.subr.bf16.mxu0 0
        %1095 = vmatpush1.bf16.xpose.msra.mxu0 0
        %1096 = vmatprep.subr.bf16.mxu0 0
        %1097 = vmatpush1.bf16.xpose.msra.mxu0 0
        %1098 = vmatprep.subr.bf16.mxu0 0
        %1099 = vmatpush1.bf16.xpose.msra.mxu0 0
        %1100 = vmatprep.subr.bf16.mxu0 0
        %1101 = vmatpush1.bf16.xpose.msra.mxu0 0
        %1102 = vmatprep.subr.bf16.mxu0 0
        %1103 = vmatpush1.bf16.xpose.msra.mxu0 0
        %1104 = vmatprep.mubr.bf16.mxu0 0
        %1105 = vmatmul.mubr.bf16.gmra.mrb[0].mxu0 %v1067
        %v1106 = vpop.f32.mrb[0].mxu0
        %v1107 = vadd.f32 0.0, %v1106
        %v1108 = vpop.f32.mrb[0].mxu0
        %v1109 = vpop.f32.mrb[0].mxu0
        %v1110 = vpop.f32.mrb[0].mxu0
        %1111 = vdwg.mxu0
        %v1112 = vmul.f32 %v1107, 0.17677669
        %vm1113 = vcmp.eq.f32.partialorder %v797, 0.0
        %v1114 = vsel %vm1113, -10000.0, %v1112
        %vm1115 = vcmask 64512
        %v1116 = vsel %vm1115, %v1114, -inf
        %1117 = vmax.xlane.f32.xlu0 %v1116
        %v1118 = vpop.xlane.xlu0 %1117
        %v1119 = vsub.f32 %v1114, %v1118
        %v1120 = vmul.f32 %v1119, 1.442695
        %v1121 = vpow.pop %v1120
        %v1122 = vsel %vm1115, %v1121, 0.0
        %1123 = vadd.xlane.f32.xlu0 %v1122
        %v1124 = vpop.xlane.xlu0 %1123
        %v1125 = vrcp.pop %v1124
        %v1126 = vmul.f32 %v1121, %v1125
        %v1127 = vpack.c.bf16 %v1126, %v1126
        %v1129 = vsel %vm1115, %v1127, 0
        %vm1131 = vcmask 1043456
        %v1133 = vsel %vm1131, %v1064, 0
        %1135 = vmatprep.subr.bf16.mxu0 0
        %1136 = vmatpush1.bf16.msra.mxu0 %v1133
        %1137 = vmatprep.subr.bf16.mxu0 0
        %1138 = vmatpush1.bf16.msra.mxu0 0
        %1139 = vmatprep.subr.bf16.mxu0 0
        %1140 = vmatpush1.bf16.msra.mxu0 0
        %1141 = vmatprep.subr.bf16.mxu0 0
        %1142 = vmatpush1.bf16.msra.mxu0 0
        %1143 = vmatprep.subr.bf16.mxu0 0
        %1144 = vmatpush1.bf16.msra.mxu0 0
        %1145 = vmatprep.subr.bf16.mxu0 0
        %1146 = vmatpush1.bf16.msra.mxu0 0
        %1147 = vmatprep.subr.bf16.mxu0 0
        %1148 = vmatpush1.bf16.msra.mxu0 0
        %1149 = vmatprep.subr.bf16.mxu0 0
        %1150 = vmatpush1.bf16.msra.mxu0 0
        %1151 = vmatprep.subr.bf16.mxu0 0
        %1152 = vmatpush1.bf16.msra.mxu0 0
        %1153 = vmatprep.subr.bf16.mxu0 0
        %1154 = vmatpush1.bf16.msra.mxu0 0
        %1155 = vmatprep.subr.bf16.mxu0 0
        %1156 = vmatpush1.bf16.msra.mxu0 0
        %1157 = vmatprep.subr.bf16.mxu0 0
        %1158 = vmatpush1.bf16.msra.mxu0 0
        %1159 = vmatprep.subr.bf16.mxu0 0
        %1160 = vmatpush1.bf16.msra.mxu0 0
        %1161 = vmatprep.subr.bf16.mxu0 0
        %1162 = vmatpush1.bf16.msra.mxu0 0
        %1163 = vmatprep.subr.bf16.mxu0 0
        %1164 = vmatpush1.bf16.msra.mxu0 0
        %1165 = vmatprep.subr.bf16.mxu0 0
        %1166 = vmatpush1.bf16.msra.mxu0 0
        %1167 = vmatprep.mubr.bf16.mxu0 0
        %1168 = vmatmul.mubr.bf16.gmra.mrb[0].mxu0 %v1129
        %v1169 = vpop.f32.mrb[0].mxu0
        %v1170 = vadd.f32 0.0, %v1169
        %v1171 = vpop.f32.mrb[0].mxu0
        %v1172 = vpop.f32.mrb[0].mxu0
        %v1173 = vpop.f32.mrb[0].mxu0
        %1174 = vdwg.mxu0
        %1176 = vrot.lane.b32.xlu0 %v1062, 96
        %v1177 = vpop.permute.xlu0 %1176
        %1179 = vrot.lane.b32.xlu0 %v1063, 96
        %v1180 = vpop.permute.xlu0 %1179
        %v1182 = vsel %vm1065, %v1177, 0
        %v1185 = vsel %vm1065, %v1180, 0
        %1187 = vmatprep.subr.bf16.mxu0 0
        %1188 = vmatpush1.bf16.xpose.msra.mxu0 %v1185
        %1189 = vmatprep.subr.bf16.mxu0 0
        %1190 = vmatpush1.bf16.xpose.msra.mxu0 0
        %1191 = vmatprep.subr.bf16.mxu0 0
        %1192 = vmatpush1.bf16.xpose.msra.mxu0 0
        %1193 = vmatprep.subr.bf16.mxu0 0
        %1194 = vmatpush1.bf16.xpose.msra.mxu0 0
        %1195 = vmatprep.subr.bf16.mxu0 0
        %1196 = vmatpush1.bf16.xpose.msra.mxu0 0
        %1197 = vmatprep.subr.bf16.mxu0 0
        %1198 = vmatpush1.bf16.xpose.msra.mxu0 0
        %1199 = vmatprep.subr.bf16.mxu0 0
        %1200 = vmatpush1.bf16.xpose.msra.mxu0 0
        %1201 = vmatprep.subr.bf16.mxu0 0
        %1202 = vmatpush1.bf16.xpose.msra.mxu0 0
        %1203 = vmatprep.subr.bf16.mxu0 0
        %1204 = vmatpush1.bf16.xpose.msra.mxu0 0
        %1205 = vmatprep.subr.bf16.mxu0 0
        %1206 = vmatpush1.bf16.xpose.msra.mxu0 0
        %1207 = vmatprep.subr.bf16.mxu0 0
        %1208 = vmatpush1.bf16.xpose.msra.mxu0 0
        %1209 = vmatprep.subr.bf16.mxu0 0
        %1210 = vmatpush1.bf16.xpose.msra.mxu0 0
        %1211 = vmatprep.subr.bf16.mxu0 0
        %1212 = vmatpush1.bf16.xpose.msra.mxu0 0
        %1213 = vmatprep.subr.bf16.mxu0 0
        %1214 = vmatpush1.bf16.xpose.msra.mxu0 0
        %1215 = vmatprep.subr.bf16.mxu0 0
        %1216 = vmatpush1.bf16.xpose.msra.mxu0 0
        %1217 = vmatprep.subr.bf16.mxu0 0
        %1218 = vmatpush1.bf16.xpose.msra.mxu0 0
        %1219 = vmatprep.mubr.bf16.mxu0 0
        %1220 = vmatmul.mubr.bf16.gmra.mrb[0].mxu0 %v1182
        %v1221 = vpop.f32.mrb[0].mxu0
        %v1222 = vadd.f32 0.0, %v1221
        %v1223 = vpop.f32.mrb[0].mxu0
        %v1224 = vpop.f32.mrb[0].mxu0
        %v1225 = vpop.f32.mrb[0].mxu0
        %1226 = vdwg.mxu0
        %v1227 = vmul.f32 %v1222, 0.17677669
        %v1228 = vsel %vm1113, -10000.0, %v1227
        %v1229 = vsel %vm1115, %v1228, -inf
        %1230 = vmax.xlane.f32.xlu0 %v1229
        %v1231 = vpop.xlane.xlu0 %1230
        %v1232 = vsub.f32 %v1228, %v1231
        %v1233 = vmul.f32 %v1232, 1.442695
        %v1234 = vpow.pop %v1233
        %v1235 = vsel %vm1115, %v1234, 0.0
        %1236 = vadd.xlane.f32.xlu0 %v1235
        %v1237 = vpop.xlane.xlu0 %1236
        %v1238 = vrcp.pop %v1237
        %v1239 = vmul.f32 %v1234, %v1238
        %v1240 = vpack.c.bf16 %v1239, %v1239
        %1242 = vrot.lane.b32.xlu0 %v1064, 96
        %v1243 = vpop.permute.xlu0 %1242
        %v1245 = vsel %vm1115, %v1240, 0
        %v1248 = vsel %vm1131, %v1243, 0
        %1250 = vmatprep.subr.bf16.mxu0 0
        %1251 = vmatpush1.bf16.msra.mxu0 %v1248
        %1252 = vmatprep.subr.bf16.mxu0 0
        %1253 = vmatpush1.bf16.msra.mxu0 0
        %1254 = vmatprep.subr.bf16.mxu0 0
        %1255 = vmatpush1.bf16.msra.mxu0 0
        %1256 = vmatprep.subr.bf16.mxu0 0
        %1257 = vmatpush1.bf16.msra.mxu0 0
        %1258 = vmatprep.subr.bf16.mxu0 0
        %1259 = vmatpush1.bf16.msra.mxu0 0
        %1260 = vmatprep.subr.bf16.mxu0 0
        %1261 = vmatpush1.bf16.msra.mxu0 0
        %1262 = vmatprep.subr.bf16.mxu0 0
        %1263 = vmatpush1.bf16.msra.mxu0 0
        %1264 = vmatprep.subr.bf16.mxu0 0
        %1265 = vmatpush1.bf16.msra.mxu0 0
        %1266 = vmatprep.subr.bf16.mxu0 0
        %1267 = vmatpush1.bf16.msra.mxu0 0
        %1268 = vmatprep.subr.bf16.mxu0 0
        %1269 = vmatpush1.bf16.msra.mxu0 0
        %1270 = vmatprep.subr.bf16.mxu0 0
        %1271 = vmatpush1.bf16.msra.mxu0 0
        %1272 = vmatprep.subr.bf16.mxu0 0
        %1273 = vmatpush1.bf16.msra.mxu0 0
        %1274 = vmatprep.subr.bf16.mxu0 0
        %1275 = vmatpush1.bf16.msra.mxu0 0
        %1276 = vmatprep.subr.bf16.mxu0 0
        %1277 = vmatpush1.bf16.msra.mxu0 0
        %1278 = vmatprep.subr.bf16.mxu0 0
        %1279 = vmatpush1.bf16.msra.mxu0 0
        %1280 = vmatprep.subr.bf16.mxu0 0
        %1281 = vmatpush1.bf16.msra.mxu0 0
        %1282 = vmatprep.mubr.bf16.mxu0 0
        %1283 = vmatmul.mubr.bf16.gmra.mrb[0].mxu0 %v1245
        %v1284 = vpop.f32.mrb[0].mxu0
        %v1285 = vadd.f32 0.0, %v1284
        %v1286 = vpop.f32.mrb[0].mxu0
        %v1287 = vpop.f32.mrb[0].mxu0
        %v1288 = vpop.f32.mrb[0].mxu0
        %1289 = vdwg.mxu0
        %1290 = vrot.lane.b32.xlu0 %v1062, 64
        %v1291 = vpop.permute.xlu0 %1290
        %1292 = vrot.lane.b32.xlu0 %v1063, 64
        %v1293 = vpop.permute.xlu0 %1292
        %v1295 = vsel %vm1065, %v1291, 0
        %v1298 = vsel %vm1065, %v1293, 0
        %1300 = vmatprep.subr.bf16.mxu0 0
        %1301 = vmatpush1.bf16.xpose.msra.mxu0 %v1298
        %1302 = vmatprep.subr.bf16.mxu0 0
        %1303 = vmatpush1.bf16.xpose.msra.mxu0 0
        %1304 = vmatprep.subr.bf16.mxu0 0
        %1305 = vmatpush1.bf16.xpose.msra.mxu0 0
        %1306 = vmatprep.subr.bf16.mxu0 0
        %1307 = vmatpush1.bf16.xpose.msra.mxu0 0
        %1308 = vmatprep.subr.bf16.mxu0 0
        %1309 = vmatpush1.bf16.xpose.msra.mxu0 0
        %1310 = vmatprep.subr.bf16.mxu0 0
        %1311 = vmatpush1.bf16.xpose.msra.mxu0 0
        %1312 = vmatprep.subr.bf16.mxu0 0
        %1313 = vmatpush1.bf16.xpose.msra.mxu0 0
        %1314 = vmatprep.subr.bf16.mxu0 0
        %1315 = vmatpush1.bf16.xpose.msra.mxu0 0
        %1316 = vmatprep.subr.bf16.mxu0 0
        %1317 = vmatpush1.bf16.xpose.msra.mxu0 0
        %1318 = vmatprep.subr.bf16.mxu0 0
        %1319 = vmatpush1.bf16.xpose.msra.mxu0 0
        %1320 = vmatprep.subr.bf16.mxu0 0
        %1321 = vmatpush1.bf16.xpose.msra.mxu0 0
        %1322 = vmatprep.subr.bf16.mxu0 0
        %1323 = vmatpush1.bf16.xpose.msra.mxu0 0
        %1324 = vmatprep.subr.bf16.mxu0 0
        %1325 = vmatpush1.bf16.xpose.msra.mxu0 0
        %1326 = vmatprep.subr.bf16.mxu0 0
        %1327 = vmatpush1.bf16.xpose.msra.mxu0 0
        %1328 = vmatprep.subr.bf16.mxu0 0
        %1329 = vmatpush1.bf16.xpose.msra.mxu0 0
        %1330 = vmatprep.subr.bf16.mxu0 0
        %1331 = vmatpush1.bf16.xpose.msra.mxu0 0
        %1332 = vmatprep.mubr.bf16.mxu0 0
        %1333 = vmatmul.mubr.bf16.gmra.mrb[0].mxu0 %v1295
        %v1334 = vpop.f32.mrb[0].mxu0
        %v1335 = vadd.f32 0.0, %v1334
        %v1336 = vpop.f32.mrb[0].mxu0
        %v1337 = vpop.f32.mrb[0].mxu0
        %v1338 = vpop.f32.mrb[0].mxu0
        %1339 = vdwg.mxu0
        %v1340 = vmul.f32 %v1335, 0.17677669
        %v1341 = vsel %vm1113, -10000.0, %v1340
        %v1342 = vsel %vm1115, %v1341, -inf
        %1343 = vmax.xlane.f32.xlu0 %v1342
        %v1344 = vpop.xlane.xlu0 %1343
        %v1345 = vsub.f32 %v1341, %v1344
        %v1346 = vmul.f32 %v1345, 1.442695
        %v1347 = vpow.pop %v1346
        %v1348 = vsel %vm1115, %v1347, 0.0
        %1349 = vadd.xlane.f32.xlu0 %v1348
        %v1350 = vpop.xlane.xlu0 %1349
        %v1351 = vrcp.pop %v1350
        %v1352 = vmul.f32 %v1347, %v1351
        %v1353 = vpack.c.bf16 %v1352, %v1352
        %1354 = vrot.lane.b32.xlu0 %v1064, 64
        %v1355 = vpop.permute.xlu0 %1354
        %v1357 = vsel %vm1115, %v1353, 0
        %v1360 = vsel %vm1131, %v1355, 0
        %1362 = vmatprep.subr.bf16.mxu0 0
        %1363 = vmatpush1.bf16.msra.mxu0 %v1360
        %1364 = vmatprep.subr.bf16.mxu0 0
        %1365 = vmatpush1.bf16.msra.mxu0 0
        %1366 = vmatprep.subr.bf16.mxu0 0
        %1367 = vmatpush1.bf16.msra.mxu0 0
        %1368 = vmatprep.subr.bf16.mxu0 0
        %1369 = vmatpush1.bf16.msra.mxu0 0
        %1370 = vmatprep.subr.bf16.mxu0 0
        %1371 = vmatpush1.bf16.msra.mxu0 0
        %1372 = vmatprep.subr.bf16.mxu0 0
        %1373 = vmatpush1.bf16.msra.mxu0 0
        %1374 = vmatprep.subr.bf16.mxu0 0
        %1375 = vmatpush1.bf16.msra.mxu0 0
        %1376 = vmatprep.subr.bf16.mxu0 0
        %1377 = vmatpush1.bf16.msra.mxu0 0
        %1378 = vmatprep.subr.bf16.mxu0 0
        %1379 = vmatpush1.bf16.msra.mxu0 0
        %1380 = vmatprep.subr.bf16.mxu0 0
        %1381 = vmatpush1.bf16.msra.mxu0 0
        %1382 = vmatprep.subr.bf16.mxu0 0
        %1383 = vmatpush1.bf16.msra.mxu0 0
        %1384 = vmatprep.subr.bf16.mxu0 0
        %1385 = vmatpush1.bf16.msra.mxu0 0
        %1386 = vmatprep.subr.bf16.mxu0 0
        %1387 = vmatpush1.bf16.msra.mxu0 0
        %1388 = vmatprep.subr.bf16.mxu0 0
        %1389 = vmatpush1.bf16.msra.mxu0 0
        %1390 = vmatprep.subr.bf16.mxu0 0
        %1391 = vmatpush1.bf16.msra.mxu0 0
        %1392 = vmatprep.subr.bf16.mxu0 0
        %1393 = vmatpush1.bf16.msra.mxu0 0
        %1394 = vmatprep.mubr.bf16.mxu0 0
        %1395 = vmatmul.mubr.bf16.gmra.mrb[0].mxu0 %v1357
        %v1396 = vpop.f32.mrb[0].mxu0
        %v1397 = vadd.f32 0.0, %v1396
        %v1398 = vpop.f32.mrb[0].mxu0
        %v1399 = vpop.f32.mrb[0].mxu0
        %v1400 = vpop.f32.mrb[0].mxu0
        %1401 = vdwg.mxu0
        %1402 = vrot.lane.b32.xlu0 %v1062, 32
        %v1403 = vpop.permute.xlu0 %1402
        %1404 = vrot.lane.b32.xlu0 %v1063, 32
        %v1405 = vpop.permute.xlu0 %1404
        %v1407 = vsel %vm1065, %v1403, 0
        %v1410 = vsel %vm1065, %v1405, 0
        %1412 = vmatprep.subr.bf16.mxu0 0
        %1413 = vmatpush1.bf16.xpose.msra.mxu0 %v1410
        %1414 = vmatprep.subr.bf16.mxu0 0
        %1415 = vmatpush1.bf16.xpose.msra.mxu0 0
        %1416 = vmatprep.subr.bf16.mxu0 0
        %1417 = vmatpush1.bf16.xpose.msra.mxu0 0
        %1418 = vmatprep.subr.bf16.mxu0 0
        %1419 = vmatpush1.bf16.xpose.msra.mxu0 0
        %1420 = vmatprep.subr.bf16.mxu0 0
        %1421 = vmatpush1.bf16.xpose.msra.mxu0 0
        %1422 = vmatprep.subr.bf16.mxu0 0
        %1423 = vmatpush1.bf16.xpose.msra.mxu0 0
        %1424 = vmatprep.subr.bf16.mxu0 0
        %1425 = vmatpush1.bf16.xpose.msra.mxu0 0
        %1426 = vmatprep.subr.bf16.mxu0 0
        %1427 = vmatpush1.bf16.xpose.msra.mxu0 0
        %1428 = vmatprep.subr.bf16.mxu0 0
        %1429 = vmatpush1.bf16.xpose.msra.mxu0 0
        %1430 = vmatprep.subr.bf16.mxu0 0
        %1431 = vmatpush1.bf16.xpose.msra.mxu0 0
        %1432 = vmatprep.subr.bf16.mxu0 0
        %1433 = vmatpush1.bf16.xpose.msra.mxu0 0
        %1434 = vmatprep.subr.bf16.mxu0 0
        %1435 = vmatpush1.bf16.xpose.msra.mxu0 0
        %1436 = vmatprep.subr.bf16.mxu0 0
        %1437 = vmatpush1.bf16.xpose.msra.mxu0 0
        %1438 = vmatprep.subr.bf16.mxu0 0
        %1439 = vmatpush1.bf16.xpose.msra.mxu0 0
        %1440 = vmatprep.subr.bf16.mxu0 0
        %1441 = vmatpush1.bf16.xpose.msra.mxu0 0
        %1442 = vmatprep.subr.bf16.mxu0 0
        %1443 = vmatpush1.bf16.xpose.msra.mxu0 0
        %1444 = vmatprep.mubr.bf16.mxu0 0
        %1445 = vmatmul.mubr.bf16.gmra.mrb[0].mxu0 %v1407
        %v1446 = vpop.f32.mrb[0].mxu0
        %v1447 = vadd.f32 0.0, %v1446
        %v1448 = vpop.f32.mrb[0].mxu0
        %v1449 = vpop.f32.mrb[0].mxu0
        %v1450 = vpop.f32.mrb[0].mxu0
        %1451 = vdwg.mxu0
        %v1452 = vmul.f32 %v1447, 0.17677669
        %v1453 = vsel %vm1113, -10000.0, %v1452
        %v1454 = vsel %vm1115, %v1453, -inf
        %1455 = vmax.xlane.f32.xlu0 %v1454
        %v1456 = vpop.xlane.xlu0 %1455
        %v1457 = vsub.f32 %v1453, %v1456
        %v1458 = vmul.f32 %v1457, 1.442695
        %v1459 = vpow.pop %v1458
        %v1460 = vsel %vm1115, %v1459, 0.0
        %1461 = vadd.xlane.f32.xlu0 %v1460
        %v1462 = vpop.xlane.xlu0 %1461
        %v1463 = vrcp.pop %v1462
        %v1464 = vmul.f32 %v1459, %v1463
        %v1465 = vpack.c.bf16 %v1464, %v1464
        %1466 = vrot.lane.b32.xlu0 %v1064, 32
        %v1467 = vpop.permute.xlu0 %1466
        %v1469 = vsel %vm1115, %v1465, 0
        %v1472 = vsel %vm1131, %v1467, 0
        %1474 = vmatprep.subr.bf16.mxu0 0
        %1475 = vmatpush1.bf16.msra.mxu0 %v1472
        %1476 = vmatprep.subr.bf16.mxu0 0
        %1477 = vmatpush1.bf16.msra.mxu0 0
        %1478 = vmatprep.subr.bf16.mxu0 0
        %1479 = vmatpush1.bf16.msra.mxu0 0
        %1480 = vmatprep.subr.bf16.mxu0 0
        %1481 = vmatpush1.bf16.msra.mxu0 0
        %1482 = vmatprep.subr.bf16.mxu0 0
        %1483 = vmatpush1.bf16.msra.mxu0 0
        %1484 = vmatprep.subr.bf16.mxu0 0
        %1485 = vmatpush1.bf16.msra.mxu0 0
        %1486 = vmatprep.subr.bf16.mxu0 0
        %1487 = vmatpush1.bf16.msra.mxu0 0
        %1488 = vmatprep.subr.bf16.mxu0 0
        %1489 = vmatpush1.bf16.msra.mxu0 0
        %1490 = vmatprep.subr.bf16.mxu0 0
        %1491 = vmatpush1.bf16.msra.mxu0 0
        %1492 = vmatprep.subr.bf16.mxu0 0
        %1493 = vmatpush1.bf16.msra.mxu0 0
        %1494 = vmatprep.subr.bf16.mxu0 0
        %1495 = vmatpush1.bf16.msra.mxu0 0
        %1496 = vmatprep.subr.bf16.mxu0 0
        %1497 = vmatpush1.bf16.msra.mxu0 0
        %1498 = vmatprep.subr.bf16.mxu0 0
        %1499 = vmatpush1.bf16.msra.mxu0 0
        %1500 = vmatprep.subr.bf16.mxu0 0
        %1501 = vmatpush1.bf16.msra.mxu0 0
        %1502 = vmatprep.subr.bf16.mxu0 0
        %1503 = vmatpush1.bf16.msra.mxu0 0
        %1504 = vmatprep.subr.bf16.mxu0 0
        %1505 = vmatpush1.bf16.msra.mxu0 0
        %1506 = vmatprep.mubr.bf16.mxu0 0
        %1507 = vmatmul.mubr.bf16.gmra.mrb[0].mxu0 %v1469
        %v1508 = vpop.f32.mrb[0].mxu0
        %v1509 = vadd.f32 0.0, %v1508
        %v1510 = vpop.f32.mrb[0].mxu0
        %v1511 = vpop.f32.mrb[0].mxu0
        %v1512 = vpop.f32.mrb[0].mxu0
        %1513 = vdwg.mxu0
        %1515 = vrot.lane.b32.xlu0 %v1285, 32
        %v1516 = vpop.permute.xlu0 %1515
        %1519 = vrot.lane.b32.xlu0 %v1397, 64
        %v1520 = vpop.permute.xlu0 %1519
        %1523 = vrot.lane.b32.xlu0 %v1509, 96
        %v1524 = vpop.permute.xlu0 %1523
        %v1526 = vsel %vm1065, %v1170, %v1516
        %vm1527 = vcmask 523264
        %v1528 = vsel %vm1527, %v1526, %v1520
        %vm1529 = vcmask 785408
        %v1530 = vsel %vm1529, %v1528, %v1524
        %v1531 = vpack.c.bf16 %v1017, %v1017
        %v1532 = vpack.c.bf16 %v1019, %v1019
        %v1533 = vpack.c.bf16 %v1059, %v1059
        %v1535 = vsel %vm1065, %v1531, 0
        %v1538 = vsel %vm1065, %v1532, 0
        %1540 = vmatprep.subr.bf16.mxu0 0
        %1541 = vmatpush1.bf16.xpose.msra.mxu0 %v1538
        %1542 = vmatprep.subr.bf16.mxu0 0
        %1543 = vmatpush1.bf16.xpose.msra.mxu0 0
        %1544 = vmatprep.subr.bf16.mxu0 0
        %1545 = vmatpush1.bf16.xpose.msra.mxu0 0
        %1546 = vmatprep.subr.bf16.mxu0 0
        %1547 = vmatpush1.bf16.xpose.msra.mxu0 0
        %1548 = vmatprep.subr.bf16.mxu0 0
        %1549 = vmatpush1.bf16.xpose.msra.mxu0 0
        %1550 = vmatprep.subr.bf16.mxu0 0
        %1551 = vmatpush1.bf16.xpose.msra.mxu0 0
        %1552 = vmatprep.subr.bf16.mxu0 0
        %1553 = vmatpush1.bf16.xpose.msra.mxu0 0
        %1554 = vmatprep.subr.bf16.mxu0 0
        %1555 = vmatpush1.bf16.xpose.msra.mxu0 0
        %1556 = vmatprep.subr.bf16.mxu0 0
        %1557 = vmatpush1.bf16.xpose.msra.mxu0 0
        %1558 = vmatprep.subr.bf16.mxu0 0
        %1559 = vmatpush1.bf16.xpose.msra.mxu0 0
        %1560 = vmatprep.subr.bf16.mxu0 0
        %1561 = vmatpush1.bf16.xpose.msra.mxu0 0
        %1562 = vmatprep.subr.bf16.mxu0 0
        %1563 = vmatpush1.bf16.xpose.msra.mxu0 0
        %1564 = vmatprep.subr.bf16.mxu0 0
        %1565 = vmatpush1.bf16.xpose.msra.mxu0 0
        %1566 = vmatprep.subr.bf16.mxu0 0
        %1567 = vmatpush1.bf16.xpose.msra.mxu0 0
        %1568 = vmatprep.subr.bf16.mxu0 0
        %1569 = vmatpush1.bf16.xpose.msra.mxu0 0
        %1570 = vmatprep.subr.bf16.mxu0 0
        %1571 = vmatpush1.bf16.xpose.msra.mxu0 0
        %1572 = vmatprep.mubr.bf16.mxu0 0
        %1573 = vmatmul.mubr.bf16.gmra.mrb[0].mxu0 %v1535
        %v1574 = vpop.f32.mrb[0].mxu0
        %v1575 = vadd.f32 0.0, %v1574
        %v1576 = vpop.f32.mrb[0].mxu0
        %v1577 = vpop.f32.mrb[0].mxu0
        %v1578 = vpop.f32.mrb[0].mxu0
        %1579 = vdwg.mxu0
        %v1580 = vmul.f32 %v1575, 0.17677669
        %vm1581 = vcmp.eq.f32.partialorder %v798, 0.0
        %v1582 = vsel %vm1581, -10000.0, %v1580
        %v1583 = vsel %vm1115, %v1582, -inf
        %1584 = vmax.xlane.f32.xlu0 %v1583
        %v1585 = vpop.xlane.xlu0 %1584
        %v1586 = vsub.f32 %v1582, %v1585
        %v1587 = vmul.f32 %v1586, 1.442695
        %v1588 = vpow.pop %v1587
        %v1589 = vsel %vm1115, %v1588, 0.0
        %1590 = vadd.xlane.f32.xlu0 %v1589
        %v1591 = vpop.xlane.xlu0 %1590
        %v1592 = vrcp.pop %v1591
        %v1593 = vmul.f32 %v1588, %v1592
        %v1594 = vpack.c.bf16 %v1593, %v1593
        %v1596 = vsel %vm1115, %v1594, 0
        %v1599 = vsel %vm1131, %v1533, 0
        %1601 = vmatprep.subr.bf16.mxu0 0
        %1602 = vmatpush1.bf16.msra.mxu0 %v1599
        %1603 = vmatprep.subr.bf16.mxu0 0
        %1604 = vmatpush1.bf16.msra.mxu0 0
        %1605 = vmatprep.subr.bf16.mxu0 0
        %1606 = vmatpush1.bf16.msra.mxu0 0
        %1607 = vmatprep.subr.bf16.mxu0 0
        %1608 = vmatpush1.bf16.msra.mxu0 0
        %1609 = vmatprep.subr.bf16.mxu0 0
        %1610 = vmatpush1.bf16.msra.mxu0 0
        %1611 = vmatprep.subr.bf16.mxu0 0
        %1612 = vmatpush1.bf16.msra.mxu0 0
        %1613 = vmatprep.subr.bf16.mxu0 0
        %1614 = vmatpush1.bf16.msra.mxu0 0
        %1615 = vmatprep.subr.bf16.mxu0 0
        %1616 = vmatpush1.bf16.msra.mxu0 0
        %1617 = vmatprep.subr.bf16.mxu0 0
        %1618 = vmatpush1.bf16.msra.mxu0 0
        %1619 = vmatprep.subr.bf16.mxu0 0
        %1620 = vmatpush1.bf16.msra.mxu0 0
        %1621 = vmatprep.subr.bf16.mxu0 0
        %1622 = vmatpush1.bf16.msra.mxu0 0
        %1623 = vmatprep.subr.bf16.mxu0 0
        %1624 = vmatpush1.bf16.msra.mxu0 0
        %1625 = vmatprep.subr.bf16.mxu0 0
        %1626 = vmatpush1.bf16.msra.mxu0 0
        %1627 = vmatprep.subr.bf16.mxu0 0
        %1628 = vmatpush1.bf16.msra.mxu0 0
        %1629 = vmatprep.subr.bf16.mxu0 0
        %1630 = vmatpush1.bf16.msra.mxu0 0
        %1631 = vmatprep.subr.bf16.mxu0 0
        %1632 = vmatpush1.bf16.msra.mxu0 0
        %1633 = vmatprep.mubr.bf16.mxu0 0
        %1634 = vmatmul.mubr.bf16.gmra.mrb[0].mxu0 %v1596
        %v1635 = vpop.f32.mrb[0].mxu0
        %v1636 = vadd.f32 0.0, %v1635
        %v1637 = vpop.f32.mrb[0].mxu0
        %v1638 = vpop.f32.mrb[0].mxu0
        %v1639 = vpop.f32.mrb[0].mxu0
        %1640 = vdwg.mxu0
        %1642 = vrot.lane.b32.xlu0 %v1531, 96
        %v1643 = vpop.permute.xlu0 %1642
        %1645 = vrot.lane.b32.xlu0 %v1532, 96
        %v1646 = vpop.permute.xlu0 %1645
        %v1648 = vsel %vm1065, %v1643, 0
        %v1651 = vsel %vm1065, %v1646, 0
        %1653 = vmatprep.subr.bf16.mxu0 0
        %1654 = vmatpush1.bf16.xpose.msra.mxu0 %v1651
        %1655 = vmatprep.subr.bf16.mxu0 0
        %1656 = vmatpush1.bf16.xpose.msra.mxu0 0
        %1657 = vmatprep.subr.bf16.mxu0 0
        %1658 = vmatpush1.bf16.xpose.msra.mxu0 0
        %1659 = vmatprep.subr.bf16.mxu0 0
        %1660 = vmatpush1.bf16.xpose.msra.mxu0 0
        %1661 = vmatprep.subr.bf16.mxu0 0
        %1662 = vmatpush1.bf16.xpose.msra.mxu0 0
        %1663 = vmatprep.subr.bf16.mxu0 0
        %1664 = vmatpush1.bf16.xpose.msra.mxu0 0
        %1665 = vmatprep.subr.bf16.mxu0 0
        %1666 = vmatpush1.bf16.xpose.msra.mxu0 0
        %1667 = vmatprep.subr.bf16.mxu0 0
        %1668 = vmatpush1.bf16.xpose.msra.mxu0 0
        %1669 = vmatprep.subr.bf16.mxu0 0
        %1670 = vmatpush1.bf16.xpose.msra.mxu0 0
        %1671 = vmatprep.subr.bf16.mxu0 0
        %1672 = vmatpush1.bf16.xpose.msra.mxu0 0
        %1673 = vmatprep.subr.bf16.mxu0 0
        %1674 = vmatpush1.bf16.xpose.msra.mxu0 0
        %1675 = vmatprep.subr.bf16.mxu0 0
        %1676 = vmatpush1.bf16.xpose.msra.mxu0 0
        %1677 = vmatprep.subr.bf16.mxu0 0
        %1678 = vmatpush1.bf16.xpose.msra.mxu0 0
        %1679 = vmatprep.subr.bf16.mxu0 0
        %1680 = vmatpush1.bf16.xpose.msra.mxu0 0
        %1681 = vmatprep.subr.bf16.mxu0 0
        %1682 = vmatpush1.bf16.xpose.msra.mxu0 0
        %1683 = vmatprep.subr.bf16.mxu0 0
        %1684 = vmatpush1.bf16.xpose.msra.mxu0 0
        %1685 = vmatprep.mubr.bf16.mxu0 0
        %1686 = vmatmul.mubr.bf16.gmra.mrb[0].mxu0 %v1648
        %v1687 = vpop.f32.mrb[0].mxu0
        %v1688 = vadd.f32 0.0, %v1687
        %v1689 = vpop.f32.mrb[0].mxu0
        %v1690 = vpop.f32.mrb[0].mxu0
        %v1691 = vpop.f32.mrb[0].mxu0
        %1692 = vdwg.mxu0
        %v1693 = vmul.f32 %v1688, 0.17677669
        %v1694 = vsel %vm1581, -10000.0, %v1693
        %v1695 = vsel %vm1115, %v1694, -inf
        %1696 = vmax.xlane.f32.xlu0 %v1695
        %v1697 = vpop.xlane.xlu0 %1696
        %v1698 = vsub.f32 %v1694, %v1697
        %v1699 = vmul.f32 %v1698, 1.442695
        %v1700 = vpow.pop %v1699
        %v1701 = vsel %vm1115, %v1700, 0.0
        %1702 = vadd.xlane.f32.xlu0 %v1701
        %v1703 = vpop.xlane.xlu0 %1702
        %v1704 = vrcp.pop %v1703
        %v1705 = vmul.f32 %v1700, %v1704
        %v1706 = vpack.c.bf16 %v1705, %v1705
        %1708 = vrot.lane.b32.xlu0 %v1533, 96
        %v1709 = vpop.permute.xlu0 %1708
        %v1711 = vsel %vm1115, %v1706, 0
        %v1714 = vsel %vm1131, %v1709, 0
        %1716 = vmatprep.subr.bf16.mxu0 0
        %1717 = vmatpush1.bf16.msra.mxu0 %v1714
        %1718 = vmatprep.subr.bf16.mxu0 0
        %1719 = vmatpush1.bf16.msra.mxu0 0
        %1720 = vmatprep.subr.bf16.mxu0 0
        %1721 = vmatpush1.bf16.msra.mxu0 0
        %1722 = vmatprep.subr.bf16.mxu0 0
        %1723 = vmatpush1.bf16.msra.mxu0 0
        %1724 = vmatprep.subr.bf16.mxu0 0
        %1725 = vmatpush1.bf16.msra.mxu0 0
        %1726 = vmatprep.subr.bf16.mxu0 0
        %1727 = vmatpush1.bf16.msra.mxu0 0
        %1728 = vmatprep.subr.bf16.mxu0 0
        %1729 = vmatpush1.bf16.msra.mxu0 0
        %1730 = vmatprep.subr.bf16.mxu0 0
        %1731 = vmatpush1.bf16.msra.mxu0 0
        %1732 = vmatprep.subr.bf16.mxu0 0
        %1733 = vmatpush1.bf16.msra.mxu0 0
        %1734 = vmatprep.subr.bf16.mxu0 0
        %1735 = vmatpush1.bf16.msra.mxu0 0
        %1736 = vmatprep.subr.bf16.mxu0 0
        %1737 = vmatpush1.bf16.msra.mxu0 0
        %1738 = vmatprep.subr.bf16.mxu0 0
        %1739 = vmatpush1.bf16.msra.mxu0 0
        %1740 = vmatprep.subr.bf16.mxu0 0
        %1741 = vmatpush1.bf16.msra.mxu0 0
        %1742 = vmatprep.subr.bf16.mxu0 0
        %1743 = vmatpush1.bf16.msra.mxu0 0
        %1744 = vmatprep.subr.bf16.mxu0 0
        %1745 = vmatpush1.bf16.msra.mxu0 0
        %1746 = vmatprep.subr.bf16.mxu0 0
        %1747 = vmatpush1.bf16.msra.mxu0 0
        %1748 = vmatprep.mubr.bf16.mxu0 0
        %1749 = vmatmul.mubr.bf16.gmra.mrb[0].mxu0 %v1711
        %v1750 = vpop.f32.mrb[0].mxu0
        %v1751 = vadd.f32 0.0, %v1750
        %v1752 = vpop.f32.mrb[0].mxu0
        %v1753 = vpop.f32.mrb[0].mxu0
        %v1754 = vpop.f32.mrb[0].mxu0
        %1755 = vdwg.mxu0
        %1756 = vrot.lane.b32.xlu0 %v1531, 64
        %v1757 = vpop.permute.xlu0 %1756
        %1758 = vrot.lane.b32.xlu0 %v1532, 64
        %v1759 = vpop.permute.xlu0 %1758
        %v1761 = vsel %vm1065, %v1757, 0
        %v1764 = vsel %vm1065, %v1759, 0
        %1766 = vmatprep.subr.bf16.mxu0 0
        %1767 = vmatpush1.bf16.xpose.msra.mxu0 %v1764
        %1768 = vmatprep.subr.bf16.mxu0 0
        %1769 = vmatpush1.bf16.xpose.msra.mxu0 0
        %1770 = vmatprep.subr.bf16.mxu0 0
        %1771 = vmatpush1.bf16.xpose.msra.mxu0 0
        %1772 = vmatprep.subr.bf16.mxu0 0
        %1773 = vmatpush1.bf16.xpose.msra.mxu0 0
        %1774 = vmatprep.subr.bf16.mxu0 0
        %1775 = vmatpush1.bf16.xpose.msra.mxu0 0
        %1776 = vmatprep.subr.bf16.mxu0 0
        %1777 = vmatpush1.bf16.xpose.msra.mxu0 0
        %1778 = vmatprep.subr.bf16.mxu0 0
        %1779 = vmatpush1.bf16.xpose.msra.mxu0 0
        %1780 = vmatprep.subr.bf16.mxu0 0
        %1781 = vmatpush1.bf16.xpose.msra.mxu0 0
        %1782 = vmatprep.subr.bf16.mxu0 0
        %1783 = vmatpush1.bf16.xpose.msra.mxu0 0
        %1784 = vmatprep.subr.bf16.mxu0 0
        %1785 = vmatpush1.bf16.xpose.msra.mxu0 0
        %1786 = vmatprep.subr.bf16.mxu0 0
        %1787 = vmatpush1.bf16.xpose.msra.mxu0 0
        %1788 = vmatprep.subr.bf16.mxu0 0
        %1789 = vmatpush1.bf16.xpose.msra.mxu0 0
        %1790 = vmatprep.subr.bf16.mxu0 0
        %1791 = vmatpush1.bf16.xpose.msra.mxu0 0
        %1792 = vmatprep.subr.bf16.mxu0 0
        %1793 = vmatpush1.bf16.xpose.msra.mxu0 0
        %1794 = vmatprep.subr.bf16.mxu0 0
        %1795 = vmatpush1.bf16.xpose.msra.mxu0 0
        %1796 = vmatprep.subr.bf16.mxu0 0
        %1797 = vmatpush1.bf16.xpose.msra.mxu0 0
        %1798 = vmatprep.mubr.bf16.mxu0 0
        %1799 = vmatmul.mubr.bf16.gmra.mrb[0].mxu0 %v1761
        %v1800 = vpop.f32.mrb[0].mxu0
        %v1801 = vadd.f32 0.0, %v1800
        %v1802 = vpop.f32.mrb[0].mxu0
        %v1803 = vpop.f32.mrb[0].mxu0
        %v1804 = vpop.f32.mrb[0].mxu0
        %1805 = vdwg.mxu0
        %v1806 = vmul.f32 %v1801, 0.17677669
        %v1807 = vsel %vm1581, -10000.0, %v1806
        %v1808 = vsel %vm1115, %v1807, -inf
        %1809 = vmax.xlane.f32.xlu0 %v1808
        %v1810 = vpop.xlane.xlu0 %1809
        %v1811 = vsub.f32 %v1807, %v1810
        %v1812 = vmul.f32 %v1811, 1.442695
        %v1813 = vpow.pop %v1812
        %v1814 = vsel %vm1115, %v1813, 0.0
        %1815 = vadd.xlane.f32.xlu0 %v1814
        %v1816 = vpop.xlane.xlu0 %1815
        %v1817 = vrcp.pop %v1816
        %v1818 = vmul.f32 %v1813, %v1817
        %v1819 = vpack.c.bf16 %v1818, %v1818
        %1820 = vrot.lane.b32.xlu0 %v1533, 64
        %v1821 = vpop.permute.xlu0 %1820
        %v1823 = vsel %vm1115, %v1819, 0
        %v1826 = vsel %vm1131, %v1821, 0
        %1828 = vmatprep.subr.bf16.mxu0 0
        %1829 = vmatpush1.bf16.msra.mxu0 %v1826
        %1830 = vmatprep.subr.bf16.mxu0 0
        %1831 = vmatpush1.bf16.msra.mxu0 0
        %1832 = vmatprep.subr.bf16.mxu0 0
        %1833 = vmatpush1.bf16.msra.mxu0 0
        %1834 = vmatprep.subr.bf16.mxu0 0
        %1835 = vmatpush1.bf16.msra.mxu0 0
        %1836 = vmatprep.subr.bf16.mxu0 0
        %1837 = vmatpush1.bf16.msra.mxu0 0
        %1838 = vmatprep.subr.bf16.mxu0 0
        %1839 = vmatpush1.bf16.msra.mxu0 0
        %1840 = vmatprep.subr.bf16.mxu0 0
        %1841 = vmatpush1.bf16.msra.mxu0 0
        %1842 = vmatprep.subr.bf16.mxu0 0
        %1843 = vmatpush1.bf16.msra.mxu0 0
        %1844 = vmatprep.subr.bf16.mxu0 0
        %1845 = vmatpush1.bf16.msra.mxu0 0
        %1846 = vmatprep.subr.bf16.mxu0 0
        %1847 = vmatpush1.bf16.msra.mxu0 0
        %1848 = vmatprep.subr.bf16.mxu0 0
        %1849 = vmatpush1.bf16.msra.mxu0 0
        %1850 = vmatprep.subr.bf16.mxu0 0
        %1851 = vmatpush1.bf16.msra.mxu0 0
        %1852 = vmatprep.subr.bf16.mxu0 0
        %1853 = vmatpush1.bf16.msra.mxu0 0
        %1854 = vmatprep.subr.bf16.mxu0 0
        %1855 = vmatpush1.bf16.msra.mxu0 0
        %1856 = vmatprep.subr.bf16.mxu0 0
        %1857 = vmatpush1.bf16.msra.mxu0 0
        %1858 = vmatprep.subr.bf16.mxu0 0
        %1859 = vmatpush1.bf16.msra.mxu0 0
        %1860 = vmatprep.mubr.bf16.mxu0 0
        %1861 = vmatmul.mubr.bf16.gmra.mrb[0].mxu0 %v1823
        %v1862 = vpop.f32.mrb[0].mxu0
        %v1863 = vadd.f32 0.0, %v1862
        %v1864 = vpop.f32.mrb[0].mxu0
        %v1865 = vpop.f32.mrb[0].mxu0
        %v1866 = vpop.f32.mrb[0].mxu0
        %1867 = vdwg.mxu0
        %1868 = vrot.lane.b32.xlu0 %v1531, 32
        %v1869 = vpop.permute.xlu0 %1868
        %1870 = vrot.lane.b32.xlu0 %v1532, 32
        %v1871 = vpop.permute.xlu0 %1870
        %v1873 = vsel %vm1065, %v1869, 0
        %v1876 = vsel %vm1065, %v1871, 0
        %1878 = vmatprep.subr.bf16.mxu0 0
        %1879 = vmatpush1.bf16.xpose.msra.mxu0 %v1876
        %1880 = vmatprep.subr.bf16.mxu0 0
        %1881 = vmatpush1.bf16.xpose.msra.mxu0 0
        %1882 = vmatprep.subr.bf16.mxu0 0
        %1883 = vmatpush1.bf16.xpose.msra.mxu0 0
        %1884 = vmatprep.subr.bf16.mxu0 0
        %1885 = vmatpush1.bf16.xpose.msra.mxu0 0
        %1886 = vmatprep.subr.bf16.mxu0 0
        %1887 = vmatpush1.bf16.xpose.msra.mxu0 0
        %1888 = vmatprep.subr.bf16.mxu0 0
        %1889 = vmatpush1.bf16.xpose.msra.mxu0 0
        %1890 = vmatprep.subr.bf16.mxu0 0
        %1891 = vmatpush1.bf16.xpose.msra.mxu0 0
        %1892 = vmatprep.subr.bf16.mxu0 0
        %1893 = vmatpush1.bf16.xpose.msra.mxu0 0
        %1894 = vmatprep.subr.bf16.mxu0 0
        %1895 = vmatpush1.bf16.xpose.msra.mxu0 0
        %1896 = vmatprep.subr.bf16.mxu0 0
        %1897 = vmatpush1.bf16.xpose.msra.mxu0 0
        %1898 = vmatprep.subr.bf16.mxu0 0
        %1899 = vmatpush1.bf16.xpose.msra.mxu0 0
        %1900 = vmatprep.subr.bf16.mxu0 0
        %1901 = vmatpush1.bf16.xpose.msra.mxu0 0
        %1902 = vmatprep.subr.bf16.mxu0 0
        %1903 = vmatpush1.bf16.xpose.msra.mxu0 0
        %1904 = vmatprep.subr.bf16.mxu0 0
        %1905 = vmatpush1.bf16.xpose.msra.mxu0 0
        %1906 = vmatprep.subr.bf16.mxu0 0
        %1907 = vmatpush1.bf16.xpose.msra.mxu0 0
        %1908 = vmatprep.subr.bf16.mxu0 0
        %1909 = vmatpush1.bf16.xpose.msra.mxu0 0
        %1910 = vmatprep.mubr.bf16.mxu0 0
        %1911 = vmatmul.mubr.bf16.gmra.mrb[0].mxu0 %v1873
        %v1912 = vpop.f32.mrb[0].mxu0
        %v1913 = vadd.f32 0.0, %v1912
        %v1914 = vpop.f32.mrb[0].mxu0
        %v1915 = vpop.f32.mrb[0].mxu0
        %v1916 = vpop.f32.mrb[0].mxu0
        %1917 = vdwg.mxu0
        %v1918 = vmul.f32 %v1913, 0.17677669
        %v1919 = vsel %vm1581, -10000.0, %v1918
        %v1920 = vsel %vm1115, %v1919, -inf
        %1921 = vmax.xlane.f32.xlu0 %v1920
        %v1922 = vpop.xlane.xlu0 %1921
        %v1923 = vsub.f32 %v1919, %v1922
        %v1924 = vmul.f32 %v1923, 1.442695
        %v1925 = vpow.pop %v1924
        %v1926 = vsel %vm1115, %v1925, 0.0
        %1927 = vadd.xlane.f32.xlu0 %v1926
        %v1928 = vpop.xlane.xlu0 %1927
        %v1929 = vrcp.pop %v1928
        %v1930 = vmul.f32 %v1925, %v1929
        %v1931 = vpack.c.bf16 %v1930, %v1930
        %1932 = vrot.lane.b32.xlu0 %v1533, 32
        %v1933 = vpop.permute.xlu0 %1932
        %v1935 = vsel %vm1115, %v1931, 0
        %v1938 = vsel %vm1131, %v1933, 0
        %1940 = vmatprep.subr.bf16.mxu0 0
        %1941 = vmatpush1.bf16.msra.mxu0 %v1938
        %1942 = vmatprep.subr.bf16.mxu0 0
        %1943 = vmatpush1.bf16.msra.mxu0 0
        %1944 = vmatprep.subr.bf16.mxu0 0
        %1945 = vmatpush1.bf16.msra.mxu0 0
        %1946 = vmatprep.subr.bf16.mxu0 0
        %1947 = vmatpush1.bf16.msra.mxu0 0
        %1948 = vmatprep.subr.bf16.mxu0 0
        %1949 = vmatpush1.bf16.msra.mxu0 0
        %1950 = vmatprep.subr.bf16.mxu0 0
        %1951 = vmatpush1.bf16.msra.mxu0 0
        %1952 = vmatprep.subr.bf16.mxu0 0
        %1953 = vmatpush1.bf16.msra.mxu0 0
        %1954 = vmatprep.subr.bf16.mxu0 0
        %1955 = vmatpush1.bf16.msra.mxu0 0
        %1956 = vmatprep.subr.bf16.mxu0 0
        %1957 = vmatpush1.bf16.msra.mxu0 0
        %1958 = vmatprep.subr.bf16.mxu0 0
        %1959 = vmatpush1.bf16.msra.mxu0 0
        %1960 = vmatprep.subr.bf16.mxu0 0
        %1961 = vmatpush1.bf16.msra.mxu0 0
        %1962 = vmatprep.subr.bf16.mxu0 0
        %1963 = vmatpush1.bf16.msra.mxu0 0
        %1964 = vmatprep.subr.bf16.mxu0 0
        %1965 = vmatpush1.bf16.msra.mxu0 0
        %1966 = vmatprep.subr.bf16.mxu0 0
        %1967 = vmatpush1.bf16.msra.mxu0 0
        %1968 = vmatprep.subr.bf16.mxu0 0
        %1969 = vmatpush1.bf16.msra.mxu0 0
        %1970 = vmatprep.subr.bf16.mxu0 0
        %1971 = vmatpush1.bf16.msra.mxu0 0
        %1972 = vmatprep.mubr.bf16.mxu0 0
        %1973 = vmatmul.mubr.bf16.gmra.mrb[0].mxu0 %v1935
        %v1974 = vpop.f32.mrb[0].mxu0
        %v1975 = vadd.f32 0.0, %v1974
        %v1976 = vpop.f32.mrb[0].mxu0
        %v1977 = vpop.f32.mrb[0].mxu0
        %v1978 = vpop.f32.mrb[0].mxu0
        %1979 = vdwg.mxu0
        %1981 = vrot.lane.b32.xlu0 %v1751, 32
        %v1982 = vpop.permute.xlu0 %1981
        %1985 = vrot.lane.b32.xlu0 %v1863, 64
        %v1986 = vpop.permute.xlu0 %1985
        %1989 = vrot.lane.b32.xlu0 %v1975, 96
        %v1990 = vpop.permute.xlu0 %1989
        %v1992 = vsel %vm1065, %v1636, %v1982
        %v1993 = vsel %vm1527, %v1992, %v1986
        %v1994 = vsel %vm1529, %v1993, %v1990
        %v1995 = vpack.c.bf16 %v1994, %v1530
        %v1996 = vld [vmem:[%s654] sm:$0xf]
        %v1997 = vld [vmem:[%s654 + $0x4] sm:$0xf]
        %v1998 = vld [vmem:[%s654 + $0x8] sm:$0xf]
        %v1999 = vld [vmem:[%s654 + $0xc] sm:$0xf]
        %v2000 = vld [vmem:[%s654 + $0x10] sm:$0xf]
        %v2001 = vld [vmem:[%s654 + $0x14] sm:$0xf]
        %v2002 = vld [vmem:[%s654 + $0x18] sm:$0xf]
        %v2003 = vld [vmem:[%s654 + $0x1c] sm:$0xf]
        %v2004 = vld [vmem:[%s654 + $0x20] sm:$0xf]
        %v2005 = vld [vmem:[%s654 + $0x24] sm:$0xf]
        %v2006 = vld [vmem:[%s654 + $0x28] sm:$0xf]
        %v2007 = vld [vmem:[%s654 + $0x2c] sm:$0xf]
        %v2008 = vld [vmem:[%s654 + $0x30] sm:$0xf]
        %v2009 = vld [vmem:[%s654 + $0x34] sm:$0xf]
        %v2010 = vld [vmem:[%s654 + $0x38] sm:$0xf]
        %v2011 = vld [vmem:[%s654 + $0x3c] sm:$0xf]
        %v2012 = vlaneseq
        %v2013 = vshrl.u32 %v2012, 7
        %v2014 = vsub.s32 3, %v2013
        %v2015 = vrot.slane %v801, %v2014
        %v2032 = vunpack.c.l.b16 %v1996
        %v2033 = vunpack.c.l.b16 %v1997
        %v2034 = vunpack.c.l.b16 %v1998
        %v2035 = vunpack.c.l.b16 %v1999
        %v2036 = vunpack.c.l.b16 %v2000
        %v2037 = vunpack.c.l.b16 %v2001
        %v2038 = vunpack.c.l.b16 %v2002
        %v2039 = vunpack.c.l.b16 %v2003
        %v2040 = vunpack.c.l.b16 %v2004
        %v2041 = vunpack.c.l.b16 %v2005
        %v2042 = vunpack.c.l.b16 %v2006
        %v2043 = vunpack.c.l.b16 %v2007
        %v2044 = vunpack.c.l.b16 %v2008
        %v2045 = vunpack.c.l.b16 %v2009
        %v2046 = vunpack.c.l.b16 %v2010
        %v2047 = vunpack.c.l.b16 %v2011
        %v2048 = vpack.c.b16 %v2033, %v2032
        %v2049 = vpack.c.b16 %v2035, %v2034
        %v2050 = vpack.c.b16 %v2037, %v2036
        %v2051 = vpack.c.b16 %v2039, %v2038
        %v2052 = vpack.c.b16 %v2041, %v2040
        %v2053 = vpack.c.b16 %v2043, %v2042
        %v2054 = vpack.c.b16 %v2045, %v2044
        %v2055 = vpack.c.b16 %v2047, %v2046
        %2064 = vmatprep.subr.bf16.mxu0 0
        %2065 = vmatpush1.bf16.msra.mxu0 %v2048
        %2066 = vmatprep.subr.bf16.mxu0 0
        %2067 = vmatpush1.bf16.msra.mxu0 %v2049
        %2068 = vmatprep.subr.bf16.mxu0 0
        %2069 = vmatpush1.bf16.msra.mxu0 %v2050
        %2070 = vmatprep.subr.bf16.mxu0 0
        %2071 = vmatpush1.bf16.msra.mxu0 %v2051
        %2072 = vmatprep.subr.bf16.mxu0 0
        %2073 = vmatpush1.bf16.msra.mxu0 %v2052
        %2074 = vmatprep.subr.bf16.mxu0 0
        %2075 = vmatpush1.bf16.msra.mxu0 %v2053
        %2076 = vmatprep.subr.bf16.mxu0 0
        %2077 = vmatpush1.bf16.msra.mxu0 %v2054
        %2078 = vmatprep.subr.bf16.mxu0 0
        %2079 = vmatpush1.bf16.msra.mxu0 %v2055
        %2080 = vmatprep.subr.bf16.mxu0 0
        %2081 = vmatpush1.bf16.msra.mxu0 0
        %2082 = vmatprep.subr.bf16.mxu0 0
        %2083 = vmatpush1.bf16.msra.mxu0 0
        %2084 = vmatprep.subr.bf16.mxu0 0
        %2085 = vmatpush1.bf16.msra.mxu0 0
        %2086 = vmatprep.subr.bf16.mxu0 0
        %2087 = vmatpush1.bf16.msra.mxu0 0
        %2088 = vmatprep.subr.bf16.mxu0 0
        %2089 = vmatpush1.bf16.msra.mxu0 0
        %2090 = vmatprep.subr.bf16.mxu0 0
        %2091 = vmatpush1.bf16.msra.mxu0 0
        %2092 = vmatprep.subr.bf16.mxu0 0
        %2093 = vmatpush1.bf16.msra.mxu0 0
        %2094 = vmatprep.subr.bf16.mxu0 0
        %2095 = vmatpush1.bf16.msra.mxu0 0
        %2096 = vmatprep.mubr.bf16.mxu0 0
        %2097 = vmatmul.mubr.bf16.gmra.mrb[0].mxu0 %v1995
        %v2098 = vpop.f32.mrb[0].mxu0
        %v2099 = vadd.f32 %v2015, %v2098
        %v2100 = vpop.f32.mrb[0].mxu0
        %v2101 = vpop.f32.mrb[0].mxu0
        %v2102 = vadd.f32 %v2015, %v2101
        %v2103 = vpop.f32.mrb[0].mxu0
        %2104 = vdwg.mxu0
        %v2105 = vadd.f32 %v2099, %v792
        %v2106 = vadd.f32 %v2102, %v793
        %2107 = vadd.xlane.f32.xlu0 %v2105
        %v2108 = vpop.xlane.xlu0 %2107
        %2109 = vadd.xlane.f32.xlu0 %v2106
        %v2110 = vpop.xlane.xlu0 %2109
        %v2111 = vrcp.pop 128.0
        %v2112 = vmul.f32 %v2108, %v2111
        %v2113 = vmul.f32 %v2110, %v2111
        %v2114 = vsub.f32 %v2105, %v2112
        %v2115 = vsub.f32 %v2106, %v2113
        %v2116 = vmul.f32 %v2114, %v2114
        %v2117 = vmul.f32 %v2115, %v2115
        %2118 = vadd.xlane.f32.xlu0 %v2116
        %v2119 = vpop.xlane.xlu0 %2118
        %2120 = vadd.xlane.f32.xlu0 %v2117
        %v2121 = vpop.xlane.xlu0 %2120
        %v2122 = vmul.f32 %v2119, 0.007874016
        %v2123 = vmul.f32 %v2121, 0.007874016
        %v2124 = vrsqrt.pop %v2122
        %v2125 = vmul.f32 %v2122, %v2124
        %vm2126 = vcmp.eq.f32.partialorder %v2122, inf
        %v2127 = vsel %vm2126, %v2122, %v2125
        %vm2128 = vcmp.eq.f32.partialorder %v2122, 0.0
        %v2129 = vand.u32 %v2122, 2147483648
        %v2130 = vsel %vm2128, %v2129, %v2127
        %v2131 = vrsqrt.pop %v2123
        %v2132 = vmul.f32 %v2123, %v2131
        %vm2133 = vcmp.eq.f32.partialorder %v2123, inf
        %v2134 = vsel %vm2133, %v2123, %v2132
        %vm2135 = vcmp.eq.f32.partialorder %v2123, 0.0
        %v2136 = vand.u32 %v2123, 2147483648
        %v2137 = vsel %vm2135, %v2136, %v2134
        %v2138 = vlaneseq
        %v2139 = vshrl.u32 %v2138, 7
        %v2140 = vsub.s32 7, %v2139
        %v2141 = vrot.slane %v801, %v2140
        %v2142 = vmul.f32 %v2141, %v2114
        %v2143 = vmul.f32 %v2141, %v2115
        %v2144 = vadd.f32 %v2130, 1e-06
        %v2145 = vadd.f32 %v2137, 1e-06
        %v2146 = vrcp.pop %v2144
        %v2147 = vmul.f32 %v2142, %v2146
        %v2148 = vrcp.pop %v2145
        %v2149 = vmul.f32 %v2143, %v2148
        %v2150 = vlaneseq
        %v2151 = vshrl.u32 %v2150, 7
        %v2152 = vsub.s32 0, %v2151
        %v2153 = vrot.slane %v804, %v2152
        %v2154 = vadd.f32 %v2147, %v2153
        %v2155 = vadd.f32 %v2149, %v2153
        %v2156 = vpack.c.bf16 %v2155, %v2154
        %v2157 = vld [vmem:[%s663] sm:$0xf]
        %v2158 = vld [vmem:[%s663 + $0x4] sm:$0xf]
        %v2159 = vld [vmem:[%s663 + $0x8] sm:$0xf]
        %v2160 = vld [vmem:[%s663 + $0xc] sm:$0xf]
        %v2161 = vld [vmem:[%s663 + $0x10] sm:$0xf]
        %v2162 = vld [vmem:[%s663 + $0x14] sm:$0xf]
        %v2163 = vld [vmem:[%s663 + $0x18] sm:$0xf]
        %v2164 = vld [vmem:[%s663 + $0x1c] sm:$0xf]
        %v2165 = vld [vmem:[%s663 + $0x20] sm:$0xf]
        %v2166 = vld [vmem:[%s663 + $0x24] sm:$0xf]
        %v2167 = vld [vmem:[%s663 + $0x28] sm:$0xf]
        %v2168 = vld [vmem:[%s663 + $0x2c] sm:$0xf]
        %v2169 = vld [vmem:[%s663 + $0x30] sm:$0xf]
        %v2170 = vld [vmem:[%s663 + $0x34] sm:$0xf]
        %v2171 = vld [vmem:[%s663 + $0x38] sm:$0xf]
        %v2172 = vld [vmem:[%s663 + $0x3c] sm:$0xf]
        %v2173 = vlaneseq
        %v2174 = vshrl.u32 %v2173, 7
        %v2175 = vsub.s32 4, %v2174
        %v2176 = vrot.slane %v801, %v2175
        %v2193 = vunpack.c.l.b16 %v2157
        %v2194 = vunpack.c.l.b16 %v2158
        %v2195 = vunpack.c.l.b16 %v2159
        %v2196 = vunpack.c.l.b16 %v2160
        %v2197 = vunpack.c.l.b16 %v2161
        %v2198 = vunpack.c.l.b16 %v2162
        %v2199 = vunpack.c.l.b16 %v2163
        %v2200 = vunpack.c.l.b16 %v2164
        %v2201 = vunpack.c.l.b16 %v2165
        %v2202 = vunpack.c.l.b16 %v2166
        %v2203 = vunpack.c.l.b16 %v2167
        %v2204 = vunpack.c.l.b16 %v2168
        %v2205 = vunpack.c.l.b16 %v2169
        %v2206 = vunpack.c.l.b16 %v2170
        %v2207 = vunpack.c.l.b16 %v2171
        %v2208 = vunpack.c.l.b16 %v2172
        %v2209 = vpack.c.b16 %v2194, %v2193
        %v2210 = vpack.c.b16 %v2196, %v2195
        %v2211 = vpack.c.b16 %v2198, %v2197
        %v2212 = vpack.c.b16 %v2200, %v2199
        %v2213 = vpack.c.b16 %v2202, %v2201
        %v2214 = vpack.c.b16 %v2204, %v2203
        %v2215 = vpack.c.b16 %v2206, %v2205
        %v2216 = vpack.c.b16 %v2208, %v2207
        %2225 = vmatprep.subr.bf16.mxu0 0
        %2226 = vmatpush1.bf16.msra.mxu0 %v2209
        %2227 = vmatprep.subr.bf16.mxu0 0
        %2228 = vmatpush1.bf16.msra.mxu0 %v2210
        %2229 = vmatprep.subr.bf16.mxu0 0
        %2230 = vmatpush1.bf16.msra.mxu0 %v2211
        %2231 = vmatprep.subr.bf16.mxu0 0
        %2232 = vmatpush1.bf16.msra.mxu0 %v2212
        %2233 = vmatprep.subr.bf16.mxu0 0
        %2234 = vmatpush1.bf16.msra.mxu0 %v2213
        %2235 = vmatprep.subr.bf16.mxu0 0
        %2236 = vmatpush1.bf16.msra.mxu0 %v2214
        %2237 = vmatprep.subr.bf16.mxu0 0
        %2238 = vmatpush1.bf16.msra.mxu0 %v2215
        %2239 = vmatprep.subr.bf16.mxu0 0
        %2240 = vmatpush1.bf16.msra.mxu0 %v2216
        %2241 = vmatprep.subr.bf16.mxu0 0
        %2242 = vmatpush1.bf16.msra.mxu0 0
        %2243 = vmatprep.subr.bf16.mxu0 0
        %2244 = vmatpush1.bf16.msra.mxu0 0
        %2245 = vmatprep.subr.bf16.mxu0 0
        %2246 = vmatpush1.bf16.msra.mxu0 0
        %2247 = vmatprep.subr.bf16.mxu0 0
        %2248 = vmatpush1.bf16.msra.mxu0 0
        %2249 = vmatprep.subr.bf16.mxu0 0
        %2250 = vmatpush1.bf16.msra.mxu0 0
        %2251 = vmatprep.subr.bf16.mxu0 0
        %2252 = vmatpush1.bf16.msra.mxu0 0
        %2253 = vmatprep.subr.bf16.mxu0 0
        %2254 = vmatpush1.bf16.msra.mxu0 0
        %2255 = vmatprep.subr.bf16.mxu0 0
        %2256 = vmatpush1.bf16.msra.mxu0 0
        %2257 = vmatprep.mubr.bf16.mxu0 0
        %2258 = vmatmul.mubr.bf16.gmra.mrb[0].mxu0 %v2156
        %v2259 = vpop.f32.mrb[0].mxu0
        %v2260 = vadd.f32 %v2176, %v2259
        %v2261 = vpop.f32.mrb[0].mxu0
        %v2262 = vpop.f32.mrb[0].mxu0
        %v2263 = vadd.f32 %v2176, %v2262
        %v2264 = vpop.f32.mrb[0].mxu0
        %2265 = vdwg.mxu0
        %v2266 = vld [vmem:[%s782] sm:$0xff]
        %v2267 = vld [vmem:[%s782 + $0x8] sm:$0xff]
        %v2268 = vld [vmem:[%s782 + $0x10] sm:$0xff]
        %v2269 = vld [vmem:[%s782 + $0x18] sm:$0xff]
        %v2270 = vld [vmem:[%s782 + $0x20] sm:$0xff]
        %v2271 = vld [vmem:[%s782 + $0x28] sm:$0xff]
        %v2272 = vld [vmem:[%s782 + $0x30] sm:$0xff]
        %v2273 = vld [vmem:[%s782 + $0x38] sm:$0xff]
        %v2274 = vld [vmem:[%s782 + $0x40] sm:$0xff]
        %v2275 = vld [vmem:[%s782 + $0x48] sm:$0xff]
        %v2276 = vld [vmem:[%s782 + $0x50] sm:$0xff]
        %v2277 = vld [vmem:[%s782 + $0x58] sm:$0xff]
        %v2278 = vld [vmem:[%s782 + $0x60] sm:$0xff]
        %v2279 = vld [vmem:[%s782 + $0x68] sm:$0xff]
        %v2280 = vld [vmem:[%s782 + $0x70] sm:$0xff]
        %v2281 = vld [vmem:[%s782 + $0x78] sm:$0xff]
        %v2282 = vlaneseq
        %v2283 = vshrl.u32 %v2282, 7
        %v2284 = vsub.s32 1, %v2283
        %v2285 = vrot.slane %v801, %v2284
        %v2286 = vlaneseq
        %v2287 = vshrl.u32 %v2286, 7
        %v2288 = vsub.s32 1, %v2287
        %v2289 = vrot.slane %v802, %v2288
        %v2306 = vunpack.c.l.b16 %v2266
        %v2307 = vunpack.c.h.b16 %v2266
        %v2308 = vunpack.c.l.b16 %v2267
        %v2309 = vunpack.c.h.b16 %v2267
        %v2310 = vunpack.c.l.b16 %v2268
        %v2311 = vunpack.c.h.b16 %v2268
        %v2312 = vunpack.c.l.b16 %v2269
        %v2313 = vunpack.c.h.b16 %v2269
        %v2314 = vunpack.c.l.b16 %v2270
        %v2315 = vunpack.c.h.b16 %v2270
        %v2316 = vunpack.c.l.b16 %v2271
        %v2317 = vunpack.c.h.b16 %v2271
        %v2318 = vunpack.c.l.b16 %v2272
        %v2319 = vunpack.c.h.b16 %v2272
        %v2320 = vunpack.c.l.b16 %v2273
        %v2321 = vunpack.c.h.b16 %v2273
        %v2322 = vunpack.c.l.b16 %v2274
        %v2323 = vunpack.c.h.b16 %v2274
        %v2324 = vunpack.c.l.b16 %v2275
        %v2325 = vunpack.c.h.b16 %v2275
        %v2326 = vunpack.c.l.b16 %v2276
        %v2327 = vunpack.c.h.b16 %v2276
        %v2328 = vunpack.c.l.b16 %v2277
        %v2329 = vunpack.c.h.b16 %v2277
        %v2330 = vunpack.c.l.b16 %v2278
        %v2331 = vunpack.c.h.b16 %v2278
        %v2332 = vunpack.c.l.b16 %v2279
        %v2333 = vunpack.c.h.b16 %v2279
        %v2334 = vunpack.c.l.b16 %v2280
        %v2335 = vunpack.c.h.b16 %v2280
        %v2336 = vunpack.c.l.b16 %v2281
        %v2337 = vunpack.c.h.b16 %v2281
        %v2338 = vpack.c.b16 %v2308, %v2306
        %v2339 = vpack.c.b16 %v2309, %v2307
        %v2340 = vpack.c.b16 %v2312, %v2310
        %v2341 = vpack.c.b16 %v2313, %v2311
        %v2342 = vpack.c.b16 %v2316, %v2314
        %v2343 = vpack.c.b16 %v2317, %v2315
        %v2344 = vpack.c.b16 %v2320, %v2318
        %v2345 = vpack.c.b16 %v2321, %v2319
        %v2346 = vpack.c.b16 %v2324, %v2322
        %v2347 = vpack.c.b16 %v2325, %v2323
        %v2348 = vpack.c.b16 %v2328, %v2326
        %v2349 = vpack.c.b16 %v2329, %v2327
        %v2350 = vpack.c.b16 %v2332, %v2330
        %v2351 = vpack.c.b16 %v2333, %v2331
        %v2352 = vpack.c.b16 %v2336, %v2334
        %v2353 = vpack.c.b16 %v2337, %v2335
        %2370 = vmatprep.subr.bf16.mxu0 %v2339
        %2371 = vmatpush1.bf16.msra.mxu0 %v2338
        %2372 = vmatprep.subr.bf16.mxu0 %v2341
        %2373 = vmatpush1.bf16.msra.mxu0 %v2340
        %2374 = vmatprep.subr.bf16.mxu0 %v2343
        %2375 = vmatpush1.bf16.msra.mxu0 %v2342
        %2376 = vmatprep.subr.bf16.mxu0 %v2345
        %2377 = vmatpush1.bf16.msra.mxu0 %v2344
        %2378 = vmatprep.subr.bf16.mxu0 %v2347
        %2379 = vmatpush1.bf16.msra.mxu0 %v2346
        %2380 = vmatprep.subr.bf16.mxu0 %v2349
        %2381 = vmatpush1.bf16.msra.mxu0 %v2348
        %2382 = vmatprep.subr.bf16.mxu0 %v2351
        %2383 = vmatpush1.bf16.msra.mxu0 %v2350
        %2384 = vmatprep.subr.bf16.mxu0 %v2353
        %2385 = vmatpush1.bf16.msra.mxu0 %v2352
        %2386 = vmatprep.subr.bf16.mxu0 0
        %2387 = vmatpush1.bf16.msra.mxu0 0
        %2388 = vmatprep.subr.bf16.mxu0 0
        %2389 = vmatpush1.bf16.msra.mxu0 0
        %2390 = vmatprep.subr.bf16.mxu0 0
        %2391 = vmatpush1.bf16.msra.mxu0 0
        %2392 = vmatprep.subr.bf16.mxu0 0
        %2393 = vmatpush1.bf16.msra.mxu0 0
        %2394 = vmatprep.subr.bf16.mxu0 0
        %2395 = vmatpush1.bf16.msra.mxu0 0
        %2396 = vmatprep.subr.bf16.mxu0 0
        %2397 = vmatpush1.bf16.msra.mxu0 0
        %2398 = vmatprep.subr.bf16.mxu0 0
        %2399 = vmatpush1.bf16.msra.mxu0 0
        %2400 = vmatprep.subr.bf16.mxu0 0
        %2401 = vmatpush1.bf16.msra.mxu0 0
        %2402 = vmatprep.mubr.bf16.mxu0 0
        %2403 = vmatmul.mubr.bf16.gmra.mrb[0].mxu0 %v796
        %v2404 = vpop.f32.mrb[0].mxu0
        %v2405 = vadd.f32 %v2285, %v2404
        %v2406 = vpop.f32.mrb[0].mxu0
        %v2407 = vadd.f32 %v2289, %v2406
        %v2408 = vpop.f32.mrb[0].mxu0
        %v2409 = vadd.f32 %v2285, %v2408
        %v2410 = vpop.f32.mrb[0].mxu0
        %v2411 = vadd.f32 %v2289, %v2410
        %2412 = vdwg.mxu0
        %v2413 = vpack.c.bf16 %v2260, %v2260
        %v2414 = vpack.c.bf16 %v2405, %v2405
        %v2415 = vpack.c.bf16 %v2407, %v2407
        %v2417 = vsel %vm1065, %v2413, 0
        %v2420 = vsel %vm1065, %v2414, 0
        %2422 = vmatprep.subr.bf16.mxu0 0
        %2423 = vmatpush1.bf16.xpose.msra.mxu0 %v2420
        %2424 = vmatprep.subr.bf16.mxu0 0
        %2425 = vmatpush1.bf16.xpose.msra.mxu0 0
        %2426 = vmatprep.subr.bf16.mxu0 0
        %2427 = vmatpush1.bf16.xpose.msra.mxu0 0
        %2428 = vmatprep.subr.bf16.mxu0 0
        %2429 = vmatpush1.bf16.xpose.msra.mxu0 0
        %2430 = vmatprep.subr.bf16.mxu0 0
        %2431 = vmatpush1.bf16.xpose.msra.mxu0 0
        %2432 = vmatprep.subr.bf16.mxu0 0
        %2433 = vmatpush1.bf16.xpose.msra.mxu0 0
        %2434 = vmatprep.subr.bf16.mxu0 0
        %2435 = vmatpush1.bf16.xpose.msra.mxu0 0
        %2436 = vmatprep.subr.bf16.mxu0 0
        %2437 = vmatpush1.bf16.xpose.msra.mxu0 0
        %2438 = vmatprep.subr.bf16.mxu0 0
        %2439 = vmatpush1.bf16.xpose.msra.mxu0 0
        %2440 = vmatprep.subr.bf16.mxu0 0
        %2441 = vmatpush1.bf16.xpose.msra.mxu0 0
        %2442 = vmatprep.subr.bf16.mxu0 0
        %2443 = vmatpush1.bf16.xpose.msra.mxu0 0
        %2444 = vmatprep.subr.bf16.mxu0 0
        %2445 = vmatpush1.bf16.xpose.msra.mxu0 0
        %2446 = vmatprep.subr.bf16.mxu0 0
        %2447 = vmatpush1.bf16.xpose.msra.mxu0 0
        %2448 = vmatprep.subr.bf16.mxu0 0
        %2449 = vmatpush1.bf16.xpose.msra.mxu0 0
        %2450 = vmatprep.subr.bf16.mxu0 0
        %2451 = vmatpush1.bf16.xpose.msra.mxu0 0
        %2452 = vmatprep.subr.bf16.mxu0 0
        %2453 = vmatpush1.bf16.xpose.msra.mxu0 0
        %2454 = vmatprep.mubr.bf16.mxu0 0
        %2455 = vmatmul.mubr.bf16.gmra.mrb[0].mxu0 %v2417
        %v2456 = vpop.f32.mrb[0].mxu0
        %v2457 = vadd.f32 0.0, %v2456
        %v2458 = vpop.f32.mrb[0].mxu0
        %v2459 = vpop.f32.mrb[0].mxu0
        %v2460 = vpop.f32.mrb[0].mxu0
        %2461 = vdwg.mxu0
        %v2462 = vmul.f32 %v2457, 0.17677669
        %vm2463 = vcmp.eq.f32.partialorder %v799, 0.0
        %v2464 = vsel %vm2463, -10000.0, %v2462
        %v2465 = vsel %vm1115, %v2464, -inf
        %2466 = vmax.xlane.f32.xlu0 %v2465
        %v2467 = vpop.xlane.xlu0 %2466
        %v2468 = vsub.f32 %v2464, %v2467
        %v2469 = vmul.f32 %v2468, 1.442695
        %v2470 = vpow.pop %v2469
        %v2471 = vsel %vm1115, %v2470, 0.0
        %2472 = vadd.xlane.f32.xlu0 %v2471
        %v2473 = vpop.xlane.xlu0 %2472
        %v2474 = vrcp.pop %v2473
        %v2475 = vmul.f32 %v2470, %v2474
        %v2476 = vpack.c.bf16 %v2475, %v2475
        %v2478 = vsel %vm1115, %v2476, 0
        %v2481 = vsel %vm1131, %v2415, 0
        %2483 = vmatprep.subr.bf16.mxu0 0
        %2484 = vmatpush1.bf16.msra.mxu0 %v2481
        %2485 = vmatprep.subr.bf16.mxu0 0
        %2486 = vmatpush1.bf16.msra.mxu0 0
        %2487 = vmatprep.subr.bf16.mxu0 0
        %2488 = vmatpush1.bf16.msra.mxu0 0
        %2489 = vmatprep.subr.bf16.mxu0 0
        %2490 = vmatpush1.bf16.msra.mxu0 0
        %2491 = vmatprep.subr.bf16.mxu0 0
        %2492 = vmatpush1.bf16.msra.mxu0 0
        %2493 = vmatprep.subr.bf16.mxu0 0
        %2494 = vmatpush1.bf16.msra.mxu0 0
        %2495 = vmatprep.subr.bf16.mxu0 0
        %2496 = vmatpush1.bf16.msra.mxu0 0
        %2497 = vmatprep.subr.bf16.mxu0 0
        %2498 = vmatpush1.bf16.msra.mxu0 0
        %2499 = vmatprep.subr.bf16.mxu0 0
        %2500 = vmatpush1.bf16.msra.mxu0 0
        %2501 = vmatprep.subr.bf16.mxu0 0
        %2502 = vmatpush1.bf16.msra.mxu0 0
        %2503 = vmatprep.subr.bf16.mxu0 0
        %2504 = vmatpush1.bf16.msra.mxu0 0
        %2505 = vmatprep.subr.bf16.mxu0 0
        %2506 = vmatpush1.bf16.msra.mxu0 0
        %2507 = vmatprep.subr.bf16.mxu0 0
        %2508 = vmatpush1.bf16.msra.mxu0 0
        %2509 = vmatprep.subr.bf16.mxu0 0
        %2510 = vmatpush1.bf16.msra.mxu0 0
        %2511 = vmatprep.subr.bf16.mxu0 0
        %2512 = vmatpush1.bf16.msra.mxu0 0
        %2513 = vmatprep.subr.bf16.mxu0 0
        %2514 = vmatpush1.bf16.msra.mxu0 0
        %2515 = vmatprep.mubr.bf16.mxu0 0
        %2516 = vmatmul.mubr.bf16.gmra.mrb[0].mxu0 %v2478
        %v2517 = vpop.f32.mrb[0].mxu0
        %v2518 = vadd.f32 0.0, %v2517
        %v2519 = vpop.f32.mrb[0].mxu0
        %v2520 = vpop.f32.mrb[0].mxu0
        %v2521 = vpop.f32.mrb[0].mxu0
        %2522 = vdwg.mxu0
        %2524 = vrot.lane.b32.xlu0 %v2413, 96
        %v2525 = vpop.permute.xlu0 %2524
        %2527 = vrot.lane.b32.xlu0 %v2414, 96
        %v2528 = vpop.permute.xlu0 %2527
        %v2530 = vsel %vm1065, %v2525, 0
        %v2533 = vsel %vm1065, %v2528, 0
        %2535 = vmatprep.subr.bf16.mxu0 0
        %2536 = vmatpush1.bf16.xpose.msra.mxu0 %v2533
        %2537 = vmatprep.subr.bf16.mxu0 0
        %2538 = vmatpush1.bf16.xpose.msra.mxu0 0
        %2539 = vmatprep.subr.bf16.mxu0 0
        %2540 = vmatpush1.bf16.xpose.msra.mxu0 0
        %2541 = vmatprep.subr.bf16.mxu0 0
        %2542 = vmatpush1.bf16.xpose.msra.mxu0 0
        %2543 = vmatprep.subr.bf16.mxu0 0
        %2544 = vmatpush1.bf16.xpose.msra.mxu0 0
        %2545 = vmatprep.subr.bf16.mxu0 0
        %2546 = vmatpush1.bf16.xpose.msra.mxu0 0
        %2547 = vmatprep.subr.bf16.mxu0 0
        %2548 = vmatpush1.bf16.xpose.msra.mxu0 0
        %2549 = vmatprep.subr.bf16.mxu0 0
        %2550 = vmatpush1.bf16.xpose.msra.mxu0 0
        %2551 = vmatprep.subr.bf16.mxu0 0
        %2552 = vmatpush1.bf16.xpose.msra.mxu0 0
        %2553 = vmatprep.subr.bf16.mxu0 0
        %2554 = vmatpush1.bf16.xpose.msra.mxu0 0
        %2555 = vmatprep.subr.bf16.mxu0 0
        %2556 = vmatpush1.bf16.xpose.msra.mxu0 0
        %2557 = vmatprep.subr.bf16.mxu0 0
        %2558 = vmatpush1.bf16.xpose.msra.mxu0 0
        %2559 = vmatprep.subr.bf16.mxu0 0
        %2560 = vmatpush1.bf16.xpose.msra.mxu0 0
        %2561 = vmatprep.subr.bf16.mxu0 0
        %2562 = vmatpush1.bf16.xpose.msra.mxu0 0
        %2563 = vmatprep.subr.bf16.mxu0 0
        %2564 = vmatpush1.bf16.xpose.msra.mxu0 0
        %2565 = vmatprep.subr.bf16.mxu0 0
        %2566 = vmatpush1.bf16.xpose.msra.mxu0 0
        %2567 = vmatprep.mubr.bf16.mxu0 0
        %2568 = vmatmul.mubr.bf16.gmra.mrb[0].mxu0 %v2530
        %v2569 = vpop.f32.mrb[0].mxu0
        %v2570 = vadd.f32 0.0, %v2569
        %v2571 = vpop.f32.mrb[0].mxu0
        %v2572 = vpop.f32.mrb[0].mxu0
        %v2573 = vpop.f32.mrb[0].mxu0
        %2574 = vdwg.mxu0
        %v2575 = vmul.f32 %v2570, 0.17677669
        %v2576 = vsel %vm2463, -10000.0, %v2575
        %v2577 = vsel %vm1115, %v2576, -inf
        %2578 = vmax.xlane.f32.xlu0 %v2577
        %v2579 = vpop.xlane.xlu0 %2578
        %v2580 = vsub.f32 %v2576, %v2579
        %v2581 = vmul.f32 %v2580, 1.442695
        %v2582 = vpow.pop %v2581
        %v2583 = vsel %vm1115, %v2582, 0.0
        %2584 = vadd.xlane.f32.xlu0 %v2583
        %v2585 = vpop.xlane.xlu0 %2584
        %v2586 = vrcp.pop %v2585
        %v2587 = vmul.f32 %v2582, %v2586
        %v2588 = vpack.c.bf16 %v2587, %v2587
        %2590 = vrot.lane.b32.xlu0 %v2415, 96
        %v2591 = vpop.permute.xlu0 %2590
        %v2593 = vsel %vm1115, %v2588, 0
        %v2596 = vsel %vm1131, %v2591, 0
        %2598 = vmatprep.subr.bf16.mxu0 0
        %2599 = vmatpush1.bf16.msra.mxu0 %v2596
        %2600 = vmatprep.subr.bf16.mxu0 0
        %2601 = vmatpush1.bf16.msra.mxu0 0
        %2602 = vmatprep.subr.bf16.mxu0 0
        %2603 = vmatpush1.bf16.msra.mxu0 0
        %2604 = vmatprep.subr.bf16.mxu0 0
        %2605 = vmatpush1.bf16.msra.mxu0 0
        %2606 = vmatprep.subr.bf16.mxu0 0
        %2607 = vmatpush1.bf16.msra.mxu0 0
        %2608 = vmatprep.subr.bf16.mxu0 0
        %2609 = vmatpush1.bf16.msra.mxu0 0
        %2610 = vmatprep.subr.bf16.mxu0 0
        %2611 = vmatpush1.bf16.msra.mxu0 0
        %2612 = vmatprep.subr.bf16.mxu0 0
        %2613 = vmatpush1.bf16.msra.mxu0 0
        %2614 = vmatprep.subr.bf16.mxu0 0
        %2615 = vmatpush1.bf16.msra.mxu0 0
        %2616 = vmatprep.subr.bf16.mxu0 0
        %2617 = vmatpush1.bf16.msra.mxu0 0
        %2618 = vmatprep.subr.bf16.mxu0 0
        %2619 = vmatpush1.bf16.msra.mxu0 0
        %2620 = vmatprep.subr.bf16.mxu0 0
        %2621 = vmatpush1.bf16.msra.mxu0 0
        %2622 = vmatprep.subr.bf16.mxu0 0
        %2623 = vmatpush1.bf16.msra.mxu0 0
        %2624 = vmatprep.subr.bf16.mxu0 0
        %2625 = vmatpush1.bf16.msra.mxu0 0
        %2626 = vmatprep.subr.bf16.mxu0 0
        %2627 = vmatpush1.bf16.msra.mxu0 0
        %2628 = vmatprep.subr.bf16.mxu0 0
        %2629 = vmatpush1.bf16.msra.mxu0 0
        %2630 = vmatprep.mubr.bf16.mxu0 0
        %2631 = vmatmul.mubr.bf16.gmra.mrb[0].mxu0 %v2593
        %v2632 = vpop.f32.mrb[0].mxu0
        %v2633 = vadd.f32 0.0, %v2632
        %v2634 = vpop.f32.mrb[0].mxu0
        %v2635 = vpop.f32.mrb[0].mxu0
        %v2636 = vpop.f32.mrb[0].mxu0
        %2637 = vdwg.mxu0
        %2638 = vrot.lane.b32.xlu0 %v2413, 64
        %v2639 = vpop.permute.xlu0 %2638
        %2640 = vrot.lane.b32.xlu0 %v2414, 64
        %v2641 = vpop.permute.xlu0 %2640
        %v2643 = vsel %vm1065, %v2639, 0
        %v2646 = vsel %vm1065, %v2641, 0
        %2648 = vmatprep.subr.bf16.mxu0 0
        %2649 = vmatpush1.bf16.xpose.msra.mxu0 %v2646
        %2650 = vmatprep.subr.bf16.mxu0 0
        %2651 = vmatpush1.bf16.xpose.msra.mxu0 0
        %2652 = vmatprep.subr.bf16.mxu0 0
        %2653 = vmatpush1.bf16.xpose.msra.mxu0 0
        %2654 = vmatprep.subr.bf16.mxu0 0
        %2655 = vmatpush1.bf16.xpose.msra.mxu0 0
        %2656 = vmatprep.subr.bf16.mxu0 0
        %2657 = vmatpush1.bf16.xpose.msra.mxu0 0
        %2658 = vmatprep.subr.bf16.mxu0 0
        %2659 = vmatpush1.bf16.xpose.msra.mxu0 0
        %2660 = vmatprep.subr.bf16.mxu0 0
        %2661 = vmatpush1.bf16.xpose.msra.mxu0 0
        %2662 = vmatprep.subr.bf16.mxu0 0
        %2663 = vmatpush1.bf16.xpose.msra.mxu0 0
        %2664 = vmatprep.subr.bf16.mxu0 0
        %2665 = vmatpush1.bf16.xpose.msra.mxu0 0
        %2666 = vmatprep.subr.bf16.mxu0 0
        %2667 = vmatpush1.bf16.xpose.msra.mxu0 0
        %2668 = vmatprep.subr.bf16.mxu0 0
        %2669 = vmatpush1.bf16.xpose.msra.mxu0 0
        %2670 = vmatprep.subr.bf16.mxu0 0
        %2671 = vmatpush1.bf16.xpose.msra.mxu0 0
        %2672 = vmatprep.subr.bf16.mxu0 0
        %2673 = vmatpush1.bf16.xpose.msra.mxu0 0
        %2674 = vmatprep.subr.bf16.mxu0 0
        %2675 = vmatpush1.bf16.xpose.msra.mxu0 0
        %2676 = vmatprep.subr.bf16.mxu0 0
        %2677 = vmatpush1.bf16.xpose.msra.mxu0 0
        %2678 = vmatprep.subr.bf16.mxu0 0
        %2679 = vmatpush1.bf16.xpose.msra.mxu0 0
        %2680 = vmatprep.mubr.bf16.mxu0 0
        %2681 = vmatmul.mubr.bf16.gmra.mrb[0].mxu0 %v2643
        %v2682 = vpop.f32.mrb[0].mxu0
        %v2683 = vadd.f32 0.0, %v2682
        %v2684 = vpop.f32.mrb[0].mxu0
        %v2685 = vpop.f32.mrb[0].mxu0
        %v2686 = vpop.f32.mrb[0].mxu0
        %2687 = vdwg.mxu0
        %v2688 = vmul.f32 %v2683, 0.17677669
        %v2689 = vsel %vm2463, -10000.0, %v2688
        %v2690 = vsel %vm1115, %v2689, -inf
        %2691 = vmax.xlane.f32.xlu0 %v2690
        %v2692 = vpop.xlane.xlu0 %2691
        %v2693 = vsub.f32 %v2689, %v2692
        %v2694 = vmul.f32 %v2693, 1.442695
        %v2695 = vpow.pop %v2694
        %v2696 = vsel %vm1115, %v2695, 0.0
        %2697 = vadd.xlane.f32.xlu0 %v2696
        %v2698 = vpop.xlane.xlu0 %2697
        %v2699 = vrcp.pop %v2698
        %v2700 = vmul.f32 %v2695, %v2699
        %v2701 = vpack.c.bf16 %v2700, %v2700
        %2702 = vrot.lane.b32.xlu0 %v2415, 64
        %v2703 = vpop.permute.xlu0 %2702
        %v2705 = vsel %vm1115, %v2701, 0
        %v2708 = vsel %vm1131, %v2703, 0
        %2710 = vmatprep.subr.bf16.mxu0 0
        %2711 = vmatpush1.bf16.msra.mxu0 %v2708
        %2712 = vmatprep.subr.bf16.mxu0 0
        %2713 = vmatpush1.bf16.msra.mxu0 0
        %2714 = vmatprep.subr.bf16.mxu0 0
        %2715 = vmatpush1.bf16.msra.mxu0 0
        %2716 = vmatprep.subr.bf16.mxu0 0
        %2717 = vmatpush1.bf16.msra.mxu0 0
        %2718 = vmatprep.subr.bf16.mxu0 0
        %2719 = vmatpush1.bf16.msra.mxu0 0
        %2720 = vmatprep.subr.bf16.mxu0 0
        %2721 = vmatpush1.bf16.msra.mxu0 0
        %2722 = vmatprep.subr.bf16.mxu0 0
        %2723 = vmatpush1.bf16.msra.mxu0 0
        %2724 = vmatprep.subr.bf16.mxu0 0
        %2725 = vmatpush1.bf16.msra.mxu0 0
        %2726 = vmatprep.subr.bf16.mxu0 0
        %2727 = vmatpush1.bf16.msra.mxu0 0
        %2728 = vmatprep.subr.bf16.mxu0 0
        %2729 = vmatpush1.bf16.msra.mxu0 0
        %2730 = vmatprep.subr.bf16.mxu0 0
        %2731 = vmatpush1.bf16.msra.mxu0 0
        %2732 = vmatprep.subr.bf16.mxu0 0
        %2733 = vmatpush1.bf16.msra.mxu0 0
        %2734 = vmatprep.subr.bf16.mxu0 0
        %2735 = vmatpush1.bf16.msra.mxu0 0
        %2736 = vmatprep.subr.bf16.mxu0 0
        %2737 = vmatpush1.bf16.msra.mxu0 0
        %2738 = vmatprep.subr.bf16.mxu0 0
        %2739 = vmatpush1.bf16.msra.mxu0 0
        %2740 = vmatprep.subr.bf16.mxu0 0
        %2741 = vmatpush1.bf16.msra.mxu0 0
        %2742 = vmatprep.mubr.bf16.mxu0 0
        %2743 = vmatmul.mubr.bf16.gmra.mrb[0].mxu0 %v2705
        %v2744 = vpop.f32.mrb[0].mxu0
        %v2745 = vadd.f32 0.0, %v2744
        %v2746 = vpop.f32.mrb[0].mxu0
        %v2747 = vpop.f32.mrb[0].mxu0
        %v2748 = vpop.f32.mrb[0].mxu0
        %2749 = vdwg.mxu0
        %2750 = vrot.lane.b32.xlu0 %v2413, 32
        %v2751 = vpop.permute.xlu0 %2750
        %2752 = vrot.lane.b32.xlu0 %v2414, 32
        %v2753 = vpop.permute.xlu0 %2752
        %v2755 = vsel %vm1065, %v2751, 0
        %v2758 = vsel %vm1065, %v2753, 0
        %2760 = vmatprep.subr.bf16.mxu0 0
        %2761 = vmatpush1.bf16.xpose.msra.mxu0 %v2758
        %2762 = vmatprep.subr.bf16.mxu0 0
        %2763 = vmatpush1.bf16.xpose.msra.mxu0 0
        %2764 = vmatprep.subr.bf16.mxu0 0
        %2765 = vmatpush1.bf16.xpose.msra.mxu0 0
        %2766 = vmatprep.subr.bf16.mxu0 0
        %2767 = vmatpush1.bf16.xpose.msra.mxu0 0
        %2768 = vmatprep.subr.bf16.mxu0 0
        %2769 = vmatpush1.bf16.xpose.msra.mxu0 0
        %2770 = vmatprep.subr.bf16.mxu0 0
        %2771 = vmatpush1.bf16.xpose.msra.mxu0 0
        %2772 = vmatprep.subr.bf16.mxu0 0
        %2773 = vmatpush1.bf16.xpose.msra.mxu0 0
        %2774 = vmatprep.subr.bf16.mxu0 0
        %2775 = vmatpush1.bf16.xpose.msra.mxu0 0
        %2776 = vmatprep.subr.bf16.mxu0 0
        %2777 = vmatpush1.bf16.xpose.msra.mxu0 0
        %2778 = vmatprep.subr.bf16.mxu0 0
        %2779 = vmatpush1.bf16.xpose.msra.mxu0 0
        %2780 = vmatprep.subr.bf16.mxu0 0
        %2781 = vmatpush1.bf16.xpose.msra.mxu0 0
        %2782 = vmatprep.subr.bf16.mxu0 0
        %2783 = vmatpush1.bf16.xpose.msra.mxu0 0
        %2784 = vmatprep.subr.bf16.mxu0 0
        %2785 = vmatpush1.bf16.xpose.msra.mxu0 0
        %2786 = vmatprep.subr.bf16.mxu0 0
        %2787 = vmatpush1.bf16.xpose.msra.mxu0 0
        %2788 = vmatprep.subr.bf16.mxu0 0
        %2789 = vmatpush1.bf16.xpose.msra.mxu0 0
        %2790 = vmatprep.subr.bf16.mxu0 0
        %2791 = vmatpush1.bf16.xpose.msra.mxu0 0
        %2792 = vmatprep.mubr.bf16.mxu0 0
        %2793 = vmatmul.mubr.bf16.gmra.mrb[0].mxu0 %v2755
        %v2794 = vpop.f32.mrb[0].mxu0
        %v2795 = vadd.f32 0.0, %v2794
        %v2796 = vpop.f32.mrb[0].mxu0
        %v2797 = vpop.f32.mrb[0].mxu0
        %v2798 = vpop.f32.mrb[0].mxu0
        %2799 = vdwg.mxu0
        %v2800 = vmul.f32 %v2795, 0.17677669
        %v2801 = vsel %vm2463, -10000.0, %v2800
        %v2802 = vsel %vm1115, %v2801, -inf
        %2803 = vmax.xlane.f32.xlu0 %v2802
        %v2804 = vpop.xlane.xlu0 %2803
        %v2805 = vsub.f32 %v2801, %v2804
        %v2806 = vmul.f32 %v2805, 1.442695
        %v2807 = vpow.pop %v2806
        %v2808 = vsel %vm1115, %v2807, 0.0
        %2809 = vadd.xlane.f32.xlu0 %v2808
        %v2810 = vpop.xlane.xlu0 %2809
        %v2811 = vrcp.pop %v2810
        %v2812 = vmul.f32 %v2807, %v2811
        %v2813 = vpack.c.bf16 %v2812, %v2812
        %2814 = vrot.lane.b32.xlu0 %v2415, 32
        %v2815 = vpop.permute.xlu0 %2814
        %v2817 = vsel %vm1115, %v2813, 0
        %v2820 = vsel %vm1131, %v2815, 0
        %2822 = vmatprep.subr.bf16.mxu0 0
        %2823 = vmatpush1.bf16.msra.mxu0 %v2820
        %2824 = vmatprep.subr.bf16.mxu0 0
        %2825 = vmatpush1.bf16.msra.mxu0 0
        %2826 = vmatprep.subr.bf16.mxu0 0
        %2827 = vmatpush1.bf16.msra.mxu0 0
        %2828 = vmatprep.subr.bf16.mxu0 0
        %2829 = vmatpush1.bf16.msra.mxu0 0
        %2830 = vmatprep.subr.bf16.mxu0 0
        %2831 = vmatpush1.bf16.msra.mxu0 0
        %2832 = vmatprep.subr.bf16.mxu0 0
        %2833 = vmatpush1.bf16.msra.mxu0 0
        %2834 = vmatprep.subr.bf16.mxu0 0
        %2835 = vmatpush1.bf16.msra.mxu0 0
        %2836 = vmatprep.subr.bf16.mxu0 0
        %2837 = vmatpush1.bf16.msra.mxu0 0
        %2838 = vmatprep.subr.bf16.mxu0 0
        %2839 = vmatpush1.bf16.msra.mxu0 0
        %2840 = vmatprep.subr.bf16.mxu0 0
        %2841 = vmatpush1.bf16.msra.mxu0 0
        %2842 = vmatprep.subr.bf16.mxu0 0
        %2843 = vmatpush1.bf16.msra.mxu0 0
        %2844 = vmatprep.subr.bf16.mxu0 0
        %2845 = vmatpush1.bf16.msra.mxu0 0
        %2846 = vmatprep.subr.bf16.mxu0 0
        %2847 = vmatpush1.bf16.msra.mxu0 0
        %2848 = vmatprep.subr.bf16.mxu0 0
        %2849 = vmatpush1.bf16.msra.mxu0 0
        %2850 = vmatprep.subr.bf16.mxu0 0
        %2851 = vmatpush1.bf16.msra.mxu0 0
        %2852 = vmatprep.subr.bf16.mxu0 0
        %2853 = vmatpush1.bf16.msra.mxu0 0
        %2854 = vmatprep.mubr.bf16.mxu0 0
        %2855 = vmatmul.mubr.bf16.gmra.mrb[0].mxu0 %v2817
        %v2856 = vpop.f32.mrb[0].mxu0
        %v2857 = vadd.f32 0.0, %v2856
        %v2858 = vpop.f32.mrb[0].mxu0
        %v2859 = vpop.f32.mrb[0].mxu0
        %v2860 = vpop.f32.mrb[0].mxu0
        %2861 = vdwg.mxu0
        %2863 = vrot.lane.b32.xlu0 %v2633, 32
        %v2864 = vpop.permute.xlu0 %2863
        %2867 = vrot.lane.b32.xlu0 %v2745, 64
        %v2868 = vpop.permute.xlu0 %2867
        %2871 = vrot.lane.b32.xlu0 %v2857, 96
        %v2872 = vpop.permute.xlu0 %2871
        %v2874 = vsel %vm1065, %v2518, %v2864
        %v2875 = vsel %vm1527, %v2874, %v2868
        %v2876 = vsel %vm1529, %v2875, %v2872
        %v2877 = vpack.c.bf16 %v2263, %v2263
        %v2878 = vpack.c.bf16 %v2409, %v2409
        %v2879 = vpack.c.bf16 %v2411, %v2411
        %v2881 = vsel %vm1065, %v2877, 0
        %v2884 = vsel %vm1065, %v2878, 0
        %2886 = vmatprep.subr.bf16.mxu0 0
        %2887 = vmatpush1.bf16.xpose.msra.mxu0 %v2884
        %2888 = vmatprep.subr.bf16.mxu0 0
        %2889 = vmatpush1.bf16.xpose.msra.mxu0 0
        %2890 = vmatprep.subr.bf16.mxu0 0
        %2891 = vmatpush1.bf16.xpose.msra.mxu0 0
        %2892 = vmatprep.subr.bf16.mxu0 0
        %2893 = vmatpush1.bf16.xpose.msra.mxu0 0
        %2894 = vmatprep.subr.bf16.mxu0 0
        %2895 = vmatpush1.bf16.xpose.msra.mxu0 0
        %2896 = vmatprep.subr.bf16.mxu0 0
        %2897 = vmatpush1.bf16.xpose.msra.mxu0 0
        %2898 = vmatprep.subr.bf16.mxu0 0
        %2899 = vmatpush1.bf16.xpose.msra.mxu0 0
        %2900 = vmatprep.subr.bf16.mxu0 0
        %2901 = vmatpush1.bf16.xpose.msra.mxu0 0
        %2902 = vmatprep.subr.bf16.mxu0 0
        %2903 = vmatpush1.bf16.xpose.msra.mxu0 0
        %2904 = vmatprep.subr.bf16.mxu0 0
        %2905 = vmatpush1.bf16.xpose.msra.mxu0 0
        %2906 = vmatprep.subr.bf16.mxu0 0
        %2907 = vmatpush1.bf16.xpose.msra.mxu0 0
        %2908 = vmatprep.subr.bf16.mxu0 0
        %2909 = vmatpush1.bf16.xpose.msra.mxu0 0
        %2910 = vmatprep.subr.bf16.mxu0 0
        %2911 = vmatpush1.bf16.xpose.msra.mxu0 0
        %2912 = vmatprep.subr.bf16.mxu0 0
        %2913 = vmatpush1.bf16.xpose.msra.mxu0 0
        %2914 = vmatprep.subr.bf16.mxu0 0
        %2915 = vmatpush1.bf16.xpose.msra.mxu0 0
        %2916 = vmatprep.subr.bf16.mxu0 0
        %2917 = vmatpush1.bf16.xpose.msra.mxu0 0
        %2918 = vmatprep.mubr.bf16.mxu0 0
        %2919 = vmatmul.mubr.bf16.gmra.mrb[0].mxu0 %v2881
        %v2920 = vpop.f32.mrb[0].mxu0
        %v2921 = vadd.f32 0.0, %v2920
        %v2922 = vpop.f32.mrb[0].mxu0
        %v2923 = vpop.f32.mrb[0].mxu0
        %v2924 = vpop.f32.mrb[0].mxu0
        %2925 = vdwg.mxu0
        %v2926 = vmul.f32 %v2921, 0.17677669
        %vm2927 = vcmp.eq.f32.partialorder %v800, 0.0
        %v2928 = vsel %vm2927, -10000.0, %v2926
        %v2929 = vsel %vm1115, %v2928, -inf
        %2930 = vmax.xlane.f32.xlu0 %v2929
        %v2931 = vpop.xlane.xlu0 %2930
        %v2932 = vsub.f32 %v2928, %v2931
        %v2933 = vmul.f32 %v2932, 1.442695
        %v2934 = vpow.pop %v2933
        %v2935 = vsel %vm1115, %v2934, 0.0
        %2936 = vadd.xlane.f32.xlu0 %v2935
        %v2937 = vpop.xlane.xlu0 %2936
        %v2938 = vrcp.pop %v2937
        %v2939 = vmul.f32 %v2934, %v2938
        %v2940 = vpack.c.bf16 %v2939, %v2939
        %v2942 = vsel %vm1115, %v2940, 0
        %v2945 = vsel %vm1131, %v2879, 0
        %2947 = vmatprep.subr.bf16.mxu0 0
        %2948 = vmatpush1.bf16.msra.mxu0 %v2945
        %2949 = vmatprep.subr.bf16.mxu0 0
        %2950 = vmatpush1.bf16.msra.mxu0 0
        %2951 = vmatprep.subr.bf16.mxu0 0
        %2952 = vmatpush1.bf16.msra.mxu0 0
        %2953 = vmatprep.subr.bf16.mxu0 0
        %2954 = vmatpush1.bf16.msra.mxu0 0
        %2955 = vmatprep.subr.bf16.mxu0 0
        %2956 = vmatpush1.bf16.msra.mxu0 0
        %2957 = vmatprep.subr.bf16.mxu0 0
        %2958 = vmatpush1.bf16.msra.mxu0 0
        %2959 = vmatprep.subr.bf16.mxu0 0
        %2960 = vmatpush1.bf16.msra.mxu0 0
        %2961 = vmatprep.subr.bf16.mxu0 0
        %2962 = vmatpush1.bf16.msra.mxu0 0
        %2963 = vmatprep.subr.bf16.mxu0 0
        %2964 = vmatpush1.bf16.msra.mxu0 0
        %2965 = vmatprep.subr.bf16.mxu0 0
        %2966 = vmatpush1.bf16.msra.mxu0 0
        %2967 = vmatprep.subr.bf16.mxu0 0
        %2968 = vmatpush1.bf16.msra.mxu0 0
        %2969 = vmatprep.subr.bf16.mxu0 0
        %2970 = vmatpush1.bf16.msra.mxu0 0
        %2971 = vmatprep.subr.bf16.mxu0 0
        %2972 = vmatpush1.bf16.msra.mxu0 0
        %2973 = vmatprep.subr.bf16.mxu0 0
        %2974 = vmatpush1.bf16.msra.mxu0 0
        %2975 = vmatprep.subr.bf16.mxu0 0
        %2976 = vmatpush1.bf16.msra.mxu0 0
        %2977 = vmatprep.subr.bf16.mxu0 0
        %2978 = vmatpush1.bf16.msra.mxu0 0
        %2979 = vmatprep.mubr.bf16.mxu0 0
        %2980 = vmatmul.mubr.bf16.gmra.mrb[0].mxu0 %v2942
        %v2981 = vpop.f32.mrb[0].mxu0
        %v2982 = vadd.f32 0.0, %v2981
        %v2983 = vpop.f32.mrb[0].mxu0
        %v2984 = vpop.f32.mrb[0].mxu0
        %v2985 = vpop.f32.mrb[0].mxu0
        %2986 = vdwg.mxu0
        %2988 = vrot.lane.b32.xlu0 %v2877, 96
        %v2989 = vpop.permute.xlu0 %2988
        %2991 = vrot.lane.b32.xlu0 %v2878, 96
        %v2992 = vpop.permute.xlu0 %2991
        %v2994 = vsel %vm1065, %v2989, 0
        %v2997 = vsel %vm1065, %v2992, 0
        %2999 = vmatprep.subr.bf16.mxu0 0
        %3000 = vmatpush1.bf16.xpose.msra.mxu0 %v2997
        %3001 = vmatprep.subr.bf16.mxu0 0
        %3002 = vmatpush1.bf16.xpose.msra.mxu0 0
        %3003 = vmatprep.subr.bf16.mxu0 0
        %3004 = vmatpush1.bf16.xpose.msra.mxu0 0
        %3005 = vmatprep.subr.bf16.mxu0 0
        %3006 = vmatpush1.bf16.xpose.msra.mxu0 0
        %3007 = vmatprep.subr.bf16.mxu0 0
        %3008 = vmatpush1.bf16.xpose.msra.mxu0 0
        %3009 = vmatprep.subr.bf16.mxu0 0
        %3010 = vmatpush1.bf16.xpose.msra.mxu0 0
        %3011 = vmatprep.subr.bf16.mxu0 0
        %3012 = vmatpush1.bf16.xpose.msra.mxu0 0
        %3013 = vmatprep.subr.bf16.mxu0 0
        %3014 = vmatpush1.bf16.xpose.msra.mxu0 0
        %3015 = vmatprep.subr.bf16.mxu0 0
        %3016 = vmatpush1.bf16.xpose.msra.mxu0 0
        %3017 = vmatprep.subr.bf16.mxu0 0
        %3018 = vmatpush1.bf16.xpose.msra.mxu0 0
        %3019 = vmatprep.subr.bf16.mxu0 0
        %3020 = vmatpush1.bf16.xpose.msra.mxu0 0
        %3021 = vmatprep.subr.bf16.mxu0 0
        %3022 = vmatpush1.bf16.xpose.msra.mxu0 0
        %3023 = vmatprep.subr.bf16.mxu0 0
        %3024 = vmatpush1.bf16.xpose.msra.mxu0 0
        %3025 = vmatprep.subr.bf16.mxu0 0
        %3026 = vmatpush1.bf16.xpose.msra.mxu0 0
        %3027 = vmatprep.subr.bf16.mxu0 0
        %3028 = vmatpush1.bf16.xpose.msra.mxu0 0
        %3029 = vmatprep.subr.bf16.mxu0 0
        %3030 = vmatpush1.bf16.xpose.msra.mxu0 0
        %3031 = vmatprep.mubr.bf16.mxu0 0
        %3032 = vmatmul.mubr.bf16.gmra.mrb[0].mxu0 %v2994
        %v3033 = vpop.f32.mrb[0].mxu0
        %v3034 = vadd.f32 0.0, %v3033
        %v3035 = vpop.f32.mrb[0].mxu0
        %v3036 = vpop.f32.mrb[0].mxu0
        %v3037 = vpop.f32.mrb[0].mxu0
        %3038 = vdwg.mxu0
        %v3039 = vmul.f32 %v3034, 0.17677669
        %v3040 = vsel %vm2927, -10000.0, %v3039
        %v3041 = vsel %vm1115, %v3040, -inf
        %3042 = vmax.xlane.f32.xlu0 %v3041
        %v3043 = vpop.xlane.xlu0 %3042
        %v3044 = vsub.f32 %v3040, %v3043
        %v3045 = vmul.f32 %v3044, 1.442695
        %v3046 = vpow.pop %v3045
        %v3047 = vsel %vm1115, %v3046, 0.0
        %3048 = vadd.xlane.f32.xlu0 %v3047
        %v3049 = vpop.xlane.xlu0 %3048
        %v3050 = vrcp.pop %v3049
        %v3051 = vmul.f32 %v3046, %v3050
        %v3052 = vpack.c.bf16 %v3051, %v3051
        %3054 = vrot.lane.b32.xlu0 %v2879, 96
        %v3055 = vpop.permute.xlu0 %3054
        %v3057 = vsel %vm1115, %v3052, 0
        %v3060 = vsel %vm1131, %v3055, 0
        %3062 = vmatprep.subr.bf16.mxu0 0
        %3063 = vmatpush1.bf16.msra.mxu0 %v3060
        %3064 = vmatprep.subr.bf16.mxu0 0
        %3065 = vmatpush1.bf16.msra.mxu0 0
        %3066 = vmatprep.subr.bf16.mxu0 0
        %3067 = vmatpush1.bf16.msra.mxu0 0
        %3068 = vmatprep.subr.bf16.mxu0 0
        %3069 = vmatpush1.bf16.msra.mxu0 0
        %3070 = vmatprep.subr.bf16.mxu0 0
        %3071 = vmatpush1.bf16.msra.mxu0 0
        %3072 = vmatprep.subr.bf16.mxu0 0
        %3073 = vmatpush1.bf16.msra.mxu0 0
        %3074 = vmatprep.subr.bf16.mxu0 0
        %3075 = vmatpush1.bf16.msra.mxu0 0
        %3076 = vmatprep.subr.bf16.mxu0 0
        %3077 = vmatpush1.bf16.msra.mxu0 0
        %3078 = vmatprep.subr.bf16.mxu0 0
        %3079 = vmatpush1.bf16.msra.mxu0 0
        %3080 = vmatprep.subr.bf16.mxu0 0
        %3081 = vmatpush1.bf16.msra.mxu0 0
        %3082 = vmatprep.subr.bf16.mxu0 0
        %3083 = vmatpush1.bf16.msra.mxu0 0
        %3084 = vmatprep.subr.bf16.mxu0 0
        %3085 = vmatpush1.bf16.msra.mxu0 0
        %3086 = vmatprep.subr.bf16.mxu0 0
        %3087 = vmatpush1.bf16.msra.mxu0 0
        %3088 = vmatprep.subr.bf16.mxu0 0
        %3089 = vmatpush1.bf16.msra.mxu0 0
        %3090 = vmatprep.subr.bf16.mxu0 0
        %3091 = vmatpush1.bf16.msra.mxu0 0
        %3092 = vmatprep.subr.bf16.mxu0 0
        %3093 = vmatpush1.bf16.msra.mxu0 0
        %3094 = vmatprep.mubr.bf16.mxu0 0
        %3095 = vmatmul.mubr.bf16.gmra.mrb[0].mxu0 %v3057
        %v3096 = vpop.f32.mrb[0].mxu0
        %v3097 = vadd.f32 0.0, %v3096
        %v3098 = vpop.f32.mrb[0].mxu0
        %v3099 = vpop.f32.mrb[0].mxu0
        %v3100 = vpop.f32.mrb[0].mxu0
        %3101 = vdwg.mxu0
        %3102 = vrot.lane.b32.xlu0 %v2877, 64
        %v3103 = vpop.permute.xlu0 %3102
        %3104 = vrot.lane.b32.xlu0 %v2878, 64
        %v3105 = vpop.permute.xlu0 %3104
        %v3107 = vsel %vm1065, %v3103, 0
        %v3110 = vsel %vm1065, %v3105, 0
        %3112 = vmatprep.subr.bf16.mxu0 0
        %3113 = vmatpush1.bf16.xpose.msra.mxu0 %v3110
        %3114 = vmatprep.subr.bf16.mxu0 0
        %3115 = vmatpush1.bf16.xpose.msra.mxu0 0
        %3116 = vmatprep.subr.bf16.mxu0 0
        %3117 = vmatpush1.bf16.xpose.msra.mxu0 0
        %3118 = vmatprep.subr.bf16.mxu0 0
        %3119 = vmatpush1.bf16.xpose.msra.mxu0 0
        %3120 = vmatprep.subr.bf16.mxu0 0
        %3121 = vmatpush1.bf16.xpose.msra.mxu0 0
        %3122 = vmatprep.subr.bf16.mxu0 0
        %3123 = vmatpush1.bf16.xpose.msra.mxu0 0
        %3124 = vmatprep.subr.bf16.mxu0 0
        %3125 = vmatpush1.bf16.xpose.msra.mxu0 0
        %3126 = vmatprep.subr.bf16.mxu0 0
        %3127 = vmatpush1.bf16.xpose.msra.mxu0 0
        %3128 = vmatprep.subr.bf16.mxu0 0
        %3129 = vmatpush1.bf16.xpose.msra.mxu0 0
        %3130 = vmatprep.subr.bf16.mxu0 0
        %3131 = vmatpush1.bf16.xpose.msra.mxu0 0
        %3132 = vmatprep.subr.bf16.mxu0 0
        %3133 = vmatpush1.bf16.xpose.msra.mxu0 0
        %3134 = vmatprep.subr.bf16.mxu0 0
        %3135 = vmatpush1.bf16.xpose.msra.mxu0 0
        %3136 = vmatprep.subr.bf16.mxu0 0
        %3137 = vmatpush1.bf16.xpose.msra.mxu0 0
        %3138 = vmatprep.subr.bf16.mxu0 0
        %3139 = vmatpush1.bf16.xpose.msra.mxu0 0
        %3140 = vmatprep.subr.bf16.mxu0 0
        %3141 = vmatpush1.bf16.xpose.msra.mxu0 0
        %3142 = vmatprep.subr.bf16.mxu0 0
        %3143 = vmatpush1.bf16.xpose.msra.mxu0 0
        %3144 = vmatprep.mubr.bf16.mxu0 0
        %3145 = vmatmul.mubr.bf16.gmra.mrb[0].mxu0 %v3107
        %v3146 = vpop.f32.mrb[0].mxu0
        %v3147 = vadd.f32 0.0, %v3146
        %v3148 = vpop.f32.mrb[0].mxu0
        %v3149 = vpop.f32.mrb[0].mxu0
        %v3150 = vpop.f32.mrb[0].mxu0
        %3151 = vdwg.mxu0
        %v3152 = vmul.f32 %v3147, 0.17677669
        %v3153 = vsel %vm2927, -10000.0, %v3152
        %v3154 = vsel %vm1115, %v3153, -inf
        %3155 = vmax.xlane.f32.xlu0 %v3154
        %v3156 = vpop.xlane.xlu0 %3155
        %v3157 = vsub.f32 %v3153, %v3156
        %v3158 = vmul.f32 %v3157, 1.442695
        %v3159 = vpow.pop %v3158
        %v3160 = vsel %vm1115, %v3159, 0.0
        %3161 = vadd.xlane.f32.xlu0 %v3160
        %v3162 = vpop.xlane.xlu0 %3161
        %v3163 = vrcp.pop %v3162
        %v3164 = vmul.f32 %v3159, %v3163
        %v3165 = vpack.c.bf16 %v3164, %v3164
        %3166 = vrot.lane.b32.xlu0 %v2879, 64
        %v3167 = vpop.permute.xlu0 %3166
        %v3169 = vsel %vm1115, %v3165, 0
        %v3172 = vsel %vm1131, %v3167, 0
        %3174 = vmatprep.subr.bf16.mxu0 0
        %3175 = vmatpush1.bf16.msra.mxu0 %v3172
        %3176 = vmatprep.subr.bf16.mxu0 0
        %3177 = vmatpush1.bf16.msra.mxu0 0
        %3178 = vmatprep.subr.bf16.mxu0 0
        %3179 = vmatpush1.bf16.msra.mxu0 0
        %3180 = vmatprep.subr.bf16.mxu0 0
        %3181 = vmatpush1.bf16.msra.mxu0 0
        %3182 = vmatprep.subr.bf16.mxu0 0
        %3183 = vmatpush1.bf16.msra.mxu0 0
        %3184 = vmatprep.subr.bf16.mxu0 0
        %3185 = vmatpush1.bf16.msra.mxu0 0
        %3186 = vmatprep.subr.bf16.mxu0 0
        %3187 = vmatpush1.bf16.msra.mxu0 0
        %3188 = vmatprep.subr.bf16.mxu0 0
        %3189 = vmatpush1.bf16.msra.mxu0 0
        %3190 = vmatprep.subr.bf16.mxu0 0
        %3191 = vmatpush1.bf16.msra.mxu0 0
        %3192 = vmatprep.subr.bf16.mxu0 0
        %3193 = vmatpush1.bf16.msra.mxu0 0
        %3194 = vmatprep.subr.bf16.mxu0 0
        %3195 = vmatpush1.bf16.msra.mxu0 0
        %3196 = vmatprep.subr.bf16.mxu0 0
        %3197 = vmatpush1.bf16.msra.mxu0 0
        %3198 = vmatprep.subr.bf16.mxu0 0
        %3199 = vmatpush1.bf16.msra.mxu0 0
        %3200 = vmatprep.subr.bf16.mxu0 0
        %3201 = vmatpush1.bf16.msra.mxu0 0
        %3202 = vmatprep.subr.bf16.mxu0 0
        %3203 = vmatpush1.bf16.msra.mxu0 0
        %3204 = vmatprep.subr.bf16.mxu0 0
        %3205 = vmatpush1.bf16.msra.mxu0 0
        %3206 = vmatprep.mubr.bf16.mxu0 0
        %3207 = vmatmul.mubr.bf16.gmra.mrb[0].mxu0 %v3169
        %v3208 = vpop.f32.mrb[0].mxu0
        %v3209 = vadd.f32 0.0, %v3208
        %v3210 = vpop.f32.mrb[0].mxu0
        %v3211 = vpop.f32.mrb[0].mxu0
        %v3212 = vpop.f32.mrb[0].mxu0
        %3213 = vdwg.mxu0
        %3214 = vrot.lane.b32.xlu0 %v2877, 32
        %v3215 = vpop.permute.xlu0 %3214
        %3216 = vrot.lane.b32.xlu0 %v2878, 32
        %v3217 = vpop.permute.xlu0 %3216
        %v3219 = vsel %vm1065, %v3215, 0
        %v3222 = vsel %vm1065, %v3217, 0
        %3224 = vmatprep.subr.bf16.mxu0 0
        %3225 = vmatpush1.bf16.xpose.msra.mxu0 %v3222
        %3226 = vmatprep.subr.bf16.mxu0 0
        %3227 = vmatpush1.bf16.xpose.msra.mxu0 0
        %3228 = vmatprep.subr.bf16.mxu0 0
        %3229 = vmatpush1.bf16.xpose.msra.mxu0 0
        %3230 = vmatprep.subr.bf16.mxu0 0
        %3231 = vmatpush1.bf16.xpose.msra.mxu0 0
        %3232 = vmatprep.subr.bf16.mxu0 0
        %3233 = vmatpush1.bf16.xpose.msra.mxu0 0
        %3234 = vmatprep.subr.bf16.mxu0 0
        %3235 = vmatpush1.bf16.xpose.msra.mxu0 0
        %3236 = vmatprep.subr.bf16.mxu0 0
        %3237 = vmatpush1.bf16.xpose.msra.mxu0 0
        %3238 = vmatprep.subr.bf16.mxu0 0
        %3239 = vmatpush1.bf16.xpose.msra.mxu0 0
        %3240 = vmatprep.subr.bf16.mxu0 0
        %3241 = vmatpush1.bf16.xpose.msra.mxu0 0
        %3242 = vmatprep.subr.bf16.mxu0 0
        %3243 = vmatpush1.bf16.xpose.msra.mxu0 0
        %3244 = vmatprep.subr.bf16.mxu0 0
        %3245 = vmatpush1.bf16.xpose.msra.mxu0 0
        %3246 = vmatprep.subr.bf16.mxu0 0
        %3247 = vmatpush1.bf16.xpose.msra.mxu0 0
        %3248 = vmatprep.subr.bf16.mxu0 0
        %3249 = vmatpush1.bf16.xpose.msra.mxu0 0
        %3250 = vmatprep.subr.bf16.mxu0 0
        %3251 = vmatpush1.bf16.xpose.msra.mxu0 0
        %3252 = vmatprep.subr.bf16.mxu0 0
        %3253 = vmatpush1.bf16.xpose.msra.mxu0 0
        %3254 = vmatprep.subr.bf16.mxu0 0
        %3255 = vmatpush1.bf16.xpose.msra.mxu0 0
        %3256 = vmatprep.mubr.bf16.mxu0 0
        %3257 = vmatmul.mubr.bf16.gmra.mrb[0].mxu0 %v3219
        %v3258 = vpop.f32.mrb[0].mxu0
        %v3259 = vadd.f32 0.0, %v3258
        %v3260 = vpop.f32.mrb[0].mxu0
        %v3261 = vpop.f32.mrb[0].mxu0
        %v3262 = vpop.f32.mrb[0].mxu0
        %3263 = vdwg.mxu0
        %v3264 = vmul.f32 %v3259, 0.17677669
        %v3265 = vsel %vm2927, -10000.0, %v3264
        %v3266 = vsel %vm1115, %v3265, -inf
        %3267 = vmax.xlane.f32.xlu0 %v3266
        %v3268 = vpop.xlane.xlu0 %3267
        %v3269 = vsub.f32 %v3265, %v3268
        %v3270 = vmul.f32 %v3269, 1.442695
        %v3271 = vpow.pop %v3270
        %v3272 = vsel %vm1115, %v3271, 0.0
        %3273 = vadd.xlane.f32.xlu0 %v3272
        %v3274 = vpop.xlane.xlu0 %3273
        %v3275 = vrcp.pop %v3274
        %v3276 = vmul.f32 %v3271, %v3275
        %v3277 = vpack.c.bf16 %v3276, %v3276
        %3278 = vrot.lane.b32.xlu0 %v2879, 32
        %v3279 = vpop.permute.xlu0 %3278
        %v3281 = vsel %vm1115, %v3277, 0
        %v3284 = vsel %vm1131, %v3279, 0
        %3286 = vmatprep.subr.bf16.mxu0 0
        %3287 = vmatpush1.bf16.msra.mxu0 %v3284
        %3288 = vmatprep.subr.bf16.mxu0 0
        %3289 = vmatpush1.bf16.msra.mxu0 0
        %3290 = vmatprep.subr.bf16.mxu0 0
        %3291 = vmatpush1.bf16.msra.mxu0 0
        %3292 = vmatprep.subr.bf16.mxu0 0
        %3293 = vmatpush1.bf16.msra.mxu0 0
        %3294 = vmatprep.subr.bf16.mxu0 0
        %3295 = vmatpush1.bf16.msra.mxu0 0
        %3296 = vmatprep.subr.bf16.mxu0 0
        %3297 = vmatpush1.bf16.msra.mxu0 0
        %3298 = vmatprep.subr.bf16.mxu0 0
        %3299 = vmatpush1.bf16.msra.mxu0 0
        %3300 = vmatprep.subr.bf16.mxu0 0
        %3301 = vmatpush1.bf16.msra.mxu0 0
        %3302 = vmatprep.subr.bf16.mxu0 0
        %3303 = vmatpush1.bf16.msra.mxu0 0
        %3304 = vmatprep.subr.bf16.mxu0 0
        %3305 = vmatpush1.bf16.msra.mxu0 0
        %3306 = vmatprep.subr.bf16.mxu0 0
        %3307 = vmatpush1.bf16.msra.mxu0 0
        %3308 = vmatprep.subr.bf16.mxu0 0
        %3309 = vmatpush1.bf16.msra.mxu0 0
        %3310 = vmatprep.subr.bf16.mxu0 0
        %3311 = vmatpush1.bf16.msra.mxu0 0
        %3312 = vmatprep.subr.bf16.mxu0 0
        %3313 = vmatpush1.bf16.msra.mxu0 0
        %3314 = vmatprep.subr.bf16.mxu0 0
        %3315 = vmatpush1.bf16.msra.mxu0 0
        %3316 = vmatprep.subr.bf16.mxu0 0
        %3317 = vmatpush1.bf16.msra.mxu0 0
        %3318 = vmatprep.mubr.bf16.mxu0 0
        %3319 = vmatmul.mubr.bf16.gmra.mrb[0].mxu0 %v3281
        %v3320 = vpop.f32.mrb[0].mxu0
        %v3321 = vadd.f32 0.0, %v3320
        %v3322 = vpop.f32.mrb[0].mxu0
        %v3323 = vpop.f32.mrb[0].mxu0
        %v3324 = vpop.f32.mrb[0].mxu0
        %3325 = vdwg.mxu0
        %3327 = vrot.lane.b32.xlu0 %v3097, 32
        %v3328 = vpop.permute.xlu0 %3327
        %3331 = vrot.lane.b32.xlu0 %v3209, 64
        %v3332 = vpop.permute.xlu0 %3331
        %3335 = vrot.lane.b32.xlu0 %v3321, 96
        %v3336 = vpop.permute.xlu0 %3335
        %v3338 = vsel %vm1065, %v2982, %v3328
        %v3339 = vsel %vm1527, %v3338, %v3332
        %v3340 = vsel %vm1529, %v3339, %v3336
        %v3341 = vpack.c.bf16 %v3340, %v2876
        %v3342 = vld [vmem:[%s672] sm:$0xf]
        %v3343 = vld [vmem:[%s672 + $0x4] sm:$0xf]
        %v3344 = vld [vmem:[%s672 + $0x8] sm:$0xf]
        %v3345 = vld [vmem:[%s672 + $0xc] sm:$0xf]
        %v3346 = vld [vmem:[%s672 + $0x10] sm:$0xf]
        %v3347 = vld [vmem:[%s672 + $0x14] sm:$0xf]
        %v3348 = vld [vmem:[%s672 + $0x18] sm:$0xf]
        %v3349 = vld [vmem:[%s672 + $0x1c] sm:$0xf]
        %v3350 = vld [vmem:[%s672 + $0x20] sm:$0xf]
        %v3351 = vld [vmem:[%s672 + $0x24] sm:$0xf]
        %v3352 = vld [vmem:[%s672 + $0x28] sm:$0xf]
        %v3353 = vld [vmem:[%s672 + $0x2c] sm:$0xf]
        %v3354 = vld [vmem:[%s672 + $0x30] sm:$0xf]
        %v3355 = vld [vmem:[%s672 + $0x34] sm:$0xf]
        %v3356 = vld [vmem:[%s672 + $0x38] sm:$0xf]
        %v3357 = vld [vmem:[%s672 + $0x3c] sm:$0xf]
        %v3358 = vlaneseq
        %v3359 = vshrl.u32 %v3358, 7
        %v3360 = vsub.s32 5, %v3359
        %v3361 = vrot.slane %v801, %v3360
        %v3378 = vunpack.c.l.b16 %v3342
        %v3379 = vunpack.c.l.b16 %v3343
        %v3380 = vunpack.c.l.b16 %v3344
        %v3381 = vunpack.c.l.b16 %v3345
        %v3382 = vunpack.c.l.b16 %v3346
        %v3383 = vunpack.c.l.b16 %v3347
        %v3384 = vunpack.c.l.b16 %v3348
        %v3385 = vunpack.c.l.b16 %v3349
        %v3386 = vunpack.c.l.b16 %v3350
        %v3387 = vunpack.c.l.b16 %v3351
        %v3388 = vunpack.c.l.b16 %v3352
        %v3389 = vunpack.c.l.b16 %v3353
        %v3390 = vunpack.c.l.b16 %v3354
        %v3391 = vunpack.c.l.b16 %v3355
        %v3392 = vunpack.c.l.b16 %v3356
        %v3393 = vunpack.c.l.b16 %v3357
        %v3394 = vpack.c.b16 %v3379, %v3378
        %v3395 = vpack.c.b16 %v3381, %v3380
        %v3396 = vpack.c.b16 %v3383, %v3382
        %v3397 = vpack.c.b16 %v3385, %v3384
        %v3398 = vpack.c.b16 %v3387, %v3386
        %v3399 = vpack.c.b16 %v3389, %v3388
        %v3400 = vpack.c.b16 %v3391, %v3390
        %v3401 = vpack.c.b16 %v3393, %v3392
        %3410 = vmatprep.subr.bf16.mxu0 0
        %3411 = vmatpush1.bf16.msra.mxu0 %v3394
        %3412 = vmatprep.subr.bf16.mxu0 0
        %3413 = vmatpush1.bf16.msra.mxu0 %v3395
        %3414 = vmatprep.subr.bf16.mxu0 0
        %3415 = vmatpush1.bf16.msra.mxu0 %v3396
        %3416 = vmatprep.subr.bf16.mxu0 0
        %3417 = vmatpush1.bf16.msra.mxu0 %v3397
        %3418 = vmatprep.subr.bf16.mxu0 0
        %3419 = vmatpush1.bf16.msra.mxu0 %v3398
        %3420 = vmatprep.subr.bf16.mxu0 0
        %3421 = vmatpush1.bf16.msra.mxu0 %v3399
        %3422 = vmatprep.subr.bf16.mxu0 0
        %3423 = vmatpush1.bf16.msra.mxu0 %v3400
        %3424 = vmatprep.subr.bf16.mxu0 0
        %3425 = vmatpush1.bf16.msra.mxu0 %v3401
        %3426 = vmatprep.subr.bf16.mxu0 0
        %3427 = vmatpush1.bf16.msra.mxu0 0
        %3428 = vmatprep.subr.bf16.mxu0 0
        %3429 = vmatpush1.bf16.msra.mxu0 0
        %3430 = vmatprep.subr.bf16.mxu0 0
        %3431 = vmatpush1.bf16.msra.mxu0 0
        %3432 = vmatprep.subr.bf16.mxu0 0
        %3433 = vmatpush1.bf16.msra.mxu0 0
        %3434 = vmatprep.subr.bf16.mxu0 0
        %3435 = vmatpush1.bf16.msra.mxu0 0
        %3436 = vmatprep.subr.bf16.mxu0 0
        %3437 = vmatpush1.bf16.msra.mxu0 0
        %3438 = vmatprep.subr.bf16.mxu0 0
        %3439 = vmatpush1.bf16.msra.mxu0 0
        %3440 = vmatprep.subr.bf16.mxu0 0
        %3441 = vmatpush1.bf16.msra.mxu0 0
        %3442 = vmatprep.mubr.bf16.mxu0 0
        %3443 = vmatmul.mubr.bf16.gmra.mrb[0].mxu0 %v3341
        %v3444 = vpop.f32.mrb[0].mxu0
        %v3445 = vadd.f32 %v3361, %v3444
        %v3446 = vpop.f32.mrb[0].mxu0
        %v3447 = vpop.f32.mrb[0].mxu0
        %v3448 = vadd.f32 %v3361, %v3447
        %v3449 = vpop.f32.mrb[0].mxu0
        %3450 = vdwg.mxu0
        %v3451 = vadd.f32 %v3445, %v2154
        %v3452 = vadd.f32 %v3448, %v2155
        %3453 = vadd.xlane.f32.xlu0 %v3451
        %v3454 = vpop.xlane.xlu0 %3453
        %3455 = vadd.xlane.f32.xlu0 %v3452
        %v3456 = vpop.xlane.xlu0 %3455
        %v3457 = vmul.f32 %v3454, %v2111
        %v3458 = vmul.f32 %v3456, %v2111
        %v3459 = vsub.f32 %v3451, %v3457
        %v3460 = vsub.f32 %v3452, %v3458
        %v3461 = vmul.f32 %v3459, %v3459
        %v3462 = vmul.f32 %v3460, %v3460
        %3463 = vadd.xlane.f32.xlu0 %v3461
        %v3464 = vpop.xlane.xlu0 %3463
        %3465 = vadd.xlane.f32.xlu0 %v3462
        %v3466 = vpop.xlane.xlu0 %3465
        %v3467 = vmul.f32 %v3464, 0.007874016
        %v3468 = vmul.f32 %v3466, 0.007874016
        %v3469 = vrsqrt.pop %v3467
        %v3470 = vmul.f32 %v3467, %v3469
        %vm3471 = vcmp.eq.f32.partialorder %v3467, inf
        %v3472 = vsel %vm3471, %v3467, %v3470
        %vm3473 = vcmp.eq.f32.partialorder %v3467, 0.0
        %v3474 = vand.u32 %v3467, 2147483648
        %v3475 = vsel %vm3473, %v3474, %v3472
        %v3476 = vrsqrt.pop %v3468
        %v3477 = vmul.f32 %v3468, %v3476
        %vm3478 = vcmp.eq.f32.partialorder %v3468, inf
        %v3479 = vsel %vm3478, %v3468, %v3477
        %vm3480 = vcmp.eq.f32.partialorder %v3468, 0.0
        %v3481 = vand.u32 %v3468, 2147483648
        %v3482 = vsel %vm3480, %v3481, %v3479
        %v3483 = vlaneseq
        %v3484 = vshrl.u32 %v3483, 7
        %v3485 = vsub.s32 1, %v3484
        %v3486 = vrot.slane %v804, %v3485
        %v3487 = vmul.f32 %v3486, %v3459
        %v3488 = vmul.f32 %v3486, %v3460
        %v3489 = vadd.f32 %v3475, 1e-06
        %v3490 = vadd.f32 %v3482, 1e-06
        %v3491 = vrcp.pop %v3489
        %v3492 = vmul.f32 %v3487, %v3491
        %v3493 = vrcp.pop %v3490
        %v3494 = vmul.f32 %v3488, %v3493
        %v3495 = vlaneseq
        %v3496 = vshrl.u32 %v3495, 7
        %v3497 = vsub.s32 2, %v3496
        %v3498 = vrot.slane %v804, %v3497
        %v3499 = vadd.f32 %v3492, %v3498
        %v3500 = vadd.f32 %v3494, %v3498
        %v3501 = vpack.c.bf16 %v3500, %v3499
        %v3502 = vld [vmem:[%s681] sm:$0xff]
        %v3503 = vld [vmem:[%s681 + $0x8] sm:$0xff]
        %v3504 = vld [vmem:[%s681 + $0x10] sm:$0xff]
        %v3505 = vld [vmem:[%s681 + $0x18] sm:$0xff]
        %v3506 = vld [vmem:[%s681 + $0x20] sm:$0xff]
        %v3507 = vld [vmem:[%s681 + $0x28] sm:$0xff]
        %v3508 = vld [vmem:[%s681 + $0x30] sm:$0xff]
        %v3509 = vld [vmem:[%s681 + $0x38] sm:$0xff]
        %v3510 = vld [vmem:[%s681 + $0x40] sm:$0xff]
        %v3511 = vld [vmem:[%s681 + $0x48] sm:$0xff]
        %v3512 = vld [vmem:[%s681 + $0x50] sm:$0xff]
        %v3513 = vld [vmem:[%s681 + $0x58] sm:$0xff]
        %v3514 = vld [vmem:[%s681 + $0x60] sm:$0xff]
        %v3515 = vld [vmem:[%s681 + $0x68] sm:$0xff]
        %v3516 = vld [vmem:[%s681 + $0x70] sm:$0xff]
        %v3517 = vld [vmem:[%s681 + $0x78] sm:$0xff]
        %v3518 = vlaneseq
        %v3519 = vshrl.u32 %v3518, 7
        %v3520 = vsub.s32 2, %v3519
        %v3521 = vrot.slane %v801, %v3520
        %v3522 = vlaneseq
        %v3523 = vshrl.u32 %v3522, 7
        %v3524 = vsub.s32 2, %v3523
        %v3525 = vrot.slane %v802, %v3524
        %v3542 = vunpack.c.l.b16 %v3502
        %v3543 = vunpack.c.h.b16 %v3502
        %v3544 = vunpack.c.l.b16 %v3503
        %v3545 = vunpack.c.h.b16 %v3503
        %v3546 = vunpack.c.l.b16 %v3504
        %v3547 = vunpack.c.h.b16 %v3504
        %v3548 = vunpack.c.l.b16 %v3505
        %v3549 = vunpack.c.h.b16 %v3505
        %v3550 = vunpack.c.l.b16 %v3506
        %v3551 = vunpack.c.h.b16 %v3506
        %v3552 = vunpack.c.l.b16 %v3507
        %v3553 = vunpack.c.h.b16 %v3507
        %v3554 = vunpack.c.l.b16 %v3508
        %v3555 = vunpack.c.h.b16 %v3508
        %v3556 = vunpack.c.l.b16 %v3509
        %v3557 = vunpack.c.h.b16 %v3509
        %v3558 = vunpack.c.l.b16 %v3510
        %v3559 = vunpack.c.h.b16 %v3510
        %v3560 = vunpack.c.l.b16 %v3511
        %v3561 = vunpack.c.h.b16 %v3511
        %v3562 = vunpack.c.l.b16 %v3512
        %v3563 = vunpack.c.h.b16 %v3512
        %v3564 = vunpack.c.l.b16 %v3513
        %v3565 = vunpack.c.h.b16 %v3513
        %v3566 = vunpack.c.l.b16 %v3514
        %v3567 = vunpack.c.h.b16 %v3514
        %v3568 = vunpack.c.l.b16 %v3515
        %v3569 = vunpack.c.h.b16 %v3515
        %v3570 = vunpack.c.l.b16 %v3516
        %v3571 = vunpack.c.h.b16 %v3516
        %v3572 = vunpack.c.l.b16 %v3517
        %v3573 = vunpack.c.h.b16 %v3517
        %v3574 = vpack.c.b16 %v3544, %v3542
        %v3575 = vpack.c.b16 %v3545, %v3543
        %v3576 = vpack.c.b16 %v3548, %v3546
        %v3577 = vpack.c.b16 %v3549, %v3547
        %v3578 = vpack.c.b16 %v3552, %v3550
        %v3579 = vpack.c.b16 %v3553, %v3551
        %v3580 = vpack.c.b16 %v3556, %v3554
        %v3581 = vpack.c.b16 %v3557, %v3555
        %v3582 = vpack.c.b16 %v3560, %v3558
        %v3583 = vpack.c.b16 %v3561, %v3559
        %v3584 = vpack.c.b16 %v3564, %v3562
        %v3585 = vpack.c.b16 %v3565, %v3563
        %v3586 = vpack.c.b16 %v3568, %v3566
        %v3587 = vpack.c.b16 %v3569, %v3567
        %v3588 = vpack.c.b16 %v3572, %v3570
        %v3589 = vpack.c.b16 %v3573, %v3571
        %3606 = vmatprep.subr.bf16.mxu0 %v3575
        %3607 = vmatpush1.bf16.msra.mxu0 %v3574
        %3608 = vmatprep.subr.bf16.mxu0 %v3577
        %3609 = vmatpush1.bf16.msra.mxu0 %v3576
        %3610 = vmatprep.subr.bf16.mxu0 %v3579
        %3611 = vmatpush1.bf16.msra.mxu0 %v3578
        %3612 = vmatprep.subr.bf16.mxu0 %v3581
        %3613 = vmatpush1.bf16.msra.mxu0 %v3580
        %3614 = vmatprep.subr.bf16.mxu0 %v3583
        %3615 = vmatpush1.bf16.msra.mxu0 %v3582
        %3616 = vmatprep.subr.bf16.mxu0 %v3585
        %3617 = vmatpush1.bf16.msra.mxu0 %v3584
        %3618 = vmatprep.subr.bf16.mxu0 %v3587
        %3619 = vmatpush1.bf16.msra.mxu0 %v3586
        %3620 = vmatprep.subr.bf16.mxu0 %v3589
        %3621 = vmatpush1.bf16.msra.mxu0 %v3588
        %3622 = vmatprep.subr.bf16.mxu0 0
        %3623 = vmatpush1.bf16.msra.mxu0 0
        %3624 = vmatprep.subr.bf16.mxu0 0
        %3625 = vmatpush1.bf16.msra.mxu0 0
        %3626 = vmatprep.subr.bf16.mxu0 0
        %3627 = vmatpush1.bf16.msra.mxu0 0
        %3628 = vmatprep.subr.bf16.mxu0 0
        %3629 = vmatpush1.bf16.msra.mxu0 0
        %3630 = vmatprep.subr.bf16.mxu0 0
        %3631 = vmatpush1.bf16.msra.mxu0 0
        %3632 = vmatprep.subr.bf16.mxu0 0
        %3633 = vmatpush1.bf16.msra.mxu0 0
        %3634 = vmatprep.subr.bf16.mxu0 0
        %3635 = vmatpush1.bf16.msra.mxu0 0
        %3636 = vmatprep.subr.bf16.mxu0 0
        %3637 = vmatpush1.bf16.msra.mxu0 0
        %3638 = vmatprep.mubr.bf16.mxu0 0
        %3639 = vmatmul.mubr.bf16.gmra.mrb[0].mxu0 %v3501
        %v3640 = vpop.f32.mrb[0].mxu0
        %v3641 = vadd.f32 %v3521, %v3640
        %v3642 = vpop.f32.mrb[0].mxu0
        %v3643 = vadd.f32 %v3525, %v3642
        %v3644 = vpop.f32.mrb[0].mxu0
        %v3645 = vadd.f32 %v3521, %v3644
        %v3646 = vpop.f32.mrb[0].mxu0
        %v3647 = vadd.f32 %v3525, %v3646
        %3648 = vdwg.mxu0
        %v3649 = vmax.f32 %v3641, 0.0
        %v3650 = vmax.f32 %v3643, 0.0
        %v3651 = vmax.f32 %v3645, 0.0
        %v3652 = vmax.f32 %v3647, 0.0
        %v3653 = vpack.c.bf16 %v3651, %v3649
        %v3654 = vpack.c.bf16 %v3652, %v3650
        %v3655 = vld [vmem:[%s690] sm:$0xf]
        %v3656 = vld [vmem:[%s690 + $0x4] sm:$0xf]
        %v3657 = vld [vmem:[%s690 + $0x8] sm:$0xf]
        %v3658 = vld [vmem:[%s690 + $0xc] sm:$0xf]
        %v3659 = vld [vmem:[%s690 + $0x10] sm:$0xf]
        %v3660 = vld [vmem:[%s690 + $0x14] sm:$0xf]
        %v3661 = vld [vmem:[%s690 + $0x18] sm:$0xf]
        %v3662 = vld [vmem:[%s690 + $0x1c] sm:$0xf]
        %v3663 = vld [vmem:[%s690 + $0x20] sm:$0xf]
        %v3664 = vld [vmem:[%s690 + $0x24] sm:$0xf]
        %v3665 = vld [vmem:[%s690 + $0x28] sm:$0xf]
        %v3666 = vld [vmem:[%s690 + $0x2c] sm:$0xf]
        %v3667 = vld [vmem:[%s690 + $0x30] sm:$0xf]
        %v3668 = vld [vmem:[%s690 + $0x34] sm:$0xf]
        %v3669 = vld [vmem:[%s690 + $0x38] sm:$0xf]
        %v3670 = vld [vmem:[%s690 + $0x3c] sm:$0xf]
        %v3671 = vld [vmem:[%s690 + $0x40] sm:$0xf]
        %v3672 = vld [vmem:[%s690 + $0x44] sm:$0xf]
        %v3673 = vld [vmem:[%s690 + $0x48] sm:$0xf]
        %v3674 = vld [vmem:[%s690 + $0x4c] sm:$0xf]
        %v3675 = vld [vmem:[%s690 + $0x50] sm:$0xf]
        %v3676 = vld [vmem:[%s690 + $0x54] sm:$0xf]
        %v3677 = vld [vmem:[%s690 + $0x58] sm:$0xf]
        %v3678 = vld [vmem:[%s690 + $0x5c] sm:$0xf]
        %v3679 = vld [vmem:[%s690 + $0x60] sm:$0xf]
        %v3680 = vld [vmem:[%s690 + $0x64] sm:$0xf]
        %v3681 = vld [vmem:[%s690 + $0x68] sm:$0xf]
        %v3682 = vld [vmem:[%s690 + $0x6c] sm:$0xf]
        %v3683 = vld [vmem:[%s690 + $0x70] sm:$0xf]
        %v3684 = vld [vmem:[%s690 + $0x74] sm:$0xf]
        %v3685 = vld [vmem:[%s690 + $0x78] sm:$0xf]
        %v3686 = vld [vmem:[%s690 + $0x7c] sm:$0xf]
        %v3687 = vlaneseq
        %v3688 = vshrl.u32 %v3687, 7
        %v3689 = vsub.s32 6, %v3688
        %v3690 = vrot.slane %v801, %v3689
        %v3723 = vunpack.c.l.b16 %v3655
        %v3724 = vunpack.c.l.b16 %v3656
        %v3725 = vunpack.c.l.b16 %v3657
        %v3726 = vunpack.c.l.b16 %v3658
        %v3727 = vunpack.c.l.b16 %v3659
        %v3728 = vunpack.c.l.b16 %v3660
        %v3729 = vunpack.c.l.b16 %v3661
        %v3730 = vunpack.c.l.b16 %v3662
        %v3731 = vunpack.c.l.b16 %v3663
        %v3732 = vunpack.c.l.b16 %v3664
        %v3733 = vunpack.c.l.b16 %v3665
        %v3734 = vunpack.c.l.b16 %v3666
        %v3735 = vunpack.c.l.b16 %v3667
        %v3736 = vunpack.c.l.b16 %v3668
        %v3737 = vunpack.c.l.b16 %v3669
        %v3738 = vunpack.c.l.b16 %v3670
        %v3739 = vunpack.c.l.b16 %v3671
        %v3740 = vunpack.c.l.b16 %v3672
        %v3741 = vunpack.c.l.b16 %v3673
        %v3742 = vunpack.c.l.b16 %v3674
        %v3743 = vunpack.c.l.b16 %v3675
        %v3744 = vunpack.c.l.b16 %v3676
        %v3745 = vunpack.c.l.b16 %v3677
        %v3746 = vunpack.c.l.b16 %v3678
        %v3747 = vunpack.c.l.b16 %v3679
        %v3748 = vunpack.c.l.b16 %v3680
        %v3749 = vunpack.c.l.b16 %v3681
        %v3750 = vunpack.c.l.b16 %v3682
        %v3751 = vunpack.c.l.b16 %v3683
        %v3752 = vunpack.c.l.b16 %v3684
        %v3753 = vunpack.c.l.b16 %v3685
        %v3754 = vunpack.c.l.b16 %v3686
        %v3755 = vpack.c.b16 %v3724, %v3723
        %v3756 = vpack.c.b16 %v3726, %v3725
        %v3757 = vpack.c.b16 %v3728, %v3727
        %v3758 = vpack.c.b16 %v3730, %v3729
        %v3759 = vpack.c.b16 %v3732, %v3731
        %v3760 = vpack.c.b16 %v3734, %v3733
        %v3761 = vpack.c.b16 %v3736, %v3735
        %v3762 = vpack.c.b16 %v3738, %v3737
        %v3763 = vpack.c.b16 %v3740, %v3739
        %v3764 = vpack.c.b16 %v3742, %v3741
        %v3765 = vpack.c.b16 %v3744, %v3743
        %v3766 = vpack.c.b16 %v3746, %v3745
        %v3767 = vpack.c.b16 %v3748, %v3747
        %v3768 = vpack.c.b16 %v3750, %v3749
        %v3769 = vpack.c.b16 %v3752, %v3751
        %v3770 = vpack.c.b16 %v3754, %v3753
        %3787 = vmatprep.subr.bf16.mxu0 0
        %3788 = vmatpush1.bf16.msra.mxu0 %v3755
        %3789 = vmatprep.subr.bf16.mxu0 0
        %3790 = vmatpush1.bf16.msra.mxu0 %v3756
        %3791 = vmatprep.subr.bf16.mxu0 0
        %3792 = vmatpush1.bf16.msra.mxu0 %v3757
        %3793 = vmatprep.subr.bf16.mxu0 0
        %3794 = vmatpush1.bf16.msra.mxu0 %v3758
        %3795 = vmatprep.subr.bf16.mxu0 0
        %3796 = vmatpush1.bf16.msra.mxu0 %v3759
        %3797 = vmatprep.subr.bf16.mxu0 0
        %3798 = vmatpush1.bf16.msra.mxu0 %v3760
        %3799 = vmatprep.subr.bf16.mxu0 0
        %3800 = vmatpush1.bf16.msra.mxu0 %v3761
        %3801 = vmatprep.subr.bf16.mxu0 0
        %3802 = vmatpush1.bf16.msra.mxu0 %v3762
        %3803 = vmatprep.subr.bf16.mxu0 0
        %3804 = vmatpush1.bf16.msra.mxu0 %v3763
        %3805 = vmatprep.subr.bf16.mxu0 0
        %3806 = vmatpush1.bf16.msra.mxu0 %v3764
        %3807 = vmatprep.subr.bf16.mxu0 0
        %3808 = vmatpush1.bf16.msra.mxu0 %v3765
        %3809 = vmatprep.subr.bf16.mxu0 0
        %3810 = vmatpush1.bf16.msra.mxu0 %v3766
        %3811 = vmatprep.subr.bf16.mxu0 0
        %3812 = vmatpush1.bf16.msra.mxu0 %v3767
        %3813 = vmatprep.subr.bf16.mxu0 0
        %3814 = vmatpush1.bf16.msra.mxu0 %v3768
        %3815 = vmatprep.subr.bf16.mxu0 0
        %3816 = vmatpush1.bf16.msra.mxu0 %v3769
        %3817 = vmatprep.subr.bf16.mxu0 0
        %3818 = vmatpush1.bf16.msra.mxu0 %v3770
        %3819 = vmatprep.mubr.bf16.mxu0 %v3654
        %3820 = vmatmul.mubr.bf16.gmra.mrb[0].mxu0 %v3653
        %v3821 = vpop.f32.mrb[0].mxu0
        %v3822 = vadd.f32 %v3690, %v3821
        %v3823 = vpop.f32.mrb[0].mxu0
        %v3824 = vpop.f32.mrb[0].mxu0
        %v3825 = vadd.f32 %v3690, %v3824
        %v3826 = vpop.f32.mrb[0].mxu0
        %3827 = vdwg.mxu0
        %v3828 = vadd.f32 %v3822, %v3499
        %v3829 = vadd.f32 %v3825, %v3500
        %3830 = vadd.xlane.f32.xlu0 %v3828
        %v3831 = vpop.xlane.xlu0 %3830
        %3832 = vadd.xlane.f32.xlu0 %v3829
        %v3833 = vpop.xlane.xlu0 %3832
        %v3834 = vmul.f32 %v3831, %v2111
        %v3835 = vmul.f32 %v3833, %v2111
        %v3836 = vsub.f32 %v3828, %v3834
        %v3837 = vsub.f32 %v3829, %v3835
        %v3838 = vmul.f32 %v3836, %v3836
        %v3839 = vmul.f32 %v3837, %v3837
        %3840 = vadd.xlane.f32.xlu0 %v3838
        %v3841 = vpop.xlane.xlu0 %3840
        %3842 = vadd.xlane.f32.xlu0 %v3839
        %v3843 = vpop.xlane.xlu0 %3842
        %v3844 = vmul.f32 %v3841, 0.007874016
        %v3845 = vmul.f32 %v3843, 0.007874016
        %v3846 = vrsqrt.pop %v3844
        %v3847 = vmul.f32 %v3844, %v3846
        %vm3848 = vcmp.eq.f32.partialorder %v3844, inf
        %v3849 = vsel %vm3848, %v3844, %v3847
        %vm3850 = vcmp.eq.f32.partialorder %v3844, 0.0
        %v3851 = vand.u32 %v3844, 2147483648
        %v3852 = vsel %vm3850, %v3851, %v3849
        %v3853 = vrsqrt.pop %v3845
        %v3854 = vmul.f32 %v3845, %v3853
        %vm3855 = vcmp.eq.f32.partialorder %v3845, inf
        %v3856 = vsel %vm3855, %v3845, %v3854
        %vm3857 = vcmp.eq.f32.partialorder %v3845, 0.0
        %v3858 = vand.u32 %v3845, 2147483648
        %v3859 = vsel %vm3857, %v3858, %v3856
        %v3860 = vlaneseq
        %v3861 = vshrl.u32 %v3860, 7
        %v3862 = vsub.s32 3, %v3861
        %v3863 = vrot.slane %v804, %v3862
        %v3864 = vmul.f32 %v3863, %v3836
        %v3865 = vmul.f32 %v3863, %v3837
        %v3866 = vadd.f32 %v3852, 1e-06
        %v3867 = vadd.f32 %v3859, 1e-06
        %v3868 = vrcp.pop %v3866
        %v3869 = vmul.f32 %v3864, %v3868
        %v3870 = vrcp.pop %v3867
        %v3871 = vmul.f32 %v3865, %v3870
        %v3872 = vlaneseq
        %v3873 = vshrl.u32 %v3872, 7
        %v3874 = vsub.s32 4, %v3873
        %v3875 = vrot.slane %v804, %v3874
        %v3876 = vadd.f32 %v3869, %v3875
        %v3877 = vadd.f32 %v3871, %v3875
        %3878 = vst [vmem:[#allocation2] sm:$0xff] %v3876
        %3879 = vst [vmem:[#allocation2 + $0x8] sm:$0xff] %v3877
        %p3880 = scmp.eq.s32.totalorder %s40, 1
        // Predicated region
        $region125: #{decoder_forward.1} parent=75 // pred_check
          %p3881 = pneg %p3880
        $region126: #{decoder_forward.1} parent=75 // pred_check_branch
          %3883 = sbr.rel (%p3881) target = $region128
        $region127: #{decoder_forward.1} parent=75 // pred_region
          %v3884 = vpack.c.bf16 %v3877, %v3876
          %v3885 = vld [vmem:[#allocation20] sm:$0xf]
          %v3886 = vld [vmem:[#allocation20 + $0x4] sm:$0xf]
          %v3887 = vld [vmem:[#allocation20 + $0x8] sm:$0xf]
          %v3888 = vld [vmem:[#allocation20 + $0xc] sm:$0xf]
          %v3889 = vld [vmem:[#allocation20 + $0x10] sm:$0xf]
          %v3890 = vld [vmem:[#allocation20 + $0x14] sm:$0xf]
          %v3891 = vld [vmem:[#allocation20 + $0x18] sm:$0xf]
          %v3892 = vld [vmem:[#allocation20 + $0x1c] sm:$0xf]
          %v3893 = vld [vmem:[#allocation20 + $0x20] sm:$0xf]
          %v3894 = vld [vmem:[#allocation20 + $0x24] sm:$0xf]
          %v3895 = vld [vmem:[#allocation20 + $0x28] sm:$0xf]
          %v3896 = vld [vmem:[#allocation20 + $0x2c] sm:$0xf]
          %v3897 = vld [vmem:[#allocation20 + $0x30] sm:$0xf]
          %v3898 = vld [vmem:[#allocation20 + $0x34] sm:$0xf]
          %v3899 = vld [vmem:[#allocation20 + $0x38] sm:$0xf]
          %v3900 = vld [vmem:[#allocation20 + $0x3c] sm:$0xf]
          %v3901 = vld [vmem:[%s13] sm:$0x1]
          %v3903 = vlaneseq
          %v3904 = vshrl.u32 %v3903, 7
          %v3905 = vsub.s32 0, %v3904
          %v3906 = vrot.slane %v3901, %v3905
          %v3924 = vunpack.c.l.b16 %v3885
          %v3925 = vunpack.c.l.b16 %v3886
          %v3926 = vunpack.c.l.b16 %v3887
          %v3927 = vunpack.c.l.b16 %v3888
          %v3928 = vunpack.c.l.b16 %v3889
          %v3929 = vunpack.c.l.b16 %v3890
          %v3930 = vunpack.c.l.b16 %v3891
          %v3931 = vunpack.c.l.b16 %v3892
          %v3932 = vunpack.c.l.b16 %v3893
          %v3933 = vunpack.c.l.b16 %v3894
          %v3934 = vunpack.c.l.b16 %v3895
          %v3935 = vunpack.c.l.b16 %v3896
          %v3936 = vunpack.c.l.b16 %v3897
          %v3937 = vunpack.c.l.b16 %v3898
          %v3938 = vunpack.c.l.b16 %v3899
          %v3939 = vunpack.c.l.b16 %v3900
          %v3940 = vpack.c.b16 %v3925, %v3924
          %v3941 = vpack.c.b16 %v3927, %v3926
          %v3942 = vpack.c.b16 %v3929, %v3928
          %v3943 = vpack.c.b16 %v3931, %v3930
          %v3944 = vpack.c.b16 %v3933, %v3932
          %v3945 = vpack.c.b16 %v3935, %v3934
          %v3946 = vpack.c.b16 %v3937, %v3936
          %v3947 = vpack.c.b16 %v3939, %v3938
          %3956 = vmatprep.subr.bf16.mxu0 0
          %3957 = vmatpush1.bf16.msra.mxu0 %v3940
          %3958 = vmatprep.subr.bf16.mxu0 0
          %3959 = vmatpush1.bf16.msra.mxu0 %v3941
          %3960 = vmatprep.subr.bf16.mxu0 0
          %3961 = vmatpush1.bf16.msra.mxu0 %v3942
          %3962 = vmatprep.subr.bf16.mxu0 0
          %3963 = vmatpush1.bf16.msra.mxu0 %v3943
          %3964 = vmatprep.subr.bf16.mxu0 0
          %3965 = vmatpush1.bf16.msra.mxu0 %v3944
          %3966 = vmatprep.subr.bf16.mxu0 0
          %3967 = vmatpush1.bf16.msra.mxu0 %v3945
          %3968 = vmatprep.subr.bf16.mxu0 0
          %3969 = vmatpush1.bf16.msra.mxu0 %v3946
          %3970 = vmatprep.subr.bf16.mxu0 0
          %3971 = vmatpush1.bf16.msra.mxu0 %v3947
          %3972 = vmatprep.subr.bf16.mxu0 0
          %3973 = vmatpush1.bf16.msra.mxu0 0
          %3974 = vmatprep.subr.bf16.mxu0 0
          %3975 = vmatpush1.bf16.msra.mxu0 0
          %3976 = vmatprep.subr.bf16.mxu0 0
          %3977 = vmatpush1.bf16.msra.mxu0 0
          %3978 = vmatprep.subr.bf16.mxu0 0
          %3979 = vmatpush1.bf16.msra.mxu0 0
          %3980 = vmatprep.subr.bf16.mxu0 0
          %3981 = vmatpush1.bf16.msra.mxu0 0
          %3982 = vmatprep.subr.bf16.mxu0 0
          %3983 = vmatpush1.bf16.msra.mxu0 0
          %3984 = vmatprep.subr.bf16.mxu0 0
          %3985 = vmatpush1.bf16.msra.mxu0 0
          %3986 = vmatprep.subr.bf16.mxu0 0
          %3987 = vmatpush1.bf16.msra.mxu0 0
          %3988 = vmatprep.mubr.bf16.mxu0 0
          %3989 = vmatmul.mubr.bf16.gmra.mrb[0].mxu0 %v3884
          %v3990 = vpop.f32.mrb[0].mxu0
          %v3991 = vadd.f32 %v3906, %v3990
          %v3992 = vpop.f32.mrb[0].mxu0
          %v3993 = vpop.f32.mrb[0].mxu0
          %v3994 = vadd.f32 %v3906, %v3993
          %v3995 = vpop.f32.mrb[0].mxu0
          %3996 = vdwg.mxu0
          %3997 = vst [vmem:[#allocation21] sm:$0xff] %v3991
          %3998 = vst [vmem:[#allocation21 + $0x8] sm:$0xff] %v3994
        $region128: #{decoder_forward.1} parent=75 // pred_fallthru
          _
        // Predicated region
        $region129: #{decoder_forward.1} parent=75 // pred_check
          %p3999 = pneg %p387
        $region130: #{decoder_forward.1} parent=75 // pred_check_branch
          %4001 = sbr.rel (%p3999) target = $region132
        $region131: #{decoder_forward.1} parent=75 // pred_region
          %s4003 = ssub.s32 256, 256
          %4004 = vsyncadd [#allocation5], %s4003
          %s4005 = sshll.u32 [#allocation21], 4
          %s4006 = int_to_ptr.vmem [resolvable:$true] %s4005
          %4011 = dma.vmem_to_hbm [thread:$0]  %s4006, 256, %s14, [#allocation5], 128, 128, 8
        $region132: #{decoder_forward.1} parent=75 // pred_fallthru
          _
        // Predicated region
        $region133: #{decoder_forward.1} parent=75 // pred_check
          %p4012 = pneg %p387
        $region134: #{decoder_forward.1} parent=75 // pred_check_branch
          %4014 = sbr.rel (%p4012) target = $region136
        $region135: #{decoder_forward.1} parent=75 // pred_region
          %4015 = dma.done [#allocation5], 256
        $region136: #{decoder_forward.1} parent=75 // pred_fallthru
          _
      $region76: #{decoder_forward.1} parent=5 // pred_fallthru
        _
      %p4016 = scmp.le.s32.totalorder 2, %s35
      // Predicated region
      $region137: #{decoder_forward.1} parent=5 // pred_check
        %p4017 = pneg %p4016
      $region138: #{decoder_forward.1} parent=5 // pred_check_branch
        %4019 = sbr.rel (%p4017) target = $region140
      $region139: #{decoder_forward.1} parent=5 // pred_region
        %s4020 = ssub.s32 %s35, 2
      $region140: #{decoder_forward.1} parent=5 // pred_fallthru
        _
    $region6: #{decoder_forward.1} parent=1 // loop_footer
      %s39 = sadd.s32 1, %s35
    $region7: #{decoder_forward.1} parent=1 // loop_footer_branch
      %34 = sbr.rel target = $region3
    $region8: #{decoder_forward.1} parent=1 // loop_exit
      _
    %4021 = vsyncpa [#allocation4], 1
    %s4022 = scalar_lea.sflag [#allocation4], 1
    %4023 = vsyncpa %s4022, 1
    %4024 = vsyncpa [#allocation7], 1
    %4025 = vsyncpa [#allocation10], 1
    %s4026 = scalar_lea.sflag [#allocation10], 1
    %4027 = vsyncpa %s4026, 1
    %4028 = vsyncpa [#allocation13], 1
    %s4029 = scalar_lea.sflag [#allocation13], 1
    %4030 = vsyncpa %s4029, 1
    %4031 = vsyncpa [#allocation16], 1
    %s4032 = scalar_lea.sflag [#allocation16], 1
    %4033 = vsyncpa %s4032, 1
    %4034 = vsyncpa [#allocation19], 1
    %s4035 = scalar_lea.sflag [#allocation19], 1
    %4036 = vsyncpa %s4035, 1
    %4037 = vsyncpa [#allocation5], 1
    %s4038 = scalar_lea.sflag [#allocation5], 1
    %4039 = vsyncpa %s4038, 1

</llo_original>
